<compile_context>
chip_gen: v5e
topology: v5e:2x2
jax: 0.10.0
libtpu: 0.0.40
codegen_flags: <defaults>
</compile_context>

<pallas_src>
import functools
import math

import jax
import jax.numpy as jnp
from jax.experimental import pallas as pl
from jax.experimental.pallas import tpu as pltpu

NUM_CLASS = 22


def _round_up(v, m):
    return ((v + m - 1) // m) * m


def _choose_tiles(n, itemsize):
    """Pick (n_pad, tm, tk): tm | n_pad, tk | n_pad, all lane/sublane aligned."""
    if n <= 512:
        n_pad = _round_up(max(n, 1), 128)
        return n_pad, n_pad, n_pad              # single tile -> grid degenerates to (L,1,1)
    tm = 512
    n_pad = _round_up(n, 512)
    max_tk = 2048 if itemsize == 2 else 1024    # adj tile: 2 MiB (bf16) / 2 MiB (f32 @1024)
    tk = 512
    for cand in (2048, 1024):
        if cand <= max_tk and n_pad % cand == 0:
            tk = cand
            break
    return n_pad, tm, tk


def _vmem_limit_bytes():
    """~7/8 of physical VMEM: ~56 MiB on v7x (64 MiB), ~112 MiB on v5e/v6e (128 MiB)."""
    try:
        cap = int(pltpu.get_tpu_info().vmem_capacity_bytes)
    except Exception:
        cap = 64 * 1024 * 1024                  # conservative (v7x-sized) fallback
    return min(cap * 7 // 8, 112 * 1024 * 1024)


def fused_sage_kernel(x_hbm_ref, adj_ref, w_ref, b_ref, out_ref,
                      x_scr, acc_scr, in_sem, *, num_layers, n_pad, tm, tk, f_pad):
    """All SAGE layers in one kernel.

    Grid = (layer, dst_row_tile, src_k_tile)   [k = reduction axis, innermost].

    x_hbm_ref : [n_pad, F_pad]   padded input features, HBM-resident (DMA'd once)
    adj_ref   : [tm, tk]         row-normalized adjacency tile (streamed, compute dtype)
    w_ref     : [2*F_pad, F_pad] this layer's packed Linear.weight.T ([w_aggr ; w_self])
    b_ref     : [1, F_pad]       this layer's bias
    out_ref   : [tm, F_pad]      output tile (written only at the last layer)
    x_scr     : [2*n_pad, F_pad] ping-pong activation scratch (slot = layer parity)
    acc_scr   : [tm, 2*F_pad]    f32 [aggr | x_self] accumulator for the fused epilogue
    in_sem    : DMA semaphore for the one-time input copy
    """
    l = pl.program_id(0)          # layer (sequential dependency -> 'arbitrary')
    i = pl.program_id(1)          # destination-row tile
    k = pl.program_id(2)          # source-node (reduction) tile
    nk = pl.num_programs(2)

    # Ping-pong slots inside the flattened activation scratch.
    src_base = (l % 2) * n_pad
    dst_base = ((l + 1) % 2) * n_pad

    # One-time HBM -> VMEM copy of the padded input features into activation slot 0.
    @pl.when((l == 0) & (i == 0) & (k == 0))
    def _():
        cp = pltpu.make_async_copy(x_hbm_ref, x_scr.at[0:n_pad], in_sem)
        cp.start()
        cp.wait()

    # Start of the k reduction for this (layer, row-tile): clear the aggr half of the acc.
    @pl.when(k == 0)
    def _():
        acc_scr[:, :f_pad] = jnp.zeros((tm, f_pad), jnp.float32)

    # Mean aggregation (dense scatter_mean): acc += A_norm[rows, k_cols] @ x[k_cols, :]
    # bf16 x bf16 -> f32 accumulation (native MXU path).
    k_off = pl.multiple_of(src_base + k * tk, tk)
    x_blk = x_scr[pl.ds(k_off, tk), :]
    acc_scr[:, :f_pad] += jnp.dot(adj_ref[...], x_blk,
                                  preferred_element_type=jnp.float32)

    # End of the reduction: Linear(cat([aggr, x])) (+ ReLU) + exact L2 normalize.
    @pl.when(k == nk - 1)
    def _():
        row_off = pl.multiple_of(src_base + i * tm, tm)
        x_self = x_scr[pl.ds(row_off, tm), :]
        # Single fused (tm, 2F) @ (2F, F) matmul: cat([aggr, x]) @ W.T + b.
        acc_scr[:, f_pad:] = x_self.astype(jnp.float32)
        h = jnp.dot(acc_scr[...], w_ref[...],
                    preferred_element_type=jnp.float32) + b_ref[...]

        # All layers except the last: ReLU, normalize, feed next layer (stays in VMEM).
        @pl.when(l < num_layers - 1)
        def _():
            hr = jnp.maximum(h, 0.0)
            l2 = jnp.sqrt(jnp.sum(hr * hr, axis=-1, keepdims=True)) + 1e-8
            dst_off = pl.multiple_of(dst_base + i * tm, tm)
            x_scr[pl.ds(dst_off, tm), :] = (hr / l2).astype(x_scr.dtype)

        # Last layer: Identity nonlinearity, normalize, write the result tile.
        @pl.when(l == num_layers - 1)
        def _():
            l2 = jnp.sqrt(jnp.sum(h * h, axis=-1, keepdims=True)) + 1e-8
            out_ref[...] = (h / l2).astype(out_ref.dtype)


def _pack_params(params, f_pad):
    """Pack per-layer weights as [L, 2*F_pad, F_pad] (rows: [aggr ; self]) + [L, 1, F_pad] bias."""
    num_layers = len(params)
    w_cat = jnp.zeros((num_layers, 2 * f_pad, f_pad), jnp.float32)
    bs = jnp.zeros((num_layers, 1, f_pad), jnp.float32)
    for layer, p in enumerate(params):
        fin, fout = p["w_aggr"].shape
        w_cat = w_cat.at[layer, :fin, :fout].set(p["w_aggr"])
        w_cat = w_cat.at[layer, f_pad:f_pad + fin, :fout].set(p["w_self"])
        bs = bs.at[layer, :, :fout].set(p["b"])
    return w_cat, bs


def explainable_sage_forward(x, edge_index, params, compute_dtype=jnp.bfloat16):
    """ExplainableSAGE.forward(x, ei) == ExplainableGNN.message_pass(x, ei)."""
    n, f0 = x.shape
    num_layers = len(params)
    feat_dims = [f0] + [p["w_aggr"].shape[1] for p in params]
    out_dim = feat_dims[-1]
    f_pad = _round_up(max(feat_dims), 128)            # lane-dense feature width
    itemsize = jnp.dtype(compute_dtype).itemsize
    n_pad, tm, tk = _choose_tiles(n, itemsize)

    adj = build_mean_adjacency(edge_index, n)
    adj_p = jnp.zeros((n_pad, n_pad), compute_dtype).at[:n, :n].set(adj.astype(compute_dtype))
    x_p = jnp.zeros((n_pad, f_pad), compute_dtype).at[:n, :f0].set(x.astype(compute_dtype))
    w_cat, bs = _pack_params(params, f_pad)

    grid = (num_layers, n_pad // tm, n_pad // tk)

    out = pl.pallas_call(
        functools.partial(fused_sage_kernel, num_layers=num_layers,
                          n_pad=n_pad, tm=tm, tk=tk, f_pad=f_pad),
        out_shape=jax.ShapeDtypeStruct((n_pad, f_pad), jnp.float32),
        grid_spec=pltpu.PrefetchScalarGridSpec(
            num_scalar_prefetch=0,
            grid=grid,
            in_specs=[
                # input features: stay in HBM, DMA'd once into the activation scratch
                pl.BlockSpec(memory_space=pl.ANY),
                # adjacency: streamed (tm, tk) tiles, double-buffered by the pipeline
                pl.BlockSpec((tm, tk), lambda l, i, k: (i, k)),
                # per-layer packed weights / bias: re-fetched only when the layer changes
                pl.BlockSpec((None, 2 * f_pad, f_pad), lambda l, i, k: (l, 0, 0)),
                pl.BlockSpec((None, 1, f_pad), lambda l, i, k: (l, 0, 0)),
            ],
            out_specs=pl.BlockSpec((tm, f_pad), lambda l, i, k: (i, 0)),
            scratch_shapes=[
                pltpu.VMEM((2 * n_pad, f_pad), compute_dtype),   # ping-pong activations
                pltpu.VMEM((tm, 2 * f_pad), jnp.float32),        # [aggr | x_self] accumulator
                pltpu.SemaphoreType.DMA(()),                     # one-time input DMA
            ],
        ),
        compiler_params=pltpu.CompilerParams(
            # Layer axis carries a sequential dependency; row tiles of layer l+1 need ALL
            # rows of layer l which live in per-core scratch -> all axes stay 'arbitrary'.
            dimension_semantics=("arbitrary", "arbitrary", "arbitrary"),
            vmem_limit_bytes=_vmem_limit_bytes(),
        ),
    )(x_p, adj_p, w_cat, bs)

    return out[:n, :out_dim]


def build_mean_adjacency(edge_index, num_nodes):
    """Dense row-normalized adjacency: A_norm[i, j] = (#edges j->i) / deg_in(i)."""
    src, dst = edge_index[0], edge_index[1]
    a = jnp.zeros((num_nodes, num_nodes), jnp.float32).at[dst, src].add(1.0)
    deg = jnp.sum(a, axis=1, keepdims=True)
    return jnp.where(deg > 0, a / jnp.maximum(deg, 1.0), 0.0)


def init_linear(key, in_features, out_features):
    """Deterministic init, PyTorch nn.Linear style: U(-1/sqrt(fan_in), 1/sqrt(fan_in))."""
    kw, kb = jax.random.split(key)
    bound = 1.0 / math.sqrt(in_features)
    w = jax.random.uniform(kw, (out_features, in_features), jnp.float32, -bound, bound)
    b = jax.random.uniform(kb, (out_features,), jnp.float32, -bound, bound)
    return w, b


def init_params(key, encoding_dim, hidden, out_dim, layers):
    f0 = encoding_dim + NUM_CLASS
    dims = [(2 * f0, hidden)] + [(2 * hidden, hidden)] * (layers - 2) + [(2 * hidden, out_dim)]
    params = []
    keys = jax.random.split(key, layers)
    for (fin2, fout), k in zip(dims, keys):
        w, b = init_linear(k, fin2, fout)
        fin = fin2 // 2
        params.append({
            "w_aggr": jnp.transpose(w[:, :fin]),   # [F_in, F_out]  (acts on `aggr`)
            "w_self": jnp.transpose(w[:, fin:]),   # [F_in, F_out]  (acts on `x`)
            "b": b.reshape(1, fout),
        })
    return params


def reference_forward(x, edge_index, params):
    """Plain-JAX reference (exact division) for correctness checking."""
    adj = build_mean_adjacency(edge_index, x.shape[0])
    num_layers = len(params)
    h = x
    for layer, p in enumerate(params):
        aggr = adj @ h
        out = aggr @ p["w_aggr"] + h @ p["w_self"] + p["b"]
        if layer < num_layers - 1:
            out = jnp.maximum(out, 0.0)
        l2 = jnp.sqrt(jnp.sum(out * out, axis=-1, keepdims=True)) + 1e-8
        h = out / l2
    return h


if __name__ == "__main__":
    # Accurate plain-JAX reference matmuls for the tight f32 check.
    jax.config.update("jax_default_matmul_precision", "highest")

    # Small, module-consistent shapes:
    #   encoding_dim=10 -> node feature dim = encoding_dim + NUM_CLASS = 32
    #   hidden=32, out_dim=16, layers=3, N=64 nodes, E=256 directed edges
    encoding_dim, hidden, out_dim, layers = 10, 32, 16, 3
    num_nodes, num_edges = 64, 256

    key = jax.random.PRNGKey(0)
    k_x, k_ei, k_p = jax.random.split(key, 3)

    f0 = encoding_dim + NUM_CLASS
    x = jax.random.normal(k_x, (num_nodes, f0), jnp.float32)
    edge_index = jax.random.randint(k_ei, (2, num_edges), 0, num_nodes, jnp.int32)

    params = init_params(k_p, encoding_dim, hidden, out_dim, layers)

    ref = jax.block_until_ready(reference_forward(x, edge_index, params))

    # Tight correctness check: f32 path with exact normalization.
    out_f32 = jax.block_until_ready(
        explainable_sage_forward(x, edge_index, params, compute_dtype=jnp.float32))
    assert out_f32.shape == (num_nodes, out_dim)
    assert jnp.allclose(out_f32, ref, atol=5e-5, rtol=5e-5), "f32 kernel mismatch vs reference"

    # Production fast path: bf16 adjacency/activations, f32 accumulation.
    out = jax.block_until_ready(
        explainable_sage_forward(x, edge_index, params, compute_dtype=jnp.bfloat16))
    assert out.shape == (num_nodes, out_dim)
    assert jnp.allclose(out, ref, atol=3e-2, rtol=3e-2), "bf16 kernel mismatch vs reference"

    print("KERNEL_OK")
</pallas_src>

<mosaic_0001>
module attributes {stable_mosaic.version = 11 : i64} {
  func.func @fused_sage_kernel(%arg0: i32, %arg1: i32, %arg2: i32, %arg3: memref<128x128xf32, #tpu.memory_space<any>>, %arg4: memref<128x128xf32, #tpu.memory_space<vmem>>, %arg5: memref<1x256x128xf32, #tpu.memory_space<vmem>>, %arg6: memref<1x1x128xf32, #tpu.memory_space<vmem>>, %arg7: memref<128x128xf32, #tpu.memory_space<vmem>>, %arg8: memref<256x128xf32, #tpu.memory_space<vmem>>, %arg9: memref<128x256xf32, #tpu.memory_space<vmem>>, %arg10: memref<!tpu.dma_semaphore, #tpu.memory_space<semaphore_mem>>) attributes {dimension_semantics = [#tpu.dimension_semantics<arbitrary>, #tpu.dimension_semantics<arbitrary>, #tpu.dimension_semantics<arbitrary>], iteration_bounds = array<i64: 3, 1, 1>, scalar_prefetch = 0 : i64, scratch_operands = 3 : i64, tpu.core_type = #tpu.core_type<tc>, window_params = [{}, {transform_indices = @transform_1, window_bounds = array<i64: 128, 128>}, {transform_indices = @transform_2, window_bounds = array<i64: 1, 256, 128>}, {transform_indices = @transform_3, window_bounds = array<i64: 1, 1, 128>}, {transform_indices = @transform_4, window_bounds = array<i64: 128, 128>}]} {
    %c2_i32 = arith.constant 2 : i32
    %c0_i32 = arith.constant 0 : i32
    %0 = arith.cmpi eq, %c2_i32, %c0_i32 : i32
    %c1_i32 = arith.constant 1 : i32
    %1 = arith.select %0, %c1_i32, %c2_i32 : i32
    %2 = arith.remsi %arg0, %1 : i32
    %c0_i32_0 = arith.constant 0 : i32
    %3 = arith.cmpi ne, %2, %c0_i32_0 : i32
    %c0_i32_1 = arith.constant 0 : i32
    %4 = arith.cmpi slt, %2, %c0_i32_1 : i32
    %c0_i32_2 = arith.constant 0 : i32
    %5 = arith.cmpi slt, %1, %c0_i32_2 : i32
    %6 = arith.xori %4, %5 : i1
    %7 = arith.andi %6, %3 : i1
    %8 = arith.addi %2, %1 : i32
    %9 = arith.select %7, %8, %2 : i32
    %c128_i32 = arith.constant 128 : i32
    %10 = arith.muli %9, %c128_i32 : i32
    %c1_i32_3 = arith.constant 1 : i32
    %11 = arith.addi %arg0, %c1_i32_3 : i32
    %c2_i32_4 = arith.constant 2 : i32
    %c0_i32_5 = arith.constant 0 : i32
    %12 = arith.cmpi eq, %c2_i32_4, %c0_i32_5 : i32
    %c1_i32_6 = arith.constant 1 : i32
    %13 = arith.select %12, %c1_i32_6, %c2_i32_4 : i32
    %14 = arith.remsi %11, %13 : i32
    %c0_i32_7 = arith.constant 0 : i32
    %15 = arith.cmpi ne, %14, %c0_i32_7 : i32
    %c0_i32_8 = arith.constant 0 : i32
    %16 = arith.cmpi slt, %14, %c0_i32_8 : i32
    %c0_i32_9 = arith.constant 0 : i32
    %17 = arith.cmpi slt, %13, %c0_i32_9 : i32
    %18 = arith.xori %16, %17 : i1
    %19 = arith.andi %18, %15 : i1
    %20 = arith.addi %14, %13 : i32
    %21 = arith.select %19, %20, %14 : i32
    %c128_i32_10 = arith.constant 128 : i32
    %22 = arith.muli %21, %c128_i32_10 : i32
    %c0_i32_11 = arith.constant 0 : i32
    %23 = arith.cmpi eq, %arg0, %c0_i32_11 : i32
    %c0_i32_12 = arith.constant 0 : i32
    %24 = arith.cmpi eq, %arg1, %c0_i32_12 : i32
    %25 = arith.andi %23, %24 : i1
    %c0_i32_13 = arith.constant 0 : i32
    %26 = arith.cmpi eq, %arg2, %c0_i32_13 : i32
    %27 = arith.andi %25, %26 : i1
    %28 = arith.extui %27 : i1 to i32
    %c0_i32_14 = arith.constant 0 : i32
    %29 = arith.cmpi ne, %28, %c0_i32_14 : i32
    scf.if %29 {
      %c0_i32_26 = arith.constant 0 : i32
      %c0_i32_27 = arith.constant 0 : i32
      %46 = tpu.memref_slice %arg8[%c0_i32_26, %c0_i32_27] : memref<256x128xf32, #tpu.memory_space<vmem>> -> memref<128x128xf32, #tpu.memory_space<vmem>>
      tpu.enqueue_dma source(%arg3 : memref<128x128xf32, #tpu.memory_space<any>>) target(%46 : memref<128x128xf32, #tpu.memory_space<vmem>>) target_semaphore(%arg10 : memref<!tpu.dma_semaphore, #tpu.memory_space<semaphore_mem>>)
      %c0_i32_28 = arith.constant 0 : i32
      %c0_i32_29 = arith.constant 0 : i32
      %47 = tpu.memref_slice %arg8[%c0_i32_28, %c0_i32_29] : memref<256x128xf32, #tpu.memory_space<vmem>> -> memref<128x128xf32, #tpu.memory_space<vmem>>
      tpu.wait_dma2 semaphore(%arg10 : memref<!tpu.dma_semaphore, #tpu.memory_space<semaphore_mem>>) src(%arg3 : memref<128x128xf32, #tpu.memory_space<any>>) dst(%47 : memref<128x128xf32, #tpu.memory_space<vmem>>)
    } else {
    }
    %c0_i32_15 = arith.constant 0 : i32
    %30 = arith.cmpi eq, %arg2, %c0_i32_15 : i32
    %31 = arith.extui %30 : i1 to i32
    %c0_i32_16 = arith.constant 0 : i32
    %32 = arith.cmpi ne, %31, %c0_i32_16 : i32
    scf.if %32 {
      %cst_26 = arith.constant 0.000000e+00 : f32
      %46 = vector.broadcast %cst_26 : f32 to vector<128x128xf32>
      %c0_27 = arith.constant 0 : index
      %c0_28 = arith.constant 0 : index
      %47 = vector.load %arg9[%c0_27, %c0_28] : memref<128x256xf32, #tpu.memory_space<vmem>>, vector<128x128xf32>
      tpu.vector_store %arg9[%c0_27, %c0_28], %46 {strides = array<i32>} : memref<128x256xf32, #tpu.memory_space<vmem>>, vector<128x128xf32>,
    } else {
    }
    %c128_i32_17 = arith.constant 128 : i32
    %33 = arith.muli %arg2, %c128_i32_17 : i32
    %34 = arith.addi %10, %33 : i32
    %35 = tpu.assume_multiple %34, 128 : i32
    %36 = arith.index_cast %35 : i32 to index
    %c0 = arith.constant 0 : index
    %37 = vector.load %arg8[%36, %c0] : memref<256x128xf32, #tpu.memory_space<vmem>>, vector<128x128xf32>
    %c0_18 = arith.constant 0 : index
    %c0_19 = arith.constant 0 : index
    %38 = vector.load %arg9[%c0_18, %c0_19] : memref<128x256xf32, #tpu.memory_space<vmem>>, vector<128x128xf32>
    %c0_20 = arith.constant 0 : index
    %c0_21 = arith.constant 0 : index
    %39 = vector.load %arg4[%c0_20, %c0_21] : memref<128x128xf32, #tpu.memory_space<vmem>>, vector<128x128xf32>
    %cst = arith.constant dense<0.000000e+00> : vector<128x128xf32>
    %40 = tpu.matmul %39, %37, %cst {dimension_numbers = #tpu.dot_dimension_numbers<[1], [0], [0], [1], [0, 0, 1, 1], [], []>, precision = #tpu.contract_precision<fp32>} : vector<128x128xf32>, vector<128x128xf32>, vector<128x128xf32> -> vector<128x128xf32>
    %41 = arith.addf %38, %40 : vector<128x128xf32>
    %c0_22 = arith.constant 0 : index
    %c0_23 = arith.constant 0 : index
    %42 = vector.load %arg9[%c0_22, %c0_23] : memref<128x256xf32, #tpu.memory_space<vmem>>, vector<128x128xf32>
    tpu.vector_store %arg9[%c0_22, %c0_23], %41 {strides = array<i32>} : memref<128x256xf32, #tpu.memory_space<vmem>>, vector<128x128xf32>,
    %c0_i32_24 = arith.constant 0 : i32
    %43 = arith.cmpi eq, %arg2, %c0_i32_24 : i32
    %44 = arith.extui %43 : i1 to i32
    %c0_i32_25 = arith.constant 0 : i32
    %45 = arith.cmpi ne, %44, %c0_i32_25 : i32
    scf.if %45 {
      %c128_i32_26 = arith.constant 128 : i32
      %46 = arith.muli %arg1, %c128_i32_26 : i32
      %47 = arith.addi %10, %46 : i32
      %48 = tpu.assume_multiple %47, 128 : i32
      %49 = arith.index_cast %48 : i32 to index
      %c0_27 = arith.constant 0 : index
      %50 = vector.load %arg8[%49, %c0_27] : memref<256x128xf32, #tpu.memory_space<vmem>>, vector<128x128xf32>
      %c0_28 = arith.constant 0 : index
      %c128 = arith.constant 128 : index
      %51 = vector.load %arg9[%c0_28, %c128] : memref<128x256xf32, #tpu.memory_space<vmem>>, vector<128x128xf32>
      tpu.vector_store %arg9[%c0_28, %c128], %50 {strides = array<i32>} : memref<128x256xf32, #tpu.memory_space<vmem>>, vector<128x128xf32>,
      %c0_29 = arith.constant 0 : index
      %c0_30 = arith.constant 0 : index
      %52 = vector.load %arg9[%c0_29, %c0_30] : memref<128x256xf32, #tpu.memory_space<vmem>>, vector<128x256xf32>
      %c0_31 = arith.constant 0 : index
      %c0_32 = arith.constant 0 : index
      %c0_33 = arith.constant 0 : index
      %53 = vector.load %arg5[%c0_31, %c0_32, %c0_33] : memref<1x256x128xf32, #tpu.memory_space<vmem>>, vector<1x256x128xf32>
      %54 = vector.shape_cast %53 : vector<1x256x128xf32> to vector<256x128xf32>
      %cst_34 = arith.constant dense<0.000000e+00> : vector<128x128xf32>
      %55 = tpu.matmul %52, %54, %cst_34 {dimension_numbers = #tpu.dot_dimension_numbers<[1], [0], [0], [1], [0, 0, 1, 1], [], []>, precision = #tpu.contract_precision<fp32>} : vector<128x256xf32>, vector<256x128xf32>, vector<128x128xf32> -> vector<128x128xf32>
      %c0_35 = arith.constant 0 : index
      %c0_36 = arith.constant 0 : index
      %c0_37 = arith.constant 0 : index
      %56 = vector.load %arg6[%c0_35, %c0_36, %c0_37] : memref<1x1x128xf32, #tpu.memory_space<vmem>>, vector<1x1x128xf32>
      %57 = vector.shape_cast %56 : vector<1x1x128xf32> to vector<1x128xf32>
      %58 = vector.broadcast %57 : vector<1x128xf32> to vector<128x128xf32>
      %59 = arith.addf %55, %58 : vector<128x128xf32>
      %c2_i32_38 = arith.constant 2 : i32
      %60 = arith.cmpi slt, %arg0, %c2_i32_38 : i32
      %61 = arith.extui %60 : i1 to i32
      %c0_i32_39 = arith.constant 0 : i32
      %62 = arith.cmpi ne, %61, %c0_i32_39 : i32
      scf.if %62 {
        %cst_42 = arith.constant 0.000000e+00 : f32
        %66 = vector.broadcast %cst_42 : f32 to vector<128x128xf32>
        %67 = arith.maximumf %59, %66 : vector<128x128xf32>
        %68 = arith.mulf %67, %67 : vector<128x128xf32>
        %cst_43 = arith.constant dense<0.000000e+00> : vector<128xf32>
        %69 = vector.multi_reduction <add>, %68, %cst_43 [1] : vector<128x128xf32> to vector<128xf32>
        %70 = vector.shape_cast %69 : vector<128xf32> to vector<128x1xf32>
        %71 = math.sqrt %70 : vector<128x1xf32>
        %cst_44 = arith.constant 9.99999993E-9 : f32
        %72 = vector.broadcast %cst_44 : f32 to vector<128x1xf32>
        %73 = arith.addf %71, %72 : vector<128x1xf32>
        %c128_i32_45 = arith.constant 128 : i32
        %74 = arith.muli %arg1, %c128_i32_45 : i32
        %75 = arith.addi %22, %74 : i32
        %76 = tpu.assume_multiple %75, 128 : i32
        %77 = vector.broadcast %73 : vector<128x1xf32> to vector<128x128xf32>
        %78 = arith.divf %67, %77 : vector<128x128xf32>
        %79 = arith.index_cast %76 : i32 to index
        %c0_46 = arith.constant 0 : index
        %80 = vector.load %arg8[%79, %c0_46] : memref<256x128xf32, #tpu.memory_space<vmem>>, vector<128x128xf32>
        tpu.vector_store %arg8[%79, %c0_46], %78 {strides = array<i32>} : memref<256x128xf32, #tpu.memory_space<vmem>>, vector<128x128xf32>,
      } else {
      }
      %c2_i32_40 = arith.constant 2 : i32
      %63 = arith.cmpi eq, %arg0, %c2_i32_40 : i32
      %64 = arith.extui %63 : i1 to i32
      %c0_i32_41 = arith.constant 0 : i32
      %65 = arith.cmpi ne, %64, %c0_i32_41 : i32
      scf.if %65 {
        %66 = arith.mulf %59, %59 : vector<128x128xf32>
        %cst_42 = arith.constant dense<0.000000e+00> : vector<128xf32>
        %67 = vector.multi_reduction <add>, %66, %cst_42 [1] : vector<128x128xf32> to vector<128xf32>
        %68 = vector.shape_cast %67 : vector<128xf32> to vector<128x1xf32>
        %69 = math.sqrt %68 : vector<128x1xf32>
        %cst_43 = arith.constant 9.99999993E-9 : f32
        %70 = vector.broadcast %cst_43 : f32 to vector<128x1xf32>
        %71 = arith.addf %69, %70 : vector<128x1xf32>
        %72 = vector.broadcast %71 : vector<128x1xf32> to vector<128x128xf32>
        %73 = arith.divf %59, %72 : vector<128x128xf32>
        %c0_44 = arith.constant 0 : index
        %c0_45 = arith.constant 0 : index
        %74 = vector.load %arg7[%c0_44, %c0_45] : memref<128x128xf32, #tpu.memory_space<vmem>>, vector<128x128xf32>
        tpu.vector_store %arg7[%c0_44, %c0_45], %73 {strides = array<i32>} : memref<128x128xf32, #tpu.memory_space<vmem>>, vector<128x128xf32>,
      } else {
      }
    } else {
    }
    return
  }
  func.func @transform_1(%arg0: i32, %arg1: i32, %arg2: i32) -> (i32, i32) {
    %c0_i32 = arith.constant 0 : i32
    return %arg1, %arg2 : i32, i32
  }
  func.func @transform_2(%arg0: i32, %arg1: i32, %arg2: i32) -> (i32, i32, i32) {
    %c0_i32 = arith.constant 0 : i32
    %c0_i32_0 = arith.constant 0 : i32
    %c0_i32_1 = arith.constant 0 : i32
    return %arg0, %c0_i32, %c0_i32_0 : i32, i32, i32
  }
  func.func @transform_3(%arg0: i32, %arg1: i32, %arg2: i32) -> (i32, i32, i32) {
    %c0_i32 = arith.constant 0 : i32
    %c0_i32_0 = arith.constant 0 : i32
    %c0_i32_1 = arith.constant 0 : i32
    return %arg0, %c0_i32, %c0_i32_0 : i32, i32, i32
  }
  func.func @transform_4(%arg0: i32, %arg1: i32, %arg2: i32) -> (i32, i32) {
    %c0_i32 = arith.constant 0 : i32
    %c0_i32_0 = arith.constant 0 : i32
    return %arg1, %c0_i32 : i32, i32
  }
}

</mosaic_0001>

<llo_original>
// kernel: tpu_custom_call.1
$region0: #{tpu_custom_call.1}
  #allocation0 [shape = 'u32[]', space=smem, size = 0x4, offset = 0x4, fixed_abs, tag = 'smem constant byte address 0x4 - core index']
  #allocation1 [shape = 'u32[72,128]{1,0:T(1,128)}', space=vmem, size = 0x9000, scoped, tag = 'internal scratch']
  #allocation2 [shape = 'f32[256,128]{1,0:T(8,128)}', space=vmem, size = 0x20000, scoped, tag = 'scratch operand']
  #allocation3 [shape = 'f32[128,256]{1,0:T(8,128)}', space=vmem, size = 0x20000, scoped, tag = 'scratch operand']
  #allocation4 [shape = 's32[1]{0}', space=sflag, size = 0x4, scoped, tag = 'scratch operand']
  #allocation12 [shape = 's32[]', space=sflag, size = 0x4, offset = 0, fixed_abs, tag = 'sflag constant byte address 0x0 - dummy sync flag']
  #allocation13 [shape = 's32[]', space=sflag, size = 0x4, offset = 0, fixed_abs, tag = 'sflag constant byte address 0x0 - dummy sync flag']
  #allocation14 [shape = 'u32[]', space=smem, size = 0x4, offset = 0x44, fixed_abs, tag = 'smem constant byte address 0x44 - assertion arg 0']
  #allocation15 [shape = 'u32[]', space=smem, size = 0x4, offset = 0x48, fixed_abs, tag = 'smem constant byte address 0x48 - assertion arg 1']
  %s0 = inlined_call_operand.hbm [shape: f32[128,128], index: 0, kind: input, shape index: {}]
  %s1 = inlined_call_operand.hbm [shape: f32[128,128], index: 1, kind: input, shape index: {}]
  %s2 = inlined_call_operand.hbm [shape: f32[3,256,128], index: 2, kind: input, shape index: {}]
  %s3 = inlined_call_operand.hbm [shape: f32[3,1,128], index: 3, kind: input, shape index: {}]
  %s4 = inlined_call_operand.hbm [shape: f32[128,128], index: 4, kind: output, shape index: {}]
  %s5 = sld [smem:[#allocation0]]
  $region81: #{tpu_custom_call.1} parent=0
    _
  %s7 = ssub.s32 1, %s5
  %s8 = scalar_select 0, %s7, %s5
  $region1: #{tpu_custom_call.1} parent=0
    #allocation5 [shape = 'u8[65536]{0}', space=vmem, size = 0x10000, scoped, tag = 'input window, operand 1, single buffered']
    #allocation6 [shape = 's32[2]{0}', space=sflag, size = 0x8, scoped, tag = 'scoped memory for tpu_custom_call.1']
    #allocation7 [shape = 's32[2]{0}', space=sflag, size = 0x8, scoped, tag = 'scoped memory for tpu_custom_call.1']
    #allocation8 [shape = 'u8[262144]{0}', space=vmem, size = 0x40000, scoped, tag = 'input window, operand 2']
    #allocation9 [shape = 's32[2]{0}', space=sflag, size = 0x8, scoped, tag = 'scoped memory for tpu_custom_call.1']
    #allocation10 [shape = 'u8[1024]{0}', space=vmem, size = 0x400, scoped, tag = 'input window, operand 3']
    #allocation11 [shape = 'u8[65536]{0}', space=vmem, size = 0x10000, scoped, tag = 'output window, operand 0, single buffered']
    %9 = vsyncpa [#allocation6], 0
    %10 = vsyncpa [#allocation9], 0
    %s11 = scalar_lea.sflag [#allocation9], 1
    %12 = vsyncpa %s11, 0
    %13 = vsyncpa [#allocation7], 0
    loop: start=0, step=1, limit=5
    $region2: #{tpu_custom_call.1} parent=1 // loop_pre_header
      _
    $region3: #{tpu_custom_call.1} parent=1 // loop_header
      %s15 = sphi 0, %s19
      %p16 = scmp.ge.s32.totalorder %s15, 5
      %s22 = sphi 0, %s41
      %s23 = sphi 0, %s37
      %s24 = sphi 0, %s33
      %s25 = sphi 0, %s22
      %s26 = sphi 0, %s23
      %s27 = sphi 0, %s24
      %s28 = sphi 0, %s25
      %s29 = sphi 0, %s26
      %s30 = sphi 0, %s27
      %s46 = sphi 0, %s48
      %s49 = sphi 0, %s46
      %s50 = sphi 0, %s49
      %s66 = sphi 0, %s50
      %s72 = sphi 0, %s74
      %s75 = sphi 0, %s72
      %s76 = sphi 0, %s75
      %s92 = sphi 0, %s76
      %s98 = sphi 0, %s100
      %s101 = sphi 0, %s98
      %s102 = sphi 0, %s101
      %s118 = sphi 0, %s102
      %s124 = sphi 0, %s126
      %s127 = sphi 0, %s124
      %s128 = sphi 0, %s127
      %s144 = sphi 0, %s128
    $region4: #{tpu_custom_call.1} parent=1 // loop_header_branch
      %18 = sbr.rel (%p16) target = $region8
    $region5: #{tpu_custom_call.1} parent=1 // loop_body
      %s20 = ssub.s32 %s15, 1
      %s21 = ssub.s32 %s15, 2
      %s31 = sadd.s32 1, %s24
      %p32 = scmp.ge.s32.totalorder %s31, 1
      %s33 = scalar_select %p32, 0, %s31
      %s34 = sadd.s32 1, %s23
      %s35 = scalar_select %p32, %s34, %s23
      %p36 = scmp.ge.s32.totalorder %s35, 1
      %s37 = scalar_select %p36, 0, %s35
      %s38 = sadd.s32 1, %s22
      %s39 = scalar_select %p36, %s38, %s22
      %p40 = scmp.ge.s32.totalorder %s39, 3
      %s41 = scalar_select %p40, 0, %s39
      %s42 = ssub.s32 %s23, %s37
      %s43 = ssub.s32 %s24, %s33
      %s44 = sor.u32 %s42, %s43
      %p45 = scmp.eq.s32.totalorder %s44, 0
      %s47 = sadd.s32 %s46, 1
      %s48 = scalar_select %p45, %s46, %s47
      %p51 = pneg %p45
      %p52 = scmp.eq.s32.totalorder %s15, 2
      %p53 = por %p51, %p52
      %p54 = scmp.ne.s32.totalorder %s46, %s49
      %p55 = scmp.eq.s32.totalorder %s15, 0
      %p56 = por %p54, %p55
      %p57 = scmp.ne.s32.totalorder %s46, %s49
      %p58 = scmp.eq.s32.totalorder %s20, 2
      %p59 = por %p57, %p58
      %p60 = scmp.ne.s32.totalorder %s49, %s50
      %p61 = scmp.eq.s32.totalorder %s20, 0
      %p62 = por %p60, %p61
      %p63 = scmp.ne.s32.totalorder %s49, %s50
      %p64 = scmp.eq.s32.totalorder %s21, 2
      %p65 = por %p63, %p64
      %p67 = scmp.ne.s32.totalorder %s50, %s66
      %p68 = scmp.eq.s32.totalorder %s21, 0
      %p69 = por %p67, %p68
      %s70 = ssub.s32 %s22, %s41
      %p71 = scmp.eq.s32.totalorder %s70, 0
      %s73 = sadd.s32 %s72, 1
      %s74 = scalar_select %p71, %s72, %s73
      %p77 = pneg %p71
      %p78 = scmp.eq.s32.totalorder %s15, 2
      %p79 = por %p77, %p78
      %p80 = scmp.ne.s32.totalorder %s72, %s75
      %p81 = scmp.eq.s32.totalorder %s15, 0
      %p82 = por %p80, %p81
      %p83 = scmp.ne.s32.totalorder %s72, %s75
      %p84 = scmp.eq.s32.totalorder %s20, 2
      %p85 = por %p83, %p84
      %p86 = scmp.ne.s32.totalorder %s75, %s76
      %p87 = scmp.eq.s32.totalorder %s20, 0
      %p88 = por %p86, %p87
      %p89 = scmp.ne.s32.totalorder %s75, %s76
      %p90 = scmp.eq.s32.totalorder %s21, 2
      %p91 = por %p89, %p90
      %p93 = scmp.ne.s32.totalorder %s76, %s92
      %p94 = scmp.eq.s32.totalorder %s21, 0
      %p95 = por %p93, %p94
      %s96 = ssub.s32 %s22, %s41
      %p97 = scmp.eq.s32.totalorder %s96, 0
      %s99 = sadd.s32 %s98, 1
      %s100 = scalar_select %p97, %s98, %s99
      %p103 = pneg %p97
      %p104 = scmp.eq.s32.totalorder %s15, 2
      %p105 = por %p103, %p104
      %p106 = scmp.ne.s32.totalorder %s98, %s101
      %p107 = scmp.eq.s32.totalorder %s15, 0
      %p108 = por %p106, %p107
      %p109 = scmp.ne.s32.totalorder %s98, %s101
      %p110 = scmp.eq.s32.totalorder %s20, 2
      %p111 = por %p109, %p110
      %p112 = scmp.ne.s32.totalorder %s101, %s102
      %p113 = scmp.eq.s32.totalorder %s20, 0
      %p114 = por %p112, %p113
      %p115 = scmp.ne.s32.totalorder %s101, %s102
      %p116 = scmp.eq.s32.totalorder %s21, 2
      %p117 = por %p115, %p116
      %p119 = scmp.ne.s32.totalorder %s102, %s118
      %p120 = scmp.eq.s32.totalorder %s21, 0
      %p121 = por %p119, %p120
      %s122 = ssub.s32 %s23, %s37
      %p123 = scmp.eq.s32.totalorder %s122, 0
      %s125 = sadd.s32 %s124, 1
      %s126 = scalar_select %p123, %s124, %s125
      %p129 = pneg %p123
      %p130 = scmp.eq.s32.totalorder %s15, 2
      %p131 = por %p129, %p130
      %p132 = scmp.ne.s32.totalorder %s124, %s127
      %p133 = scmp.eq.s32.totalorder %s15, 0
      %p134 = por %p132, %p133
      %p135 = scmp.ne.s32.totalorder %s124, %s127
      %p136 = scmp.eq.s32.totalorder %s20, 2
      %p137 = por %p135, %p136
      %p138 = scmp.ne.s32.totalorder %s127, %s128
      %p139 = scmp.eq.s32.totalorder %s20, 0
      %p140 = por %p138, %p139
      %p141 = scmp.ne.s32.totalorder %s127, %s128
      %p142 = scmp.eq.s32.totalorder %s21, 2
      %p143 = por %p141, %p142
      %p145 = scmp.ne.s32.totalorder %s128, %s144
      %p146 = scmp.eq.s32.totalorder %s21, 0
      %p147 = por %p145, %p146
      %p148 = scmp.le.s32.totalorder 1, %s15
      %p149 = scmp.lt.s32.totalorder %s15, 4
      %p150 = pnand %p148, %p149
      %p151 = pneg %p150
      // Predicated region
      $region9: #{tpu_custom_call.1} parent=5 // pred_check
        _
      $region10: #{tpu_custom_call.1} parent=5 // pred_check_branch
        %153 = sbr.rel (%p150) target = $region12
      $region11: #{tpu_custom_call.1} parent=5 // pred_region
        %s154 = ssub.s32 %s15, 1
        // Predicated region
        $region13: #{tpu_custom_call.1} parent=11 // pred_check
          %p155 = pneg %p62
        $region14: #{tpu_custom_call.1} parent=11 // pred_check_branch
          %157 = sbr.rel (%p155) target = $region16
        $region15: #{tpu_custom_call.1} parent=11 // pred_region
          %s158 = smul.u32 16, %s26
          %160 = vsyncadd [#allocation6], 0
          %s161 = sadd.s32 %s27, %s158
          %s162 = smul.addr %s161, 8
          %s163 = scalar_lea.hbm %s1, %s162
          %s164 = sshll.u32 %s163, 4
          %s165 = int_to_ptr.hbm [resolvable:$true] %s164
          %s166 = sshll.u32 [#allocation5], 4
          %s167 = int_to_ptr.vmem [resolvable:$true] %s166
          %172 = dma.hbm_to_vmem [thread:$0]  %s165, 2048, %s167, [#allocation6], 128, 128, 8
        $region16: #{tpu_custom_call.1} parent=11 // pred_fallthru
          _
      $region12: #{tpu_custom_call.1} parent=5 // pred_fallthru
        _
      %p173 = scmp.lt.s32.totalorder %s15, 3
      // Predicated region
      $region17: #{tpu_custom_call.1} parent=5 // pred_check
        %p174 = pneg %p173
      $region18: #{tpu_custom_call.1} parent=5 // pred_check_branch
        %176 = sbr.rel (%p174) target = $region20
      $region19: #{tpu_custom_call.1} parent=5 // pred_region
        // Predicated region
        $region21: #{tpu_custom_call.1} parent=19 // pred_check
          %p177 = pneg %p82
        $region22: #{tpu_custom_call.1} parent=19 // pred_check_branch
          %179 = sbr.rel (%p177) target = $region24
        $region23: #{tpu_custom_call.1} parent=19 // pred_region
          %s180 = sand.u32 %s15, 1
          %s181 = scalar_lea.sflag [#allocation9], %s180
          %s182 = sand.u32 %s72, 1
          %s183 = smul.addr %s182, 256
          %s184 = scalar_lea.vmem [#allocation8], %s183
          %186 = vsyncadd %s181, 0
          %s187 = smul.addr %s22, 32
          %s188 = smul.addr %s187, 8
          %s189 = scalar_lea.hbm %s2, %s188
          %s190 = sshll.u32 %s189, 4
          %s191 = int_to_ptr.hbm [resolvable:$true] %s190
          %s192 = sshll.u32 %s184, 4
          %s193 = int_to_ptr.vmem [resolvable:$true] %s192
          %198 = dma.hbm_to_vmem [thread:$0]  %s191, 4096, %s193, %s181, 128, 128, 8
        $region24: #{tpu_custom_call.1} parent=19 // pred_fallthru
          _
        // Predicated region
        $region25: #{tpu_custom_call.1} parent=19 // pred_check
          %p199 = pneg %p108
        $region26: #{tpu_custom_call.1} parent=19 // pred_check_branch
          %201 = sbr.rel (%p199) target = $region28
        $region27: #{tpu_custom_call.1} parent=19 // pred_region
          %s202 = sand.u32 %s15, 1
          %s203 = scalar_lea.sflag [#allocation9], %s202
          %s204 = sand.u32 %s98, 1
          %s205 = scalar_lea.vmem [#allocation10], %s204
          %207 = vsyncadd %s203, 0
          %s208 = scalar_lea.hbm %s3, %s22
          %s210 = sshll.u32 %s208, 4
          %s211 = int_to_ptr.hbm [resolvable:$true] %s210
          %s212 = sshll.u32 %s205, 4
          %s213 = int_to_ptr.vmem [resolvable:$true] %s212
          %215 = dma.hbm_to_vmem [thread:$0]  %s211, 16, %s213, %s203
        $region28: #{tpu_custom_call.1} parent=19 // pred_fallthru
          _
      $region20: #{tpu_custom_call.1} parent=5 // pred_fallthru
        _
      %p216 = scmp.le.s32.totalorder 1, %s15
      %p217 = scmp.lt.s32.totalorder %s15, 4
      %p218 = pnand %p216, %p217
      %p219 = pneg %p218
      // Predicated region
      $region29: #{tpu_custom_call.1} parent=5 // pred_check
        _
      $region30: #{tpu_custom_call.1} parent=5 // pred_check_branch
        %221 = sbr.rel (%p218) target = $region32
      $region31: #{tpu_custom_call.1} parent=5 // pred_region
        %s222 = ssub.s32 %s15, 1
        // Predicated region
        $region33: #{tpu_custom_call.1} parent=31 // pred_check
          %p223 = pneg %p62
        $region34: #{tpu_custom_call.1} parent=31 // pred_check_branch
          %225 = sbr.rel (%p223) target = $region36
        $region35: #{tpu_custom_call.1} parent=31 // pred_region
          %227 = dma.done [#allocation6], 2048
        $region36: #{tpu_custom_call.1} parent=31 // pred_fallthru
          _
        %s228 = sand.u32 %s20, 1
        %s229 = scalar_lea.sflag [#allocation9], %s228
        %s230 = sand.u32 %s75, 1
        %s231 = smul.addr %s230, 256
        %s232 = scalar_lea.vmem [#allocation8], %s231
        // Predicated region
        $region37: #{tpu_custom_call.1} parent=31 // pred_check
          %p233 = pneg %p88
        $region38: #{tpu_custom_call.1} parent=31 // pred_check_branch
          %235 = sbr.rel (%p233) target = $region40
        $region39: #{tpu_custom_call.1} parent=31 // pred_region
          %237 = dma.done %s229, 4096
        $region40: #{tpu_custom_call.1} parent=31 // pred_fallthru
          _
        %s238 = sand.u32 %s20, 1
        %s239 = scalar_lea.sflag [#allocation9], %s238
        %s240 = sand.u32 %s101, 1
        %s241 = scalar_lea.vmem [#allocation10], %s240
        // Predicated region
        $region41: #{tpu_custom_call.1} parent=31 // pred_check
          %p242 = pneg %p114
        $region42: #{tpu_custom_call.1} parent=31 // pred_check_branch
          %244 = sbr.rel (%p242) target = $region44
        $region43: #{tpu_custom_call.1} parent=31 // pred_region
          %246 = dma.done %s239, 16
        $region44: #{tpu_custom_call.1} parent=31 // pred_fallthru
          _
        %p247 = pneg %p62
        %p248 = pneg %p59
        %s249 = sand.u32 %s20, 1
        %s250 = scalar_lea.sflag [#allocation9], %s249
        %s251 = sand.u32 %s75, 1
        %s252 = smul.addr %s251, 256
        %s253 = scalar_lea.vmem [#allocation8], %s252
        %p254 = pneg %p88
        %p255 = pneg %p85
        %s256 = sand.u32 %s20, 1
        %s257 = scalar_lea.sflag [#allocation9], %s256
        %s258 = sand.u32 %s101, 1
        %s259 = scalar_lea.vmem [#allocation10], %s258
        %p260 = pneg %p114
        %p261 = pneg %p111
        %p262 = pneg %p140
        %p263 = pneg %p137
        %s264 = smul.u32 16, %s26
        %s265 = smul.u32 16, %s26
        %p266 = scmp.lt.s32.totalorder %s25, 0
        %s267 = ssub.s32 0, %s25
        %s268 = scalar_select %p266, %s267, %s25
        %s269 = sand.u32 %s268, 1
        %s270 = ssub.s32 0, %s269
        %s271 = scalar_select %p266, %s270, %s269
        %p272 = scmp.ne.s32.totalorder %s271, 0
        %p273 = scmp.lt.s32.totalorder %s271, 0
        %p274 = pnand %p273, %p272
        %p275 = pneg %p274
        %s276 = sadd.s32 %s271, 2
        %s277 = scalar_select %p275, %s276, %s271
        %s278 = smul.u32 %s277, 128
        %s279 = sadd.s32 %s25, 1
        %p280 = scmp.lt.s32.totalorder %s279, 0
        %s281 = ssub.s32 0, %s279
        %s282 = scalar_select %p280, %s281, %s279
        %s283 = sand.u32 %s282, 1
        %s284 = ssub.s32 0, %s283
        %s285 = scalar_select %p280, %s284, %s283
        %p286 = scmp.ne.s32.totalorder %s285, 0
        %p287 = scmp.lt.s32.totalorder %s285, 0
        %p288 = pnand %p287, %p286
        %p289 = pneg %p288
        %s290 = sadd.s32 %s285, 2
        %s291 = scalar_select %p289, %s290, %s285
        %s292 = smul.u32 %s291, 128
        %p293 = scmp.eq.s32.totalorder %s25, 0
        %p294 = scmp.eq.s32.totalorder %s26, 0
        %p295 = pnand %p293, %p294
        %p296 = pneg %p295
        %p297 = scmp.eq.s32.totalorder %s27, 0
        %p298 = pnand %p296, %p297
        %p299 = pneg %p298
        // Predicated region
        $region45: #{tpu_custom_call.1} parent=31 // pred_check
          _
        $region46: #{tpu_custom_call.1} parent=31 // pred_check_branch
          %301 = sbr.rel (%p298) target = $region48
        $region47: #{tpu_custom_call.1} parent=31 // pred_region
          // Predicated region
          $region49: #{tpu_custom_call.1} parent=47 // pred_check
            _
          $region50: #{tpu_custom_call.1} parent=47 // pred_check_branch
            %303 = sbr.rel target = $region52
          $region51: #{tpu_custom_call.1} parent=47 // pred_region
            %304 = sst [smem:[#allocation14]] [#allocation13]
            %305 = sst [smem:[#allocation15]] [#allocation12]
          $region52: #{tpu_custom_call.1} parent=47 // pred_fallthru
            _
          %307 = shalt.err (0)
          %s309 = sshll.u32 %s0, 4
          %s310 = int_to_ptr.hbm [resolvable:$true] %s309
          %s311 = sshll.u32 [#allocation2], 4
          %s312 = int_to_ptr.vmem [resolvable:$true] %s311
          %314 = dma.hbm_to_vmem [thread:$0]  %s310, 2048, %s312, [#allocation4]
          %s315 = smul.u32 128, 1
          %s316 = sshll.u32 %s315, 4
          %317 = dma.done [#allocation4], %s316
        $region48: #{tpu_custom_call.1} parent=31 // pred_fallthru
          _
        // Predicated region
        $region53: #{tpu_custom_call.1} parent=31 // pred_check
          %p318 = pneg %p297
        $region54: #{tpu_custom_call.1} parent=31 // pred_check_branch
          %320 = sbr.rel (%p318) target = $region56
        $region55: #{tpu_custom_call.1} parent=31 // pred_region
          %321 = vst [vmem:[#allocation3] sm:$0xff] 0.0
          %322 = vst [vmem:[#allocation3 + $0x10] sm:$0xff] 0.0
          %323 = vst [vmem:[#allocation3 + $0x20] sm:$0xff] 0.0
          %324 = vst [vmem:[#allocation3 + $0x30] sm:$0xff] 0.0
          %325 = vst [vmem:[#allocation3 + $0x40] sm:$0xff] 0.0
          %326 = vst [vmem:[#allocation3 + $0x50] sm:$0xff] 0.0
          %327 = vst [vmem:[#allocation3 + $0x60] sm:$0xff] 0.0
          %328 = vst [vmem:[#allocation3 + $0x70] sm:$0xff] 0.0
          %329 = vst [vmem:[#allocation3 + $0x80] sm:$0xff] 0.0
          %330 = vst [vmem:[#allocation3 + $0x90] sm:$0xff] 0.0
          %331 = vst [vmem:[#allocation3 + $0xa0] sm:$0xff] 0.0
          %332 = vst [vmem:[#allocation3 + $0xb0] sm:$0xff] 0.0
          %333 = vst [vmem:[#allocation3 + $0xc0] sm:$0xff] 0.0
          %334 = vst [vmem:[#allocation3 + $0xd0] sm:$0xff] 0.0
          %335 = vst [vmem:[#allocation3 + $0xe0] sm:$0xff] 0.0
          %336 = vst [vmem:[#allocation3 + $0xf0] sm:$0xff] 0.0
        $region56: #{tpu_custom_call.1} parent=31 // pred_fallthru
          _
        %s337 = smul.u32 %s27, 128
        %s338 = sadd.s32 %s278, %s337
        %s339 = scalar_lea.vmem [#allocation2], %s338
        %v340 = vld [vmem:[%s339] sm:$0xff]
        %v341 = vld [vmem:[%s339 + $0x8] sm:$0xff]
        %v342 = vld [vmem:[%s339 + $0x10] sm:$0xff]
        %v343 = vld [vmem:[%s339 + $0x18] sm:$0xff]
        %v344 = vld [vmem:[%s339 + $0x20] sm:$0xff]
        %v345 = vld [vmem:[%s339 + $0x28] sm:$0xff]
        %v346 = vld [vmem:[%s339 + $0x30] sm:$0xff]
        %v347 = vld [vmem:[%s339 + $0x38] sm:$0xff]
        %v348 = vld [vmem:[%s339 + $0x40] sm:$0xff]
        %v349 = vld [vmem:[%s339 + $0x48] sm:$0xff]
        %v350 = vld [vmem:[%s339 + $0x50] sm:$0xff]
        %v351 = vld [vmem:[%s339 + $0x58] sm:$0xff]
        %v352 = vld [vmem:[%s339 + $0x60] sm:$0xff]
        %v353 = vld [vmem:[%s339 + $0x68] sm:$0xff]
        %v354 = vld [vmem:[%s339 + $0x70] sm:$0xff]
        %v355 = vld [vmem:[%s339 + $0x78] sm:$0xff]
        %v356 = vld [vmem:[#allocation3] sm:$0xff]
        %v357 = vld [vmem:[#allocation3 + $0x10] sm:$0xff]
        %v358 = vld [vmem:[#allocation3 + $0x20] sm:$0xff]
        %v359 = vld [vmem:[#allocation3 + $0x30] sm:$0xff]
        %v360 = vld [vmem:[#allocation3 + $0x40] sm:$0xff]
        %v361 = vld [vmem:[#allocation3 + $0x50] sm:$0xff]
        %v362 = vld [vmem:[#allocation3 + $0x60] sm:$0xff]
        %v363 = vld [vmem:[#allocation3 + $0x70] sm:$0xff]
        %v364 = vld [vmem:[#allocation3 + $0x80] sm:$0xff]
        %v365 = vld [vmem:[#allocation3 + $0x90] sm:$0xff]
        %v366 = vld [vmem:[#allocation3 + $0xa0] sm:$0xff]
        %v367 = vld [vmem:[#allocation3 + $0xb0] sm:$0xff]
        %v368 = vld [vmem:[#allocation3 + $0xc0] sm:$0xff]
        %v369 = vld [vmem:[#allocation3 + $0xd0] sm:$0xff]
        %v370 = vld [vmem:[#allocation3 + $0xe0] sm:$0xff]
        %v371 = vld [vmem:[#allocation3 + $0xf0] sm:$0xff]
        %v372 = vld [vmem:[#allocation5] sm:$0xff]
        %v373 = vld [vmem:[#allocation5 + $0x8] sm:$0xff]
        %v374 = vld [vmem:[#allocation5 + $0x10] sm:$0xff]
        %v375 = vld [vmem:[#allocation5 + $0x18] sm:$0xff]
        %v376 = vld [vmem:[#allocation5 + $0x20] sm:$0xff]
        %v377 = vld [vmem:[#allocation5 + $0x28] sm:$0xff]
        %v378 = vld [vmem:[#allocation5 + $0x30] sm:$0xff]
        %v379 = vld [vmem:[#allocation5 + $0x38] sm:$0xff]
        %v380 = vld [vmem:[#allocation5 + $0x40] sm:$0xff]
        %v381 = vld [vmem:[#allocation5 + $0x48] sm:$0xff]
        %v382 = vld [vmem:[#allocation5 + $0x50] sm:$0xff]
        %v383 = vld [vmem:[#allocation5 + $0x58] sm:$0xff]
        %v384 = vld [vmem:[#allocation5 + $0x60] sm:$0xff]
        %v385 = vld [vmem:[#allocation5 + $0x68] sm:$0xff]
        %v386 = vld [vmem:[#allocation5 + $0x70] sm:$0xff]
        %v387 = vld [vmem:[#allocation5 + $0x78] sm:$0xff]
        %v388 = vand.u32 %v355, 4294901760
        %389 = vmatpush.msra.mxu0 %v388
        %v390 = vand.u32 %v354, 4294901760
        %391 = vmatpush.msra.mxu0 %v390
        %v392 = vand.u32 %v353, 4294901760
        %393 = vmatpush.msra.mxu0 %v392
        %v394 = vand.u32 %v352, 4294901760
        %395 = vmatpush.msra.mxu0 %v394
        %v396 = vand.u32 %v351, 4294901760
        %397 = vmatpush.msra.mxu0 %v396
        %v398 = vand.u32 %v350, 4294901760
        %399 = vmatpush.msra.mxu0 %v398
        %v400 = vand.u32 %v349, 4294901760
        %401 = vmatpush.msra.mxu0 %v400
        %v402 = vand.u32 %v348, 4294901760
        %403 = vmatpush.msra.mxu0 %v402
        %v404 = vand.u32 %v347, 4294901760
        %405 = vmatpush.msra.mxu0 %v404
        %v406 = vand.u32 %v346, 4294901760
        %407 = vmatpush.msra.mxu0 %v406
        %v408 = vand.u32 %v345, 4294901760
        %409 = vmatpush.msra.mxu0 %v408
        %v410 = vand.u32 %v344, 4294901760
        %411 = vmatpush.msra.mxu0 %v410
        %v412 = vand.u32 %v343, 4294901760
        %413 = vmatpush.msra.mxu0 %v412
        %v414 = vand.u32 %v342, 4294901760
        %415 = vmatpush.msra.mxu0 %v414
        %v416 = vand.u32 %v341, 4294901760
        %417 = vmatpush.msra.mxu0 %v416
        %v418 = vand.u32 %v340, 4294901760
        %419 = vmatpush.msra.mxu0 %v418
        %v420 = vand.u32 %v372, 4294901760
        %v421 = vsub.f32 %v372, %v420
        %v422 = vand.u32 %v421, 4294901760
        %v423 = vsub.f32 %v421, %v422
        %v424 = vand.u32 %v423, 4294901760
        %425 = vmatmul.f32.gmra.mxu0 %v424
        %v426 = vpop.f32.mrf.mxu0
        %v427 = vadd.f32 0.0, %v426
        %v428 = vand.u32 %v373, 4294901760
        %v429 = vsub.f32 %v373, %v428
        %v430 = vand.u32 %v429, 4294901760
        %v431 = vsub.f32 %v429, %v430
        %v432 = vand.u32 %v431, 4294901760
        %433 = vmatmul.f32.gmra.mxu0 %v432
        %v434 = vpop.f32.mrf.mxu0
        %v435 = vadd.f32 0.0, %v434
        %v436 = vand.u32 %v374, 4294901760
        %v437 = vsub.f32 %v374, %v436
        %v438 = vand.u32 %v437, 4294901760
        %v439 = vsub.f32 %v437, %v438
        %v440 = vand.u32 %v439, 4294901760
        %441 = vmatmul.f32.gmra.mxu0 %v440
        %v442 = vpop.f32.mrf.mxu0
        %v443 = vadd.f32 0.0, %v442
        %v444 = vand.u32 %v375, 4294901760
        %v445 = vsub.f32 %v375, %v444
        %v446 = vand.u32 %v445, 4294901760
        %v447 = vsub.f32 %v445, %v446
        %v448 = vand.u32 %v447, 4294901760
        %449 = vmatmul.f32.gmra.mxu0 %v448
        %v450 = vpop.f32.mrf.mxu0
        %v451 = vadd.f32 0.0, %v450
        %v452 = vand.u32 %v376, 4294901760
        %v453 = vsub.f32 %v376, %v452
        %v454 = vand.u32 %v453, 4294901760
        %v455 = vsub.f32 %v453, %v454
        %v456 = vand.u32 %v455, 4294901760
        %457 = vmatmul.f32.gmra.mxu0 %v456
        %v458 = vpop.f32.mrf.mxu0
        %v459 = vadd.f32 0.0, %v458
        %v460 = vand.u32 %v377, 4294901760
        %v461 = vsub.f32 %v377, %v460
        %v462 = vand.u32 %v461, 4294901760
        %v463 = vsub.f32 %v461, %v462
        %v464 = vand.u32 %v463, 4294901760
        %465 = vmatmul.f32.gmra.mxu0 %v464
        %v466 = vpop.f32.mrf.mxu0
        %v467 = vadd.f32 0.0, %v466
        %v468 = vand.u32 %v378, 4294901760
        %v469 = vsub.f32 %v378, %v468
        %v470 = vand.u32 %v469, 4294901760
        %v471 = vsub.f32 %v469, %v470
        %v472 = vand.u32 %v471, 4294901760
        %473 = vmatmul.f32.gmra.mxu0 %v472
        %v474 = vpop.f32.mrf.mxu0
        %v475 = vadd.f32 0.0, %v474
        %v476 = vand.u32 %v379, 4294901760
        %v477 = vsub.f32 %v379, %v476
        %v478 = vand.u32 %v477, 4294901760
        %v479 = vsub.f32 %v477, %v478
        %v480 = vand.u32 %v479, 4294901760
        %481 = vmatmul.f32.gmra.mxu0 %v480
        %v482 = vpop.f32.mrf.mxu0
        %v483 = vadd.f32 0.0, %v482
        %v484 = vand.u32 %v380, 4294901760
        %v485 = vsub.f32 %v380, %v484
        %v486 = vand.u32 %v485, 4294901760
        %v487 = vsub.f32 %v485, %v486
        %v488 = vand.u32 %v487, 4294901760
        %489 = vmatmul.f32.gmra.mxu0 %v488
        %v490 = vpop.f32.mrf.mxu0
        %v491 = vadd.f32 0.0, %v490
        %v492 = vand.u32 %v381, 4294901760
        %v493 = vsub.f32 %v381, %v492
        %v494 = vand.u32 %v493, 4294901760
        %v495 = vsub.f32 %v493, %v494
        %v496 = vand.u32 %v495, 4294901760
        %497 = vmatmul.f32.gmra.mxu0 %v496
        %v498 = vpop.f32.mrf.mxu0
        %v499 = vadd.f32 0.0, %v498
        %v500 = vand.u32 %v382, 4294901760
        %v501 = vsub.f32 %v382, %v500
        %v502 = vand.u32 %v501, 4294901760
        %v503 = vsub.f32 %v501, %v502
        %v504 = vand.u32 %v503, 4294901760
        %505 = vmatmul.f32.gmra.mxu0 %v504
        %v506 = vpop.f32.mrf.mxu0
        %v507 = vadd.f32 0.0, %v506
        %v508 = vand.u32 %v383, 4294901760
        %v509 = vsub.f32 %v383, %v508
        %v510 = vand.u32 %v509, 4294901760
        %v511 = vsub.f32 %v509, %v510
        %v512 = vand.u32 %v511, 4294901760
        %513 = vmatmul.f32.gmra.mxu0 %v512
        %v514 = vpop.f32.mrf.mxu0
        %v515 = vadd.f32 0.0, %v514
        %v516 = vand.u32 %v384, 4294901760
        %v517 = vsub.f32 %v384, %v516
        %v518 = vand.u32 %v517, 4294901760
        %v519 = vsub.f32 %v517, %v518
        %v520 = vand.u32 %v519, 4294901760
        %521 = vmatmul.f32.gmra.mxu0 %v520
        %v522 = vpop.f32.mrf.mxu0
        %v523 = vadd.f32 0.0, %v522
        %v524 = vand.u32 %v385, 4294901760
        %v525 = vsub.f32 %v385, %v524
        %v526 = vand.u32 %v525, 4294901760
        %v527 = vsub.f32 %v525, %v526
        %v528 = vand.u32 %v527, 4294901760
        %529 = vmatmul.f32.gmra.mxu0 %v528
        %v530 = vpop.f32.mrf.mxu0
        %v531 = vadd.f32 0.0, %v530
        %v532 = vand.u32 %v386, 4294901760
        %v533 = vsub.f32 %v386, %v532
        %v534 = vand.u32 %v533, 4294901760
        %v535 = vsub.f32 %v533, %v534
        %v536 = vand.u32 %v535, 4294901760
        %537 = vmatmul.f32.gmra.mxu0 %v536
        %v538 = vpop.f32.mrf.mxu0
        %v539 = vadd.f32 0.0, %v538
        %v540 = vand.u32 %v387, 4294901760
        %v541 = vsub.f32 %v387, %v540
        %v542 = vand.u32 %v541, 4294901760
        %v543 = vsub.f32 %v541, %v542
        %v544 = vand.u32 %v543, 4294901760
        %545 = vmatmul.f32.gmra.mxu0 %v544
        %v546 = vpop.f32.mrf.mxu0
        %v547 = vadd.f32 0.0, %v546
        %548 = vdwg.mxu0
        %v549 = vand.u32 %v355, 4294901760
        %v550 = vsub.f32 %v355, %v549
        %v551 = vand.u32 %v550, 4294901760
        %v552 = vsub.f32 %v550, %v551
        %v553 = vand.u32 %v552, 4294901760
        %554 = vmatpush.msra.mxu0 %v553
        %v555 = vand.u32 %v354, 4294901760
        %v556 = vsub.f32 %v354, %v555
        %v557 = vand.u32 %v556, 4294901760
        %v558 = vsub.f32 %v556, %v557
        %v559 = vand.u32 %v558, 4294901760
        %560 = vmatpush.msra.mxu0 %v559
        %v561 = vand.u32 %v353, 4294901760
        %v562 = vsub.f32 %v353, %v561
        %v563 = vand.u32 %v562, 4294901760
        %v564 = vsub.f32 %v562, %v563
        %v565 = vand.u32 %v564, 4294901760
        %566 = vmatpush.msra.mxu0 %v565
        %v567 = vand.u32 %v352, 4294901760
        %v568 = vsub.f32 %v352, %v567
        %v569 = vand.u32 %v568, 4294901760
        %v570 = vsub.f32 %v568, %v569
        %v571 = vand.u32 %v570, 4294901760
        %572 = vmatpush.msra.mxu0 %v571
        %v573 = vand.u32 %v351, 4294901760
        %v574 = vsub.f32 %v351, %v573
        %v575 = vand.u32 %v574, 4294901760
        %v576 = vsub.f32 %v574, %v575
        %v577 = vand.u32 %v576, 4294901760
        %578 = vmatpush.msra.mxu0 %v577
        %v579 = vand.u32 %v350, 4294901760
        %v580 = vsub.f32 %v350, %v579
        %v581 = vand.u32 %v580, 4294901760
        %v582 = vsub.f32 %v580, %v581
        %v583 = vand.u32 %v582, 4294901760
        %584 = vmatpush.msra.mxu0 %v583
        %v585 = vand.u32 %v349, 4294901760
        %v586 = vsub.f32 %v349, %v585
        %v587 = vand.u32 %v586, 4294901760
        %v588 = vsub.f32 %v586, %v587
        %v589 = vand.u32 %v588, 4294901760
        %590 = vmatpush.msra.mxu0 %v589
        %v591 = vand.u32 %v348, 4294901760
        %v592 = vsub.f32 %v348, %v591
        %v593 = vand.u32 %v592, 4294901760
        %v594 = vsub.f32 %v592, %v593
        %v595 = vand.u32 %v594, 4294901760
        %596 = vmatpush.msra.mxu0 %v595
        %v597 = vand.u32 %v347, 4294901760
        %v598 = vsub.f32 %v347, %v597
        %v599 = vand.u32 %v598, 4294901760
        %v600 = vsub.f32 %v598, %v599
        %v601 = vand.u32 %v600, 4294901760
        %602 = vmatpush.msra.mxu0 %v601
        %v603 = vand.u32 %v346, 4294901760
        %v604 = vsub.f32 %v346, %v603
        %v605 = vand.u32 %v604, 4294901760
        %v606 = vsub.f32 %v604, %v605
        %v607 = vand.u32 %v606, 4294901760
        %608 = vmatpush.msra.mxu0 %v607
        %v609 = vand.u32 %v345, 4294901760
        %v610 = vsub.f32 %v345, %v609
        %v611 = vand.u32 %v610, 4294901760
        %v612 = vsub.f32 %v610, %v611
        %v613 = vand.u32 %v612, 4294901760
        %614 = vmatpush.msra.mxu0 %v613
        %v615 = vand.u32 %v344, 4294901760
        %v616 = vsub.f32 %v344, %v615
        %v617 = vand.u32 %v616, 4294901760
        %v618 = vsub.f32 %v616, %v617
        %v619 = vand.u32 %v618, 4294901760
        %620 = vmatpush.msra.mxu0 %v619
        %v621 = vand.u32 %v343, 4294901760
        %v622 = vsub.f32 %v343, %v621
        %v623 = vand.u32 %v622, 4294901760
        %v624 = vsub.f32 %v622, %v623
        %v625 = vand.u32 %v624, 4294901760
        %626 = vmatpush.msra.mxu0 %v625
        %v627 = vand.u32 %v342, 4294901760
        %v628 = vsub.f32 %v342, %v627
        %v629 = vand.u32 %v628, 4294901760
        %v630 = vsub.f32 %v628, %v629
        %v631 = vand.u32 %v630, 4294901760
        %632 = vmatpush.msra.mxu0 %v631
        %v633 = vand.u32 %v341, 4294901760
        %v634 = vsub.f32 %v341, %v633
        %v635 = vand.u32 %v634, 4294901760
        %v636 = vsub.f32 %v634, %v635
        %v637 = vand.u32 %v636, 4294901760
        %638 = vmatpush.msra.mxu0 %v637
        %v639 = vand.u32 %v340, 4294901760
        %v640 = vsub.f32 %v340, %v639
        %v641 = vand.u32 %v640, 4294901760
        %v642 = vsub.f32 %v640, %v641
        %v643 = vand.u32 %v642, 4294901760
        %644 = vmatpush.msra.mxu0 %v643
        %v645 = vand.u32 %v372, 4294901760
        %646 = vmatmul.f32.gmra.mxu0 %v645
        %v647 = vpop.f32.mrf.mxu0
        %v648 = vadd.f32 %v427, %v647
        %v649 = vand.u32 %v373, 4294901760
        %650 = vmatmul.f32.gmra.mxu0 %v649
        %v651 = vpop.f32.mrf.mxu0
        %v652 = vadd.f32 %v435, %v651
        %v653 = vand.u32 %v374, 4294901760
        %654 = vmatmul.f32.gmra.mxu0 %v653
        %v655 = vpop.f32.mrf.mxu0
        %v656 = vadd.f32 %v443, %v655
        %v657 = vand.u32 %v375, 4294901760
        %658 = vmatmul.f32.gmra.mxu0 %v657
        %v659 = vpop.f32.mrf.mxu0
        %v660 = vadd.f32 %v451, %v659
        %v661 = vand.u32 %v376, 4294901760
        %662 = vmatmul.f32.gmra.mxu0 %v661
        %v663 = vpop.f32.mrf.mxu0
        %v664 = vadd.f32 %v459, %v663
        %v665 = vand.u32 %v377, 4294901760
        %666 = vmatmul.f32.gmra.mxu0 %v665
        %v667 = vpop.f32.mrf.mxu0
        %v668 = vadd.f32 %v467, %v667
        %v669 = vand.u32 %v378, 4294901760
        %670 = vmatmul.f32.gmra.mxu0 %v669
        %v671 = vpop.f32.mrf.mxu0
        %v672 = vadd.f32 %v475, %v671
        %v673 = vand.u32 %v379, 4294901760
        %674 = vmatmul.f32.gmra.mxu0 %v673
        %v675 = vpop.f32.mrf.mxu0
        %v676 = vadd.f32 %v483, %v675
        %v677 = vand.u32 %v380, 4294901760
        %678 = vmatmul.f32.gmra.mxu0 %v677
        %v679 = vpop.f32.mrf.mxu0
        %v680 = vadd.f32 %v491, %v679
        %v681 = vand.u32 %v381, 4294901760
        %682 = vmatmul.f32.gmra.mxu0 %v681
        %v683 = vpop.f32.mrf.mxu0
        %v684 = vadd.f32 %v499, %v683
        %v685 = vand.u32 %v382, 4294901760
        %686 = vmatmul.f32.gmra.mxu0 %v685
        %v687 = vpop.f32.mrf.mxu0
        %v688 = vadd.f32 %v507, %v687
        %v689 = vand.u32 %v383, 4294901760
        %690 = vmatmul.f32.gmra.mxu0 %v689
        %v691 = vpop.f32.mrf.mxu0
        %v692 = vadd.f32 %v515, %v691
        %v693 = vand.u32 %v384, 4294901760
        %694 = vmatmul.f32.gmra.mxu0 %v693
        %v695 = vpop.f32.mrf.mxu0
        %v696 = vadd.f32 %v523, %v695
        %v697 = vand.u32 %v385, 4294901760
        %698 = vmatmul.f32.gmra.mxu0 %v697
        %v699 = vpop.f32.mrf.mxu0
        %v700 = vadd.f32 %v531, %v699
        %v701 = vand.u32 %v386, 4294901760
        %702 = vmatmul.f32.gmra.mxu0 %v701
        %v703 = vpop.f32.mrf.mxu0
        %v704 = vadd.f32 %v539, %v703
        %v705 = vand.u32 %v387, 4294901760
        %706 = vmatmul.f32.gmra.mxu0 %v705
        %v707 = vpop.f32.mrf.mxu0
        %v708 = vadd.f32 %v547, %v707
        %709 = vdwg.mxu0
        %v710 = vand.u32 %v355, 4294901760
        %v711 = vsub.f32 %v355, %v710
        %712 = vmatpush.msra.mxu0 %v711
        %v713 = vand.u32 %v354, 4294901760
        %v714 = vsub.f32 %v354, %v713
        %715 = vmatpush.msra.mxu0 %v714
        %v716 = vand.u32 %v353, 4294901760
        %v717 = vsub.f32 %v353, %v716
        %718 = vmatpush.msra.mxu0 %v717
        %v719 = vand.u32 %v352, 4294901760
        %v720 = vsub.f32 %v352, %v719
        %721 = vmatpush.msra.mxu0 %v720
        %v722 = vand.u32 %v351, 4294901760
        %v723 = vsub.f32 %v351, %v722
        %724 = vmatpush.msra.mxu0 %v723
        %v725 = vand.u32 %v350, 4294901760
        %v726 = vsub.f32 %v350, %v725
        %727 = vmatpush.msra.mxu0 %v726
        %v728 = vand.u32 %v349, 4294901760
        %v729 = vsub.f32 %v349, %v728
        %730 = vmatpush.msra.mxu0 %v729
        %v731 = vand.u32 %v348, 4294901760
        %v732 = vsub.f32 %v348, %v731
        %733 = vmatpush.msra.mxu0 %v732
        %v734 = vand.u32 %v347, 4294901760
        %v735 = vsub.f32 %v347, %v734
        %736 = vmatpush.msra.mxu0 %v735
        %v737 = vand.u32 %v346, 4294901760
        %v738 = vsub.f32 %v346, %v737
        %739 = vmatpush.msra.mxu0 %v738
        %v740 = vand.u32 %v345, 4294901760
        %v741 = vsub.f32 %v345, %v740
        %742 = vmatpush.msra.mxu0 %v741
        %v743 = vand.u32 %v344, 4294901760
        %v744 = vsub.f32 %v344, %v743
        %745 = vmatpush.msra.mxu0 %v744
        %v746 = vand.u32 %v343, 4294901760
        %v747 = vsub.f32 %v343, %v746
        %748 = vmatpush.msra.mxu0 %v747
        %v749 = vand.u32 %v342, 4294901760
        %v750 = vsub.f32 %v342, %v749
        %751 = vmatpush.msra.mxu0 %v750
        %v752 = vand.u32 %v341, 4294901760
        %v753 = vsub.f32 %v341, %v752
        %754 = vmatpush.msra.mxu0 %v753
        %v755 = vand.u32 %v340, 4294901760
        %v756 = vsub.f32 %v340, %v755
        %757 = vmatpush.msra.mxu0 %v756
        %v758 = vand.u32 %v372, 4294901760
        %v759 = vsub.f32 %v372, %v758
        %760 = vmatmul.f32.gmra.mxu0 %v759
        %v761 = vpop.f32.mrf.mxu0
        %v762 = vadd.f32 %v648, %v761
        %v763 = vand.u32 %v373, 4294901760
        %v764 = vsub.f32 %v373, %v763
        %765 = vmatmul.f32.gmra.mxu0 %v764
        %v766 = vpop.f32.mrf.mxu0
        %v767 = vadd.f32 %v652, %v766
        %v768 = vand.u32 %v374, 4294901760
        %v769 = vsub.f32 %v374, %v768
        %770 = vmatmul.f32.gmra.mxu0 %v769
        %v771 = vpop.f32.mrf.mxu0
        %v772 = vadd.f32 %v656, %v771
        %v773 = vand.u32 %v375, 4294901760
        %v774 = vsub.f32 %v375, %v773
        %775 = vmatmul.f32.gmra.mxu0 %v774
        %v776 = vpop.f32.mrf.mxu0
        %v777 = vadd.f32 %v660, %v776
        %v778 = vand.u32 %v376, 4294901760
        %v779 = vsub.f32 %v376, %v778
        %780 = vmatmul.f32.gmra.mxu0 %v779
        %v781 = vpop.f32.mrf.mxu0
        %v782 = vadd.f32 %v664, %v781
        %v783 = vand.u32 %v377, 4294901760
        %v784 = vsub.f32 %v377, %v783
        %785 = vmatmul.f32.gmra.mxu0 %v784
        %v786 = vpop.f32.mrf.mxu0
        %v787 = vadd.f32 %v668, %v786
        %v788 = vand.u32 %v378, 4294901760
        %v789 = vsub.f32 %v378, %v788
        %790 = vmatmul.f32.gmra.mxu0 %v789
        %v791 = vpop.f32.mrf.mxu0
        %v792 = vadd.f32 %v672, %v791
        %v793 = vand.u32 %v379, 4294901760
        %v794 = vsub.f32 %v379, %v793
        %795 = vmatmul.f32.gmra.mxu0 %v794
        %v796 = vpop.f32.mrf.mxu0
        %v797 = vadd.f32 %v676, %v796
        %v798 = vand.u32 %v380, 4294901760
        %v799 = vsub.f32 %v380, %v798
        %800 = vmatmul.f32.gmra.mxu0 %v799
        %v801 = vpop.f32.mrf.mxu0
        %v802 = vadd.f32 %v680, %v801
        %v803 = vand.u32 %v381, 4294901760
        %v804 = vsub.f32 %v381, %v803
        %805 = vmatmul.f32.gmra.mxu0 %v804
        %v806 = vpop.f32.mrf.mxu0
        %v807 = vadd.f32 %v684, %v806
        %v808 = vand.u32 %v382, 4294901760
        %v809 = vsub.f32 %v382, %v808
        %810 = vmatmul.f32.gmra.mxu0 %v809
        %v811 = vpop.f32.mrf.mxu0
        %v812 = vadd.f32 %v688, %v811
        %v813 = vand.u32 %v383, 4294901760
        %v814 = vsub.f32 %v383, %v813
        %815 = vmatmul.f32.gmra.mxu0 %v814
        %v816 = vpop.f32.mrf.mxu0
        %v817 = vadd.f32 %v692, %v816
        %v818 = vand.u32 %v384, 4294901760
        %v819 = vsub.f32 %v384, %v818
        %820 = vmatmul.f32.gmra.mxu0 %v819
        %v821 = vpop.f32.mrf.mxu0
        %v822 = vadd.f32 %v696, %v821
        %v823 = vand.u32 %v385, 4294901760
        %v824 = vsub.f32 %v385, %v823
        %825 = vmatmul.f32.gmra.mxu0 %v824
        %v826 = vpop.f32.mrf.mxu0
        %v827 = vadd.f32 %v700, %v826
        %v828 = vand.u32 %v386, 4294901760
        %v829 = vsub.f32 %v386, %v828
        %830 = vmatmul.f32.gmra.mxu0 %v829
        %v831 = vpop.f32.mrf.mxu0
        %v832 = vadd.f32 %v704, %v831
        %v833 = vand.u32 %v387, 4294901760
        %v834 = vsub.f32 %v387, %v833
        %835 = vmatmul.f32.gmra.mxu0 %v834
        %v836 = vpop.f32.mrf.mxu0
        %v837 = vadd.f32 %v708, %v836
        %838 = vdwg.mxu0
        %v839 = vand.u32 %v355, 4294901760
        %840 = vmatpush.msra.mxu0 %v839
        %v841 = vand.u32 %v354, 4294901760
        %842 = vmatpush.msra.mxu0 %v841
        %v843 = vand.u32 %v353, 4294901760
        %844 = vmatpush.msra.mxu0 %v843
        %v845 = vand.u32 %v352, 4294901760
        %846 = vmatpush.msra.mxu0 %v845
        %v847 = vand.u32 %v351, 4294901760
        %848 = vmatpush.msra.mxu0 %v847
        %v849 = vand.u32 %v350, 4294901760
        %850 = vmatpush.msra.mxu0 %v849
        %v851 = vand.u32 %v349, 4294901760
        %852 = vmatpush.msra.mxu0 %v851
        %v853 = vand.u32 %v348, 4294901760
        %854 = vmatpush.msra.mxu0 %v853
        %v855 = vand.u32 %v347, 4294901760
        %856 = vmatpush.msra.mxu0 %v855
        %v857 = vand.u32 %v346, 4294901760
        %858 = vmatpush.msra.mxu0 %v857
        %v859 = vand.u32 %v345, 4294901760
        %860 = vmatpush.msra.mxu0 %v859
        %v861 = vand.u32 %v344, 4294901760
        %862 = vmatpush.msra.mxu0 %v861
        %v863 = vand.u32 %v343, 4294901760
        %864 = vmatpush.msra.mxu0 %v863
        %v865 = vand.u32 %v342, 4294901760
        %866 = vmatpush.msra.mxu0 %v865
        %v867 = vand.u32 %v341, 4294901760
        %868 = vmatpush.msra.mxu0 %v867
        %v869 = vand.u32 %v340, 4294901760
        %870 = vmatpush.msra.mxu0 %v869
        %v871 = vand.u32 %v372, 4294901760
        %v872 = vsub.f32 %v372, %v871
        %v873 = vand.u32 %v872, 4294901760
        %874 = vmatmul.f32.gmra.mxu0 %v873
        %v875 = vpop.f32.mrf.mxu0
        %v876 = vadd.f32 %v762, %v875
        %v877 = vand.u32 %v373, 4294901760
        %v878 = vsub.f32 %v373, %v877
        %v879 = vand.u32 %v878, 4294901760
        %880 = vmatmul.f32.gmra.mxu0 %v879
        %v881 = vpop.f32.mrf.mxu0
        %v882 = vadd.f32 %v767, %v881
        %v883 = vand.u32 %v374, 4294901760
        %v884 = vsub.f32 %v374, %v883
        %v885 = vand.u32 %v884, 4294901760
        %886 = vmatmul.f32.gmra.mxu0 %v885
        %v887 = vpop.f32.mrf.mxu0
        %v888 = vadd.f32 %v772, %v887
        %v889 = vand.u32 %v375, 4294901760
        %v890 = vsub.f32 %v375, %v889
        %v891 = vand.u32 %v890, 4294901760
        %892 = vmatmul.f32.gmra.mxu0 %v891
        %v893 = vpop.f32.mrf.mxu0
        %v894 = vadd.f32 %v777, %v893
        %v895 = vand.u32 %v376, 4294901760
        %v896 = vsub.f32 %v376, %v895
        %v897 = vand.u32 %v896, 4294901760
        %898 = vmatmul.f32.gmra.mxu0 %v897
        %v899 = vpop.f32.mrf.mxu0
        %v900 = vadd.f32 %v782, %v899
        %v901 = vand.u32 %v377, 4294901760
        %v902 = vsub.f32 %v377, %v901
        %v903 = vand.u32 %v902, 4294901760
        %904 = vmatmul.f32.gmra.mxu0 %v903
        %v905 = vpop.f32.mrf.mxu0
        %v906 = vadd.f32 %v787, %v905
        %v907 = vand.u32 %v378, 4294901760
        %v908 = vsub.f32 %v378, %v907
        %v909 = vand.u32 %v908, 4294901760
        %910 = vmatmul.f32.gmra.mxu0 %v909
        %v911 = vpop.f32.mrf.mxu0
        %v912 = vadd.f32 %v792, %v911
        %v913 = vand.u32 %v379, 4294901760
        %v914 = vsub.f32 %v379, %v913
        %v915 = vand.u32 %v914, 4294901760
        %916 = vmatmul.f32.gmra.mxu0 %v915
        %v917 = vpop.f32.mrf.mxu0
        %v918 = vadd.f32 %v797, %v917
        %v919 = vand.u32 %v380, 4294901760
        %v920 = vsub.f32 %v380, %v919
        %v921 = vand.u32 %v920, 4294901760
        %922 = vmatmul.f32.gmra.mxu0 %v921
        %v923 = vpop.f32.mrf.mxu0
        %v924 = vadd.f32 %v802, %v923
        %v925 = vand.u32 %v381, 4294901760
        %v926 = vsub.f32 %v381, %v925
        %v927 = vand.u32 %v926, 4294901760
        %928 = vmatmul.f32.gmra.mxu0 %v927
        %v929 = vpop.f32.mrf.mxu0
        %v930 = vadd.f32 %v807, %v929
        %v931 = vand.u32 %v382, 4294901760
        %v932 = vsub.f32 %v382, %v931
        %v933 = vand.u32 %v932, 4294901760
        %934 = vmatmul.f32.gmra.mxu0 %v933
        %v935 = vpop.f32.mrf.mxu0
        %v936 = vadd.f32 %v812, %v935
        %v937 = vand.u32 %v383, 4294901760
        %v938 = vsub.f32 %v383, %v937
        %v939 = vand.u32 %v938, 4294901760
        %940 = vmatmul.f32.gmra.mxu0 %v939
        %v941 = vpop.f32.mrf.mxu0
        %v942 = vadd.f32 %v817, %v941
        %v943 = vand.u32 %v384, 4294901760
        %v944 = vsub.f32 %v384, %v943
        %v945 = vand.u32 %v944, 4294901760
        %946 = vmatmul.f32.gmra.mxu0 %v945
        %v947 = vpop.f32.mrf.mxu0
        %v948 = vadd.f32 %v822, %v947
        %v949 = vand.u32 %v385, 4294901760
        %v950 = vsub.f32 %v385, %v949
        %v951 = vand.u32 %v950, 4294901760
        %952 = vmatmul.f32.gmra.mxu0 %v951
        %v953 = vpop.f32.mrf.mxu0
        %v954 = vadd.f32 %v827, %v953
        %v955 = vand.u32 %v386, 4294901760
        %v956 = vsub.f32 %v386, %v955
        %v957 = vand.u32 %v956, 4294901760
        %958 = vmatmul.f32.gmra.mxu0 %v957
        %v959 = vpop.f32.mrf.mxu0
        %v960 = vadd.f32 %v832, %v959
        %v961 = vand.u32 %v387, 4294901760
        %v962 = vsub.f32 %v387, %v961
        %v963 = vand.u32 %v962, 4294901760
        %964 = vmatmul.f32.gmra.mxu0 %v963
        %v965 = vpop.f32.mrf.mxu0
        %v966 = vadd.f32 %v837, %v965
        %967 = vdwg.mxu0
        %v968 = vand.u32 %v355, 4294901760
        %v969 = vsub.f32 %v355, %v968
        %v970 = vand.u32 %v969, 4294901760
        %971 = vmatpush.msra.mxu0 %v970
        %v972 = vand.u32 %v354, 4294901760
        %v973 = vsub.f32 %v354, %v972
        %v974 = vand.u32 %v973, 4294901760
        %975 = vmatpush.msra.mxu0 %v974
        %v976 = vand.u32 %v353, 4294901760
        %v977 = vsub.f32 %v353, %v976
        %v978 = vand.u32 %v977, 4294901760
        %979 = vmatpush.msra.mxu0 %v978
        %v980 = vand.u32 %v352, 4294901760
        %v981 = vsub.f32 %v352, %v980
        %v982 = vand.u32 %v981, 4294901760
        %983 = vmatpush.msra.mxu0 %v982
        %v984 = vand.u32 %v351, 4294901760
        %v985 = vsub.f32 %v351, %v984
        %v986 = vand.u32 %v985, 4294901760
        %987 = vmatpush.msra.mxu0 %v986
        %v988 = vand.u32 %v350, 4294901760
        %v989 = vsub.f32 %v350, %v988
        %v990 = vand.u32 %v989, 4294901760
        %991 = vmatpush.msra.mxu0 %v990
        %v992 = vand.u32 %v349, 4294901760
        %v993 = vsub.f32 %v349, %v992
        %v994 = vand.u32 %v993, 4294901760
        %995 = vmatpush.msra.mxu0 %v994
        %v996 = vand.u32 %v348, 4294901760
        %v997 = vsub.f32 %v348, %v996
        %v998 = vand.u32 %v997, 4294901760
        %999 = vmatpush.msra.mxu0 %v998
        %v1000 = vand.u32 %v347, 4294901760
        %v1001 = vsub.f32 %v347, %v1000
        %v1002 = vand.u32 %v1001, 4294901760
        %1003 = vmatpush.msra.mxu0 %v1002
        %v1004 = vand.u32 %v346, 4294901760
        %v1005 = vsub.f32 %v346, %v1004
        %v1006 = vand.u32 %v1005, 4294901760
        %1007 = vmatpush.msra.mxu0 %v1006
        %v1008 = vand.u32 %v345, 4294901760
        %v1009 = vsub.f32 %v345, %v1008
        %v1010 = vand.u32 %v1009, 4294901760
        %1011 = vmatpush.msra.mxu0 %v1010
        %v1012 = vand.u32 %v344, 4294901760
        %v1013 = vsub.f32 %v344, %v1012
        %v1014 = vand.u32 %v1013, 4294901760
        %1015 = vmatpush.msra.mxu0 %v1014
        %v1016 = vand.u32 %v343, 4294901760
        %v1017 = vsub.f32 %v343, %v1016
        %v1018 = vand.u32 %v1017, 4294901760
        %1019 = vmatpush.msra.mxu0 %v1018
        %v1020 = vand.u32 %v342, 4294901760
        %v1021 = vsub.f32 %v342, %v1020
        %v1022 = vand.u32 %v1021, 4294901760
        %1023 = vmatpush.msra.mxu0 %v1022
        %v1024 = vand.u32 %v341, 4294901760
        %v1025 = vsub.f32 %v341, %v1024
        %v1026 = vand.u32 %v1025, 4294901760
        %1027 = vmatpush.msra.mxu0 %v1026
        %v1028 = vand.u32 %v340, 4294901760
        %v1029 = vsub.f32 %v340, %v1028
        %v1030 = vand.u32 %v1029, 4294901760
        %1031 = vmatpush.msra.mxu0 %v1030
        %v1032 = vand.u32 %v372, 4294901760
        %1033 = vmatmul.f32.gmra.mxu0 %v1032
        %v1034 = vpop.f32.mrf.mxu0
        %v1035 = vadd.f32 %v876, %v1034
        %v1036 = vand.u32 %v373, 4294901760
        %1037 = vmatmul.f32.gmra.mxu0 %v1036
        %v1038 = vpop.f32.mrf.mxu0
        %v1039 = vadd.f32 %v882, %v1038
        %v1040 = vand.u32 %v374, 4294901760
        %1041 = vmatmul.f32.gmra.mxu0 %v1040
        %v1042 = vpop.f32.mrf.mxu0
        %v1043 = vadd.f32 %v888, %v1042
        %v1044 = vand.u32 %v375, 4294901760
        %1045 = vmatmul.f32.gmra.mxu0 %v1044
        %v1046 = vpop.f32.mrf.mxu0
        %v1047 = vadd.f32 %v894, %v1046
        %v1048 = vand.u32 %v376, 4294901760
        %1049 = vmatmul.f32.gmra.mxu0 %v1048
        %v1050 = vpop.f32.mrf.mxu0
        %v1051 = vadd.f32 %v900, %v1050
        %v1052 = vand.u32 %v377, 4294901760
        %1053 = vmatmul.f32.gmra.mxu0 %v1052
        %v1054 = vpop.f32.mrf.mxu0
        %v1055 = vadd.f32 %v906, %v1054
        %v1056 = vand.u32 %v378, 4294901760
        %1057 = vmatmul.f32.gmra.mxu0 %v1056
        %v1058 = vpop.f32.mrf.mxu0
        %v1059 = vadd.f32 %v912, %v1058
        %v1060 = vand.u32 %v379, 4294901760
        %1061 = vmatmul.f32.gmra.mxu0 %v1060
        %v1062 = vpop.f32.mrf.mxu0
        %v1063 = vadd.f32 %v918, %v1062
        %v1064 = vand.u32 %v380, 4294901760
        %1065 = vmatmul.f32.gmra.mxu0 %v1064
        %v1066 = vpop.f32.mrf.mxu0
        %v1067 = vadd.f32 %v924, %v1066
        %v1068 = vand.u32 %v381, 4294901760
        %1069 = vmatmul.f32.gmra.mxu0 %v1068
        %v1070 = vpop.f32.mrf.mxu0
        %v1071 = vadd.f32 %v930, %v1070
        %v1072 = vand.u32 %v382, 4294901760
        %1073 = vmatmul.f32.gmra.mxu0 %v1072
        %v1074 = vpop.f32.mrf.mxu0
        %v1075 = vadd.f32 %v936, %v1074
        %v1076 = vand.u32 %v383, 4294901760
        %1077 = vmatmul.f32.gmra.mxu0 %v1076
        %v1078 = vpop.f32.mrf.mxu0
        %v1079 = vadd.f32 %v942, %v1078
        %v1080 = vand.u32 %v384, 4294901760
        %1081 = vmatmul.f32.gmra.mxu0 %v1080
        %v1082 = vpop.f32.mrf.mxu0
        %v1083 = vadd.f32 %v948, %v1082
        %v1084 = vand.u32 %v385, 4294901760
        %1085 = vmatmul.f32.gmra.mxu0 %v1084
        %v1086 = vpop.f32.mrf.mxu0
        %v1087 = vadd.f32 %v954, %v1086
        %v1088 = vand.u32 %v386, 4294901760
        %1089 = vmatmul.f32.gmra.mxu0 %v1088
        %v1090 = vpop.f32.mrf.mxu0
        %v1091 = vadd.f32 %v960, %v1090
        %v1092 = vand.u32 %v387, 4294901760
        %1093 = vmatmul.f32.gmra.mxu0 %v1092
        %v1094 = vpop.f32.mrf.mxu0
        %v1095 = vadd.f32 %v966, %v1094
        %1096 = vdwg.mxu0
        %v1097 = vand.u32 %v355, 4294901760
        %1098 = vmatpush.msra.mxu0 %v1097
        %v1099 = vand.u32 %v354, 4294901760
        %1100 = vmatpush.msra.mxu0 %v1099
        %v1101 = vand.u32 %v353, 4294901760
        %1102 = vmatpush.msra.mxu0 %v1101
        %v1103 = vand.u32 %v352, 4294901760
        %1104 = vmatpush.msra.mxu0 %v1103
        %v1105 = vand.u32 %v351, 4294901760
        %1106 = vmatpush.msra.mxu0 %v1105
        %v1107 = vand.u32 %v350, 4294901760
        %1108 = vmatpush.msra.mxu0 %v1107
        %v1109 = vand.u32 %v349, 4294901760
        %1110 = vmatpush.msra.mxu0 %v1109
        %v1111 = vand.u32 %v348, 4294901760
        %1112 = vmatpush.msra.mxu0 %v1111
        %v1113 = vand.u32 %v347, 4294901760
        %1114 = vmatpush.msra.mxu0 %v1113
        %v1115 = vand.u32 %v346, 4294901760
        %1116 = vmatpush.msra.mxu0 %v1115
        %v1117 = vand.u32 %v345, 4294901760
        %1118 = vmatpush.msra.mxu0 %v1117
        %v1119 = vand.u32 %v344, 4294901760
        %1120 = vmatpush.msra.mxu0 %v1119
        %v1121 = vand.u32 %v343, 4294901760
        %1122 = vmatpush.msra.mxu0 %v1121
        %v1123 = vand.u32 %v342, 4294901760
        %1124 = vmatpush.msra.mxu0 %v1123
        %v1125 = vand.u32 %v341, 4294901760
        %1126 = vmatpush.msra.mxu0 %v1125
        %v1127 = vand.u32 %v340, 4294901760
        %1128 = vmatpush.msra.mxu0 %v1127
        %v1129 = vand.u32 %v372, 4294901760
        %1130 = vmatmul.f32.gmra.mxu0 %v1129
        %v1131 = vpop.f32.mrf.mxu0
        %v1132 = vadd.f32 %v1035, %v1131
        %v1133 = vand.u32 %v373, 4294901760
        %1134 = vmatmul.f32.gmra.mxu0 %v1133
        %v1135 = vpop.f32.mrf.mxu0
        %v1136 = vadd.f32 %v1039, %v1135
        %v1137 = vand.u32 %v374, 4294901760
        %1138 = vmatmul.f32.gmra.mxu0 %v1137
        %v1139 = vpop.f32.mrf.mxu0
        %v1140 = vadd.f32 %v1043, %v1139
        %v1141 = vand.u32 %v375, 4294901760
        %1142 = vmatmul.f32.gmra.mxu0 %v1141
        %v1143 = vpop.f32.mrf.mxu0
        %v1144 = vadd.f32 %v1047, %v1143
        %v1145 = vand.u32 %v376, 4294901760
        %1146 = vmatmul.f32.gmra.mxu0 %v1145
        %v1147 = vpop.f32.mrf.mxu0
        %v1148 = vadd.f32 %v1051, %v1147
        %v1149 = vand.u32 %v377, 4294901760
        %1150 = vmatmul.f32.gmra.mxu0 %v1149
        %v1151 = vpop.f32.mrf.mxu0
        %v1152 = vadd.f32 %v1055, %v1151
        %v1153 = vand.u32 %v378, 4294901760
        %1154 = vmatmul.f32.gmra.mxu0 %v1153
        %v1155 = vpop.f32.mrf.mxu0
        %v1156 = vadd.f32 %v1059, %v1155
        %v1157 = vand.u32 %v379, 4294901760
        %1158 = vmatmul.f32.gmra.mxu0 %v1157
        %v1159 = vpop.f32.mrf.mxu0
        %v1160 = vadd.f32 %v1063, %v1159
        %v1161 = vand.u32 %v380, 4294901760
        %1162 = vmatmul.f32.gmra.mxu0 %v1161
        %v1163 = vpop.f32.mrf.mxu0
        %v1164 = vadd.f32 %v1067, %v1163
        %v1165 = vand.u32 %v381, 4294901760
        %1166 = vmatmul.f32.gmra.mxu0 %v1165
        %v1167 = vpop.f32.mrf.mxu0
        %v1168 = vadd.f32 %v1071, %v1167
        %v1169 = vand.u32 %v382, 4294901760
        %1170 = vmatmul.f32.gmra.mxu0 %v1169
        %v1171 = vpop.f32.mrf.mxu0
        %v1172 = vadd.f32 %v1075, %v1171
        %v1173 = vand.u32 %v383, 4294901760
        %1174 = vmatmul.f32.gmra.mxu0 %v1173
        %v1175 = vpop.f32.mrf.mxu0
        %v1176 = vadd.f32 %v1079, %v1175
        %v1177 = vand.u32 %v384, 4294901760
        %1178 = vmatmul.f32.gmra.mxu0 %v1177
        %v1179 = vpop.f32.mrf.mxu0
        %v1180 = vadd.f32 %v1083, %v1179
        %v1181 = vand.u32 %v385, 4294901760
        %1182 = vmatmul.f32.gmra.mxu0 %v1181
        %v1183 = vpop.f32.mrf.mxu0
        %v1184 = vadd.f32 %v1087, %v1183
        %v1185 = vand.u32 %v386, 4294901760
        %1186 = vmatmul.f32.gmra.mxu0 %v1185
        %v1187 = vpop.f32.mrf.mxu0
        %v1188 = vadd.f32 %v1091, %v1187
        %v1189 = vand.u32 %v387, 4294901760
        %1190 = vmatmul.f32.gmra.mxu0 %v1189
        %v1191 = vpop.f32.mrf.mxu0
        %v1192 = vadd.f32 %v1095, %v1191
        %1193 = vdwg.mxu0
        %v1194 = vadd.f32 %v356, %v1132
        %v1195 = vadd.f32 %v357, %v1136
        %v1196 = vadd.f32 %v358, %v1140
        %v1197 = vadd.f32 %v359, %v1144
        %v1198 = vadd.f32 %v360, %v1148
        %v1199 = vadd.f32 %v361, %v1152
        %v1200 = vadd.f32 %v362, %v1156
        %v1201 = vadd.f32 %v363, %v1160
        %v1202 = vadd.f32 %v364, %v1164
        %v1203 = vadd.f32 %v365, %v1168
        %v1204 = vadd.f32 %v366, %v1172
        %v1205 = vadd.f32 %v367, %v1176
        %v1206 = vadd.f32 %v368, %v1180
        %v1207 = vadd.f32 %v369, %v1184
        %v1208 = vadd.f32 %v370, %v1188
        %v1209 = vadd.f32 %v371, %v1192
        %1210 = vst [vmem:[#allocation3] sm:$0xff] %v1194
        %1211 = vst [vmem:[#allocation3 + $0x10] sm:$0xff] %v1195
        %1212 = vst [vmem:[#allocation3 + $0x20] sm:$0xff] %v1196
        %1213 = vst [vmem:[#allocation3 + $0x30] sm:$0xff] %v1197
        %1214 = vst [vmem:[#allocation3 + $0x40] sm:$0xff] %v1198
        %1215 = vst [vmem:[#allocation3 + $0x50] sm:$0xff] %v1199
        %1216 = vst [vmem:[#allocation3 + $0x60] sm:$0xff] %v1200
        %1217 = vst [vmem:[#allocation3 + $0x70] sm:$0xff] %v1201
        %1218 = vst [vmem:[#allocation3 + $0x80] sm:$0xff] %v1202
        %1219 = vst [vmem:[#allocation3 + $0x90] sm:$0xff] %v1203
        %1220 = vst [vmem:[#allocation3 + $0xa0] sm:$0xff] %v1204
        %1221 = vst [vmem:[#allocation3 + $0xb0] sm:$0xff] %v1205
        %1222 = vst [vmem:[#allocation3 + $0xc0] sm:$0xff] %v1206
        %1223 = vst [vmem:[#allocation3 + $0xd0] sm:$0xff] %v1207
        %1224 = vst [vmem:[#allocation3 + $0xe0] sm:$0xff] %v1208
        %1225 = vst [vmem:[#allocation3 + $0xf0] sm:$0xff] %v1209
        // Predicated region
        $region57: #{tpu_custom_call.1} parent=31 // pred_check
          %p1226 = pneg %p297
        $region58: #{tpu_custom_call.1} parent=31 // pred_check_branch
          %1228 = sbr.rel (%p1226) target = $region60
        $region59: #{tpu_custom_call.1} parent=31 // pred_region
          %s1229 = smul.u32 %s26, 128
          %s1230 = sadd.s32 %s278, %s1229
          %s1231 = scalar_lea.vmem [#allocation2], %s1230
          %v1232 = vld [vmem:[%s1231] sm:$0xff]
          %v1233 = vld [vmem:[%s1231 + $0x8] sm:$0xff]
          %v1234 = vld [vmem:[%s1231 + $0x10] sm:$0xff]
          %v1235 = vld [vmem:[%s1231 + $0x18] sm:$0xff]
          %v1236 = vld [vmem:[%s1231 + $0x20] sm:$0xff]
          %v1237 = vld [vmem:[%s1231 + $0x28] sm:$0xff]
          %v1238 = vld [vmem:[%s1231 + $0x30] sm:$0xff]
          %v1239 = vld [vmem:[%s1231 + $0x38] sm:$0xff]
          %v1240 = vld [vmem:[%s1231 + $0x40] sm:$0xff]
          %v1241 = vld [vmem:[%s1231 + $0x48] sm:$0xff]
          %v1242 = vld [vmem:[%s1231 + $0x50] sm:$0xff]
          %v1243 = vld [vmem:[%s1231 + $0x58] sm:$0xff]
          %v1244 = vld [vmem:[%s1231 + $0x60] sm:$0xff]
          %v1245 = vld [vmem:[%s1231 + $0x68] sm:$0xff]
          %v1246 = vld [vmem:[%s1231 + $0x70] sm:$0xff]
          %v1247 = vld [vmem:[%s1231 + $0x78] sm:$0xff]
          %1248 = vst [vmem:[#allocation3 + $0x8] sm:$0xff] %v1232
          %1249 = vst [vmem:[#allocation3 + $0x18] sm:$0xff] %v1233
          %1250 = vst [vmem:[#allocation3 + $0x28] sm:$0xff] %v1234
          %1251 = vst [vmem:[#allocation3 + $0x38] sm:$0xff] %v1235
          %1252 = vst [vmem:[#allocation3 + $0x48] sm:$0xff] %v1236
          %1253 = vst [vmem:[#allocation3 + $0x58] sm:$0xff] %v1237
          %1254 = vst [vmem:[#allocation3 + $0x68] sm:$0xff] %v1238
          %1255 = vst [vmem:[#allocation3 + $0x78] sm:$0xff] %v1239
          %1256 = vst [vmem:[#allocation3 + $0x88] sm:$0xff] %v1240
          %1257 = vst [vmem:[#allocation3 + $0x98] sm:$0xff] %v1241
          %1258 = vst [vmem:[#allocation3 + $0xa8] sm:$0xff] %v1242
          %1259 = vst [vmem:[#allocation3 + $0xb8] sm:$0xff] %v1243
          %1260 = vst [vmem:[#allocation3 + $0xc8] sm:$0xff] %v1244
          %1261 = vst [vmem:[#allocation3 + $0xd8] sm:$0xff] %v1245
          %1262 = vst [vmem:[#allocation3 + $0xe8] sm:$0xff] %v1246
          %1263 = vst [vmem:[#allocation3 + $0xf8] sm:$0xff] %v1247
          %v1264 = vld [vmem:[#allocation3] sm:$0xff]
          %v1265 = vld [vmem:[#allocation3 + $0x8] sm:$0xff]
          %v1266 = vld [vmem:[#allocation3 + $0x10] sm:$0xff]
          %v1267 = vld [vmem:[#allocation3 + $0x18] sm:$0xff]
          %v1268 = vld [vmem:[#allocation3 + $0x20] sm:$0xff]
          %v1269 = vld [vmem:[#allocation3 + $0x28] sm:$0xff]
          %v1270 = vld [vmem:[#allocation3 + $0x30] sm:$0xff]
          %v1271 = vld [vmem:[#allocation3 + $0x38] sm:$0xff]
          %v1272 = vld [vmem:[#allocation3 + $0x40] sm:$0xff]
          %v1273 = vld [vmem:[#allocation3 + $0x48] sm:$0xff]
          %v1274 = vld [vmem:[#allocation3 + $0x50] sm:$0xff]
          %v1275 = vld [vmem:[#allocation3 + $0x58] sm:$0xff]
          %v1276 = vld [vmem:[#allocation3 + $0x60] sm:$0xff]
          %v1277 = vld [vmem:[#allocation3 + $0x68] sm:$0xff]
          %v1278 = vld [vmem:[#allocation3 + $0x70] sm:$0xff]
          %v1279 = vld [vmem:[#allocation3 + $0x78] sm:$0xff]
          %v1280 = vld [vmem:[#allocation3 + $0x80] sm:$0xff]
          %v1281 = vld [vmem:[#allocation3 + $0x88] sm:$0xff]
          %v1282 = vld [vmem:[#allocation3 + $0x90] sm:$0xff]
          %v1283 = vld [vmem:[#allocation3 + $0x98] sm:$0xff]
          %v1284 = vld [vmem:[#allocation3 + $0xa0] sm:$0xff]
          %v1285 = vld [vmem:[#allocation3 + $0xa8] sm:$0xff]
          %v1286 = vld [vmem:[#allocation3 + $0xb0] sm:$0xff]
          %v1287 = vld [vmem:[#allocation3 + $0xb8] sm:$0xff]
          %v1288 = vld [vmem:[#allocation3 + $0xc0] sm:$0xff]
          %v1289 = vld [vmem:[#allocation3 + $0xc8] sm:$0xff]
          %v1290 = vld [vmem:[#allocation3 + $0xd0] sm:$0xff]
          %v1291 = vld [vmem:[#allocation3 + $0xd8] sm:$0xff]
          %v1292 = vld [vmem:[#allocation3 + $0xe0] sm:$0xff]
          %v1293 = vld [vmem:[#allocation3 + $0xe8] sm:$0xff]
          %v1294 = vld [vmem:[#allocation3 + $0xf0] sm:$0xff]
          %v1295 = vld [vmem:[#allocation3 + $0xf8] sm:$0xff]
          %v1296 = vld [vmem:[%s232] sm:$0xff]
          %v1297 = vld [vmem:[%s232 + $0x8] sm:$0xff]
          %v1298 = vld [vmem:[%s232 + $0x10] sm:$0xff]
          %v1299 = vld [vmem:[%s232 + $0x18] sm:$0xff]
          %v1300 = vld [vmem:[%s232 + $0x20] sm:$0xff]
          %v1301 = vld [vmem:[%s232 + $0x28] sm:$0xff]
          %v1302 = vld [vmem:[%s232 + $0x30] sm:$0xff]
          %v1303 = vld [vmem:[%s232 + $0x38] sm:$0xff]
          %v1304 = vld [vmem:[%s232 + $0x40] sm:$0xff]
          %v1305 = vld [vmem:[%s232 + $0x48] sm:$0xff]
          %v1306 = vld [vmem:[%s232 + $0x50] sm:$0xff]
          %v1307 = vld [vmem:[%s232 + $0x58] sm:$0xff]
          %v1308 = vld [vmem:[%s232 + $0x60] sm:$0xff]
          %v1309 = vld [vmem:[%s232 + $0x68] sm:$0xff]
          %v1310 = vld [vmem:[%s232 + $0x70] sm:$0xff]
          %v1311 = vld [vmem:[%s232 + $0x78] sm:$0xff]
          %v1312 = vld [vmem:[%s232 + $0x80] sm:$0xff]
          %v1313 = vld [vmem:[%s232 + $0x88] sm:$0xff]
          %v1314 = vld [vmem:[%s232 + $0x90] sm:$0xff]
          %v1315 = vld [vmem:[%s232 + $0x98] sm:$0xff]
          %v1316 = vld [vmem:[%s232 + $0xa0] sm:$0xff]
          %v1317 = vld [vmem:[%s232 + $0xa8] sm:$0xff]
          %v1318 = vld [vmem:[%s232 + $0xb0] sm:$0xff]
          %v1319 = vld [vmem:[%s232 + $0xb8] sm:$0xff]
          %v1320 = vld [vmem:[%s232 + $0xc0] sm:$0xff]
          %v1321 = vld [vmem:[%s232 + $0xc8] sm:$0xff]
          %v1322 = vld [vmem:[%s232 + $0xd0] sm:$0xff]
          %v1323 = vld [vmem:[%s232 + $0xd8] sm:$0xff]
          %v1324 = vld [vmem:[%s232 + $0xe0] sm:$0xff]
          %v1325 = vld [vmem:[%s232 + $0xe8] sm:$0xff]
          %v1326 = vld [vmem:[%s232 + $0xf0] sm:$0xff]
          %v1327 = vld [vmem:[%s232 + $0xf8] sm:$0xff]
          %v1328 = vld [vmem:[%s241] sm:$0x1]
          %v1330 = vperm.slane %v1328, 0
          %v1332 = vand.u32 %v1311, 4294901760
          %1333 = vmatpush.msra.mxu0 %v1332
          %v1334 = vand.u32 %v1310, 4294901760
          %1335 = vmatpush.msra.mxu0 %v1334
          %v1336 = vand.u32 %v1309, 4294901760
          %1337 = vmatpush.msra.mxu0 %v1336
          %v1338 = vand.u32 %v1308, 4294901760
          %1339 = vmatpush.msra.mxu0 %v1338
          %v1340 = vand.u32 %v1307, 4294901760
          %1341 = vmatpush.msra.mxu0 %v1340
          %v1342 = vand.u32 %v1306, 4294901760
          %1343 = vmatpush.msra.mxu0 %v1342
          %v1344 = vand.u32 %v1305, 4294901760
          %1345 = vmatpush.msra.mxu0 %v1344
          %v1346 = vand.u32 %v1304, 4294901760
          %1347 = vmatpush.msra.mxu0 %v1346
          %v1348 = vand.u32 %v1303, 4294901760
          %1349 = vmatpush.msra.mxu0 %v1348
          %v1350 = vand.u32 %v1302, 4294901760
          %1351 = vmatpush.msra.mxu0 %v1350
          %v1352 = vand.u32 %v1301, 4294901760
          %1353 = vmatpush.msra.mxu0 %v1352
          %v1354 = vand.u32 %v1300, 4294901760
          %1355 = vmatpush.msra.mxu0 %v1354
          %v1356 = vand.u32 %v1299, 4294901760
          %1357 = vmatpush.msra.mxu0 %v1356
          %v1358 = vand.u32 %v1298, 4294901760
          %1359 = vmatpush.msra.mxu0 %v1358
          %v1360 = vand.u32 %v1297, 4294901760
          %1361 = vmatpush.msra.mxu0 %v1360
          %v1362 = vand.u32 %v1296, 4294901760
          %1363 = vmatpush.msra.mxu0 %v1362
          %v1364 = vand.u32 %v1264, 4294901760
          %v1365 = vsub.f32 %v1264, %v1364
          %v1366 = vand.u32 %v1365, 4294901760
          %v1367 = vsub.f32 %v1365, %v1366
          %v1368 = vand.u32 %v1367, 4294901760
          %1369 = vmatmul.f32.gmra.mxu0 %v1368
          %v1370 = vpop.f32.mrf.mxu0
          %v1371 = vadd.f32 %v1330, %v1370
          %v1372 = vand.u32 %v1266, 4294901760
          %v1373 = vsub.f32 %v1266, %v1372
          %v1374 = vand.u32 %v1373, 4294901760
          %v1375 = vsub.f32 %v1373, %v1374
          %v1376 = vand.u32 %v1375, 4294901760
          %1377 = vmatmul.f32.gmra.mxu0 %v1376
          %v1378 = vpop.f32.mrf.mxu0
          %v1379 = vadd.f32 %v1330, %v1378
          %v1380 = vand.u32 %v1268, 4294901760
          %v1381 = vsub.f32 %v1268, %v1380
          %v1382 = vand.u32 %v1381, 4294901760
          %v1383 = vsub.f32 %v1381, %v1382
          %v1384 = vand.u32 %v1383, 4294901760
          %1385 = vmatmul.f32.gmra.mxu0 %v1384
          %v1386 = vpop.f32.mrf.mxu0
          %v1387 = vadd.f32 %v1330, %v1386
          %v1388 = vand.u32 %v1270, 4294901760
          %v1389 = vsub.f32 %v1270, %v1388
          %v1390 = vand.u32 %v1389, 4294901760
          %v1391 = vsub.f32 %v1389, %v1390
          %v1392 = vand.u32 %v1391, 4294901760
          %1393 = vmatmul.f32.gmra.mxu0 %v1392
          %v1394 = vpop.f32.mrf.mxu0
          %v1395 = vadd.f32 %v1330, %v1394
          %v1396 = vand.u32 %v1272, 4294901760
          %v1397 = vsub.f32 %v1272, %v1396
          %v1398 = vand.u32 %v1397, 4294901760
          %v1399 = vsub.f32 %v1397, %v1398
          %v1400 = vand.u32 %v1399, 4294901760
          %1401 = vmatmul.f32.gmra.mxu0 %v1400
          %v1402 = vpop.f32.mrf.mxu0
          %v1403 = vadd.f32 %v1330, %v1402
          %v1404 = vand.u32 %v1274, 4294901760
          %v1405 = vsub.f32 %v1274, %v1404
          %v1406 = vand.u32 %v1405, 4294901760
          %v1407 = vsub.f32 %v1405, %v1406
          %v1408 = vand.u32 %v1407, 4294901760
          %1409 = vmatmul.f32.gmra.mxu0 %v1408
          %v1410 = vpop.f32.mrf.mxu0
          %v1411 = vadd.f32 %v1330, %v1410
          %v1412 = vand.u32 %v1276, 4294901760
          %v1413 = vsub.f32 %v1276, %v1412
          %v1414 = vand.u32 %v1413, 4294901760
          %v1415 = vsub.f32 %v1413, %v1414
          %v1416 = vand.u32 %v1415, 4294901760
          %1417 = vmatmul.f32.gmra.mxu0 %v1416
          %v1418 = vpop.f32.mrf.mxu0
          %v1419 = vadd.f32 %v1330, %v1418
          %v1420 = vand.u32 %v1278, 4294901760
          %v1421 = vsub.f32 %v1278, %v1420
          %v1422 = vand.u32 %v1421, 4294901760
          %v1423 = vsub.f32 %v1421, %v1422
          %v1424 = vand.u32 %v1423, 4294901760
          %1425 = vmatmul.f32.gmra.mxu0 %v1424
          %v1426 = vpop.f32.mrf.mxu0
          %v1427 = vadd.f32 %v1330, %v1426
          %v1428 = vand.u32 %v1280, 4294901760
          %v1429 = vsub.f32 %v1280, %v1428
          %v1430 = vand.u32 %v1429, 4294901760
          %v1431 = vsub.f32 %v1429, %v1430
          %v1432 = vand.u32 %v1431, 4294901760
          %1433 = vmatmul.f32.gmra.mxu0 %v1432
          %v1434 = vpop.f32.mrf.mxu0
          %v1435 = vadd.f32 %v1330, %v1434
          %v1436 = vand.u32 %v1282, 4294901760
          %v1437 = vsub.f32 %v1282, %v1436
          %v1438 = vand.u32 %v1437, 4294901760
          %v1439 = vsub.f32 %v1437, %v1438
          %v1440 = vand.u32 %v1439, 4294901760
          %1441 = vmatmul.f32.gmra.mxu0 %v1440
          %v1442 = vpop.f32.mrf.mxu0
          %v1443 = vadd.f32 %v1330, %v1442
          %v1444 = vand.u32 %v1284, 4294901760
          %v1445 = vsub.f32 %v1284, %v1444
          %v1446 = vand.u32 %v1445, 4294901760
          %v1447 = vsub.f32 %v1445, %v1446
          %v1448 = vand.u32 %v1447, 4294901760
          %1449 = vmatmul.f32.gmra.mxu0 %v1448
          %v1450 = vpop.f32.mrf.mxu0
          %v1451 = vadd.f32 %v1330, %v1450
          %v1452 = vand.u32 %v1286, 4294901760
          %v1453 = vsub.f32 %v1286, %v1452
          %v1454 = vand.u32 %v1453, 4294901760
          %v1455 = vsub.f32 %v1453, %v1454
          %v1456 = vand.u32 %v1455, 4294901760
          %1457 = vmatmul.f32.gmra.mxu0 %v1456
          %v1458 = vpop.f32.mrf.mxu0
          %v1459 = vadd.f32 %v1330, %v1458
          %v1460 = vand.u32 %v1288, 4294901760
          %v1461 = vsub.f32 %v1288, %v1460
          %v1462 = vand.u32 %v1461, 4294901760
          %v1463 = vsub.f32 %v1461, %v1462
          %v1464 = vand.u32 %v1463, 4294901760
          %1465 = vmatmul.f32.gmra.mxu0 %v1464
          %v1466 = vpop.f32.mrf.mxu0
          %v1467 = vadd.f32 %v1330, %v1466
          %v1468 = vand.u32 %v1290, 4294901760
          %v1469 = vsub.f32 %v1290, %v1468
          %v1470 = vand.u32 %v1469, 4294901760
          %v1471 = vsub.f32 %v1469, %v1470
          %v1472 = vand.u32 %v1471, 4294901760
          %1473 = vmatmul.f32.gmra.mxu0 %v1472
          %v1474 = vpop.f32.mrf.mxu0
          %v1475 = vadd.f32 %v1330, %v1474
          %v1476 = vand.u32 %v1292, 4294901760
          %v1477 = vsub.f32 %v1292, %v1476
          %v1478 = vand.u32 %v1477, 4294901760
          %v1479 = vsub.f32 %v1477, %v1478
          %v1480 = vand.u32 %v1479, 4294901760
          %1481 = vmatmul.f32.gmra.mxu0 %v1480
          %v1482 = vpop.f32.mrf.mxu0
          %v1483 = vadd.f32 %v1330, %v1482
          %v1484 = vand.u32 %v1294, 4294901760
          %v1485 = vsub.f32 %v1294, %v1484
          %v1486 = vand.u32 %v1485, 4294901760
          %v1487 = vsub.f32 %v1485, %v1486
          %v1488 = vand.u32 %v1487, 4294901760
          %1489 = vmatmul.f32.gmra.mxu0 %v1488
          %v1490 = vpop.f32.mrf.mxu0
          %v1491 = vadd.f32 %v1330, %v1490
          %1492 = vdwg.mxu0
          %v1493 = vand.u32 %v1311, 4294901760
          %v1494 = vsub.f32 %v1311, %v1493
          %v1495 = vand.u32 %v1494, 4294901760
          %v1496 = vsub.f32 %v1494, %v1495
          %v1497 = vand.u32 %v1496, 4294901760
          %1498 = vmatpush.msra.mxu0 %v1497
          %v1499 = vand.u32 %v1310, 4294901760
          %v1500 = vsub.f32 %v1310, %v1499
          %v1501 = vand.u32 %v1500, 4294901760
          %v1502 = vsub.f32 %v1500, %v1501
          %v1503 = vand.u32 %v1502, 4294901760
          %1504 = vmatpush.msra.mxu0 %v1503
          %v1505 = vand.u32 %v1309, 4294901760
          %v1506 = vsub.f32 %v1309, %v1505
          %v1507 = vand.u32 %v1506, 4294901760
          %v1508 = vsub.f32 %v1506, %v1507
          %v1509 = vand.u32 %v1508, 4294901760
          %1510 = vmatpush.msra.mxu0 %v1509
          %v1511 = vand.u32 %v1308, 4294901760
          %v1512 = vsub.f32 %v1308, %v1511
          %v1513 = vand.u32 %v1512, 4294901760
          %v1514 = vsub.f32 %v1512, %v1513
          %v1515 = vand.u32 %v1514, 4294901760
          %1516 = vmatpush.msra.mxu0 %v1515
          %v1517 = vand.u32 %v1307, 4294901760
          %v1518 = vsub.f32 %v1307, %v1517
          %v1519 = vand.u32 %v1518, 4294901760
          %v1520 = vsub.f32 %v1518, %v1519
          %v1521 = vand.u32 %v1520, 4294901760
          %1522 = vmatpush.msra.mxu0 %v1521
          %v1523 = vand.u32 %v1306, 4294901760
          %v1524 = vsub.f32 %v1306, %v1523
          %v1525 = vand.u32 %v1524, 4294901760
          %v1526 = vsub.f32 %v1524, %v1525
          %v1527 = vand.u32 %v1526, 4294901760
          %1528 = vmatpush.msra.mxu0 %v1527
          %v1529 = vand.u32 %v1305, 4294901760
          %v1530 = vsub.f32 %v1305, %v1529
          %v1531 = vand.u32 %v1530, 4294901760
          %v1532 = vsub.f32 %v1530, %v1531
          %v1533 = vand.u32 %v1532, 4294901760
          %1534 = vmatpush.msra.mxu0 %v1533
          %v1535 = vand.u32 %v1304, 4294901760
          %v1536 = vsub.f32 %v1304, %v1535
          %v1537 = vand.u32 %v1536, 4294901760
          %v1538 = vsub.f32 %v1536, %v1537
          %v1539 = vand.u32 %v1538, 4294901760
          %1540 = vmatpush.msra.mxu0 %v1539
          %v1541 = vand.u32 %v1303, 4294901760
          %v1542 = vsub.f32 %v1303, %v1541
          %v1543 = vand.u32 %v1542, 4294901760
          %v1544 = vsub.f32 %v1542, %v1543
          %v1545 = vand.u32 %v1544, 4294901760
          %1546 = vmatpush.msra.mxu0 %v1545
          %v1547 = vand.u32 %v1302, 4294901760
          %v1548 = vsub.f32 %v1302, %v1547
          %v1549 = vand.u32 %v1548, 4294901760
          %v1550 = vsub.f32 %v1548, %v1549
          %v1551 = vand.u32 %v1550, 4294901760
          %1552 = vmatpush.msra.mxu0 %v1551
          %v1553 = vand.u32 %v1301, 4294901760
          %v1554 = vsub.f32 %v1301, %v1553
          %v1555 = vand.u32 %v1554, 4294901760
          %v1556 = vsub.f32 %v1554, %v1555
          %v1557 = vand.u32 %v1556, 4294901760
          %1558 = vmatpush.msra.mxu0 %v1557
          %v1559 = vand.u32 %v1300, 4294901760
          %v1560 = vsub.f32 %v1300, %v1559
          %v1561 = vand.u32 %v1560, 4294901760
          %v1562 = vsub.f32 %v1560, %v1561
          %v1563 = vand.u32 %v1562, 4294901760
          %1564 = vmatpush.msra.mxu0 %v1563
          %v1565 = vand.u32 %v1299, 4294901760
          %v1566 = vsub.f32 %v1299, %v1565
          %v1567 = vand.u32 %v1566, 4294901760
          %v1568 = vsub.f32 %v1566, %v1567
          %v1569 = vand.u32 %v1568, 4294901760
          %1570 = vmatpush.msra.mxu0 %v1569
          %v1571 = vand.u32 %v1298, 4294901760
          %v1572 = vsub.f32 %v1298, %v1571
          %v1573 = vand.u32 %v1572, 4294901760
          %v1574 = vsub.f32 %v1572, %v1573
          %v1575 = vand.u32 %v1574, 4294901760
          %1576 = vmatpush.msra.mxu0 %v1575
          %v1577 = vand.u32 %v1297, 4294901760
          %v1578 = vsub.f32 %v1297, %v1577
          %v1579 = vand.u32 %v1578, 4294901760
          %v1580 = vsub.f32 %v1578, %v1579
          %v1581 = vand.u32 %v1580, 4294901760
          %1582 = vmatpush.msra.mxu0 %v1581
          %v1583 = vand.u32 %v1296, 4294901760
          %v1584 = vsub.f32 %v1296, %v1583
          %v1585 = vand.u32 %v1584, 4294901760
          %v1586 = vsub.f32 %v1584, %v1585
          %v1587 = vand.u32 %v1586, 4294901760
          %1588 = vmatpush.msra.mxu0 %v1587
          %v1589 = vand.u32 %v1264, 4294901760
          %1590 = vmatmul.f32.gmra.mxu0 %v1589
          %v1591 = vpop.f32.mrf.mxu0
          %v1592 = vadd.f32 %v1371, %v1591
          %v1593 = vand.u32 %v1266, 4294901760
          %1594 = vmatmul.f32.gmra.mxu0 %v1593
          %v1595 = vpop.f32.mrf.mxu0
          %v1596 = vadd.f32 %v1379, %v1595
          %v1597 = vand.u32 %v1268, 4294901760
          %1598 = vmatmul.f32.gmra.mxu0 %v1597
          %v1599 = vpop.f32.mrf.mxu0
          %v1600 = vadd.f32 %v1387, %v1599
          %v1601 = vand.u32 %v1270, 4294901760
          %1602 = vmatmul.f32.gmra.mxu0 %v1601
          %v1603 = vpop.f32.mrf.mxu0
          %v1604 = vadd.f32 %v1395, %v1603
          %v1605 = vand.u32 %v1272, 4294901760
          %1606 = vmatmul.f32.gmra.mxu0 %v1605
          %v1607 = vpop.f32.mrf.mxu0
          %v1608 = vadd.f32 %v1403, %v1607
          %v1609 = vand.u32 %v1274, 4294901760
          %1610 = vmatmul.f32.gmra.mxu0 %v1609
          %v1611 = vpop.f32.mrf.mxu0
          %v1612 = vadd.f32 %v1411, %v1611
          %v1613 = vand.u32 %v1276, 4294901760
          %1614 = vmatmul.f32.gmra.mxu0 %v1613
          %v1615 = vpop.f32.mrf.mxu0
          %v1616 = vadd.f32 %v1419, %v1615
          %v1617 = vand.u32 %v1278, 4294901760
          %1618 = vmatmul.f32.gmra.mxu0 %v1617
          %v1619 = vpop.f32.mrf.mxu0
          %v1620 = vadd.f32 %v1427, %v1619
          %v1621 = vand.u32 %v1280, 4294901760
          %1622 = vmatmul.f32.gmra.mxu0 %v1621
          %v1623 = vpop.f32.mrf.mxu0
          %v1624 = vadd.f32 %v1435, %v1623
          %v1625 = vand.u32 %v1282, 4294901760
          %1626 = vmatmul.f32.gmra.mxu0 %v1625
          %v1627 = vpop.f32.mrf.mxu0
          %v1628 = vadd.f32 %v1443, %v1627
          %v1629 = vand.u32 %v1284, 4294901760
          %1630 = vmatmul.f32.gmra.mxu0 %v1629
          %v1631 = vpop.f32.mrf.mxu0
          %v1632 = vadd.f32 %v1451, %v1631
          %v1633 = vand.u32 %v1286, 4294901760
          %1634 = vmatmul.f32.gmra.mxu0 %v1633
          %v1635 = vpop.f32.mrf.mxu0
          %v1636 = vadd.f32 %v1459, %v1635
          %v1637 = vand.u32 %v1288, 4294901760
          %1638 = vmatmul.f32.gmra.mxu0 %v1637
          %v1639 = vpop.f32.mrf.mxu0
          %v1640 = vadd.f32 %v1467, %v1639
          %v1641 = vand.u32 %v1290, 4294901760
          %1642 = vmatmul.f32.gmra.mxu0 %v1641
          %v1643 = vpop.f32.mrf.mxu0
          %v1644 = vadd.f32 %v1475, %v1643
          %v1645 = vand.u32 %v1292, 4294901760
          %1646 = vmatmul.f32.gmra.mxu0 %v1645
          %v1647 = vpop.f32.mrf.mxu0
          %v1648 = vadd.f32 %v1483, %v1647
          %v1649 = vand.u32 %v1294, 4294901760
          %1650 = vmatmul.f32.gmra.mxu0 %v1649
          %v1651 = vpop.f32.mrf.mxu0
          %v1652 = vadd.f32 %v1491, %v1651
          %1653 = vdwg.mxu0
          %v1654 = vand.u32 %v1311, 4294901760
          %v1655 = vsub.f32 %v1311, %v1654
          %1656 = vmatpush.msra.mxu0 %v1655
          %v1657 = vand.u32 %v1310, 4294901760
          %v1658 = vsub.f32 %v1310, %v1657
          %1659 = vmatpush.msra.mxu0 %v1658
          %v1660 = vand.u32 %v1309, 4294901760
          %v1661 = vsub.f32 %v1309, %v1660
          %1662 = vmatpush.msra.mxu0 %v1661
          %v1663 = vand.u32 %v1308, 4294901760
          %v1664 = vsub.f32 %v1308, %v1663
          %1665 = vmatpush.msra.mxu0 %v1664
          %v1666 = vand.u32 %v1307, 4294901760
          %v1667 = vsub.f32 %v1307, %v1666
          %1668 = vmatpush.msra.mxu0 %v1667
          %v1669 = vand.u32 %v1306, 4294901760
          %v1670 = vsub.f32 %v1306, %v1669
          %1671 = vmatpush.msra.mxu0 %v1670
          %v1672 = vand.u32 %v1305, 4294901760
          %v1673 = vsub.f32 %v1305, %v1672
          %1674 = vmatpush.msra.mxu0 %v1673
          %v1675 = vand.u32 %v1304, 4294901760
          %v1676 = vsub.f32 %v1304, %v1675
          %1677 = vmatpush.msra.mxu0 %v1676
          %v1678 = vand.u32 %v1303, 4294901760
          %v1679 = vsub.f32 %v1303, %v1678
          %1680 = vmatpush.msra.mxu0 %v1679
          %v1681 = vand.u32 %v1302, 4294901760
          %v1682 = vsub.f32 %v1302, %v1681
          %1683 = vmatpush.msra.mxu0 %v1682
          %v1684 = vand.u32 %v1301, 4294901760
          %v1685 = vsub.f32 %v1301, %v1684
          %1686 = vmatpush.msra.mxu0 %v1685
          %v1687 = vand.u32 %v1300, 4294901760
          %v1688 = vsub.f32 %v1300, %v1687
          %1689 = vmatpush.msra.mxu0 %v1688
          %v1690 = vand.u32 %v1299, 4294901760
          %v1691 = vsub.f32 %v1299, %v1690
          %1692 = vmatpush.msra.mxu0 %v1691
          %v1693 = vand.u32 %v1298, 4294901760
          %v1694 = vsub.f32 %v1298, %v1693
          %1695 = vmatpush.msra.mxu0 %v1694
          %v1696 = vand.u32 %v1297, 4294901760
          %v1697 = vsub.f32 %v1297, %v1696
          %1698 = vmatpush.msra.mxu0 %v1697
          %v1699 = vand.u32 %v1296, 4294901760
          %v1700 = vsub.f32 %v1296, %v1699
          %1701 = vmatpush.msra.mxu0 %v1700
          %v1702 = vand.u32 %v1264, 4294901760
          %v1703 = vsub.f32 %v1264, %v1702
          %1704 = vmatmul.f32.gmra.mxu0 %v1703
          %v1705 = vpop.f32.mrf.mxu0
          %v1706 = vadd.f32 %v1592, %v1705
          %v1707 = vand.u32 %v1266, 4294901760
          %v1708 = vsub.f32 %v1266, %v1707
          %1709 = vmatmul.f32.gmra.mxu0 %v1708
          %v1710 = vpop.f32.mrf.mxu0
          %v1711 = vadd.f32 %v1596, %v1710
          %v1712 = vand.u32 %v1268, 4294901760
          %v1713 = vsub.f32 %v1268, %v1712
          %1714 = vmatmul.f32.gmra.mxu0 %v1713
          %v1715 = vpop.f32.mrf.mxu0
          %v1716 = vadd.f32 %v1600, %v1715
          %v1717 = vand.u32 %v1270, 4294901760
          %v1718 = vsub.f32 %v1270, %v1717
          %1719 = vmatmul.f32.gmra.mxu0 %v1718
          %v1720 = vpop.f32.mrf.mxu0
          %v1721 = vadd.f32 %v1604, %v1720
          %v1722 = vand.u32 %v1272, 4294901760
          %v1723 = vsub.f32 %v1272, %v1722
          %1724 = vmatmul.f32.gmra.mxu0 %v1723
          %v1725 = vpop.f32.mrf.mxu0
          %v1726 = vadd.f32 %v1608, %v1725
          %v1727 = vand.u32 %v1274, 4294901760
          %v1728 = vsub.f32 %v1274, %v1727
          %1729 = vmatmul.f32.gmra.mxu0 %v1728
          %v1730 = vpop.f32.mrf.mxu0
          %v1731 = vadd.f32 %v1612, %v1730
          %v1732 = vand.u32 %v1276, 4294901760
          %v1733 = vsub.f32 %v1276, %v1732
          %1734 = vmatmul.f32.gmra.mxu0 %v1733
          %v1735 = vpop.f32.mrf.mxu0
          %v1736 = vadd.f32 %v1616, %v1735
          %v1737 = vand.u32 %v1278, 4294901760
          %v1738 = vsub.f32 %v1278, %v1737
          %1739 = vmatmul.f32.gmra.mxu0 %v1738
          %v1740 = vpop.f32.mrf.mxu0
          %v1741 = vadd.f32 %v1620, %v1740
          %v1742 = vand.u32 %v1280, 4294901760
          %v1743 = vsub.f32 %v1280, %v1742
          %1744 = vmatmul.f32.gmra.mxu0 %v1743
          %v1745 = vpop.f32.mrf.mxu0
          %v1746 = vadd.f32 %v1624, %v1745
          %v1747 = vand.u32 %v1282, 4294901760
          %v1748 = vsub.f32 %v1282, %v1747
          %1749 = vmatmul.f32.gmra.mxu0 %v1748
          %v1750 = vpop.f32.mrf.mxu0
          %v1751 = vadd.f32 %v1628, %v1750
          %v1752 = vand.u32 %v1284, 4294901760
          %v1753 = vsub.f32 %v1284, %v1752
          %1754 = vmatmul.f32.gmra.mxu0 %v1753
          %v1755 = vpop.f32.mrf.mxu0
          %v1756 = vadd.f32 %v1632, %v1755
          %v1757 = vand.u32 %v1286, 4294901760
          %v1758 = vsub.f32 %v1286, %v1757
          %1759 = vmatmul.f32.gmra.mxu0 %v1758
          %v1760 = vpop.f32.mrf.mxu0
          %v1761 = vadd.f32 %v1636, %v1760
          %v1762 = vand.u32 %v1288, 4294901760
          %v1763 = vsub.f32 %v1288, %v1762
          %1764 = vmatmul.f32.gmra.mxu0 %v1763
          %v1765 = vpop.f32.mrf.mxu0
          %v1766 = vadd.f32 %v1640, %v1765
          %v1767 = vand.u32 %v1290, 4294901760
          %v1768 = vsub.f32 %v1290, %v1767
          %1769 = vmatmul.f32.gmra.mxu0 %v1768
          %v1770 = vpop.f32.mrf.mxu0
          %v1771 = vadd.f32 %v1644, %v1770
          %v1772 = vand.u32 %v1292, 4294901760
          %v1773 = vsub.f32 %v1292, %v1772
          %1774 = vmatmul.f32.gmra.mxu0 %v1773
          %v1775 = vpop.f32.mrf.mxu0
          %v1776 = vadd.f32 %v1648, %v1775
          %v1777 = vand.u32 %v1294, 4294901760
          %v1778 = vsub.f32 %v1294, %v1777
          %1779 = vmatmul.f32.gmra.mxu0 %v1778
          %v1780 = vpop.f32.mrf.mxu0
          %v1781 = vadd.f32 %v1652, %v1780
          %1782 = vdwg.mxu0
          %v1783 = vand.u32 %v1311, 4294901760
          %1784 = vmatpush.msra.mxu0 %v1783
          %v1785 = vand.u32 %v1310, 4294901760
          %1786 = vmatpush.msra.mxu0 %v1785
          %v1787 = vand.u32 %v1309, 4294901760
          %1788 = vmatpush.msra.mxu0 %v1787
          %v1789 = vand.u32 %v1308, 4294901760
          %1790 = vmatpush.msra.mxu0 %v1789
          %v1791 = vand.u32 %v1307, 4294901760
          %1792 = vmatpush.msra.mxu0 %v1791
          %v1793 = vand.u32 %v1306, 4294901760
          %1794 = vmatpush.msra.mxu0 %v1793
          %v1795 = vand.u32 %v1305, 4294901760
          %1796 = vmatpush.msra.mxu0 %v1795
          %v1797 = vand.u32 %v1304, 4294901760
          %1798 = vmatpush.msra.mxu0 %v1797
          %v1799 = vand.u32 %v1303, 4294901760
          %1800 = vmatpush.msra.mxu0 %v1799
          %v1801 = vand.u32 %v1302, 4294901760
          %1802 = vmatpush.msra.mxu0 %v1801
          %v1803 = vand.u32 %v1301, 4294901760
          %1804 = vmatpush.msra.mxu0 %v1803
          %v1805 = vand.u32 %v1300, 4294901760
          %1806 = vmatpush.msra.mxu0 %v1805
          %v1807 = vand.u32 %v1299, 4294901760
          %1808 = vmatpush.msra.mxu0 %v1807
          %v1809 = vand.u32 %v1298, 4294901760
          %1810 = vmatpush.msra.mxu0 %v1809
          %v1811 = vand.u32 %v1297, 4294901760
          %1812 = vmatpush.msra.mxu0 %v1811
          %v1813 = vand.u32 %v1296, 4294901760
          %1814 = vmatpush.msra.mxu0 %v1813
          %v1815 = vand.u32 %v1264, 4294901760
          %v1816 = vsub.f32 %v1264, %v1815
          %v1817 = vand.u32 %v1816, 4294901760
          %1818 = vmatmul.f32.gmra.mxu0 %v1817
          %v1819 = vpop.f32.mrf.mxu0
          %v1820 = vadd.f32 %v1706, %v1819
          %v1821 = vand.u32 %v1266, 4294901760
          %v1822 = vsub.f32 %v1266, %v1821
          %v1823 = vand.u32 %v1822, 4294901760
          %1824 = vmatmul.f32.gmra.mxu0 %v1823
          %v1825 = vpop.f32.mrf.mxu0
          %v1826 = vadd.f32 %v1711, %v1825
          %v1827 = vand.u32 %v1268, 4294901760
          %v1828 = vsub.f32 %v1268, %v1827
          %v1829 = vand.u32 %v1828, 4294901760
          %1830 = vmatmul.f32.gmra.mxu0 %v1829
          %v1831 = vpop.f32.mrf.mxu0
          %v1832 = vadd.f32 %v1716, %v1831
          %v1833 = vand.u32 %v1270, 4294901760
          %v1834 = vsub.f32 %v1270, %v1833
          %v1835 = vand.u32 %v1834, 4294901760
          %1836 = vmatmul.f32.gmra.mxu0 %v1835
          %v1837 = vpop.f32.mrf.mxu0
          %v1838 = vadd.f32 %v1721, %v1837
          %v1839 = vand.u32 %v1272, 4294901760
          %v1840 = vsub.f32 %v1272, %v1839
          %v1841 = vand.u32 %v1840, 4294901760
          %1842 = vmatmul.f32.gmra.mxu0 %v1841
          %v1843 = vpop.f32.mrf.mxu0
          %v1844 = vadd.f32 %v1726, %v1843
          %v1845 = vand.u32 %v1274, 4294901760
          %v1846 = vsub.f32 %v1274, %v1845
          %v1847 = vand.u32 %v1846, 4294901760
          %1848 = vmatmul.f32.gmra.mxu0 %v1847
          %v1849 = vpop.f32.mrf.mxu0
          %v1850 = vadd.f32 %v1731, %v1849
          %v1851 = vand.u32 %v1276, 4294901760
          %v1852 = vsub.f32 %v1276, %v1851
          %v1853 = vand.u32 %v1852, 4294901760
          %1854 = vmatmul.f32.gmra.mxu0 %v1853
          %v1855 = vpop.f32.mrf.mxu0
          %v1856 = vadd.f32 %v1736, %v1855
          %v1857 = vand.u32 %v1278, 4294901760
          %v1858 = vsub.f32 %v1278, %v1857
          %v1859 = vand.u32 %v1858, 4294901760
          %1860 = vmatmul.f32.gmra.mxu0 %v1859
          %v1861 = vpop.f32.mrf.mxu0
          %v1862 = vadd.f32 %v1741, %v1861
          %v1863 = vand.u32 %v1280, 4294901760
          %v1864 = vsub.f32 %v1280, %v1863
          %v1865 = vand.u32 %v1864, 4294901760
          %1866 = vmatmul.f32.gmra.mxu0 %v1865
          %v1867 = vpop.f32.mrf.mxu0
          %v1868 = vadd.f32 %v1746, %v1867
          %v1869 = vand.u32 %v1282, 4294901760
          %v1870 = vsub.f32 %v1282, %v1869
          %v1871 = vand.u32 %v1870, 4294901760
          %1872 = vmatmul.f32.gmra.mxu0 %v1871
          %v1873 = vpop.f32.mrf.mxu0
          %v1874 = vadd.f32 %v1751, %v1873
          %v1875 = vand.u32 %v1284, 4294901760
          %v1876 = vsub.f32 %v1284, %v1875
          %v1877 = vand.u32 %v1876, 4294901760
          %1878 = vmatmul.f32.gmra.mxu0 %v1877
          %v1879 = vpop.f32.mrf.mxu0
          %v1880 = vadd.f32 %v1756, %v1879
          %v1881 = vand.u32 %v1286, 4294901760
          %v1882 = vsub.f32 %v1286, %v1881
          %v1883 = vand.u32 %v1882, 4294901760
          %1884 = vmatmul.f32.gmra.mxu0 %v1883
          %v1885 = vpop.f32.mrf.mxu0
          %v1886 = vadd.f32 %v1761, %v1885
          %v1887 = vand.u32 %v1288, 4294901760
          %v1888 = vsub.f32 %v1288, %v1887
          %v1889 = vand.u32 %v1888, 4294901760
          %1890 = vmatmul.f32.gmra.mxu0 %v1889
          %v1891 = vpop.f32.mrf.mxu0
          %v1892 = vadd.f32 %v1766, %v1891
          %v1893 = vand.u32 %v1290, 4294901760
          %v1894 = vsub.f32 %v1290, %v1893
          %v1895 = vand.u32 %v1894, 4294901760
          %1896 = vmatmul.f32.gmra.mxu0 %v1895
          %v1897 = vpop.f32.mrf.mxu0
          %v1898 = vadd.f32 %v1771, %v1897
          %v1899 = vand.u32 %v1292, 4294901760
          %v1900 = vsub.f32 %v1292, %v1899
          %v1901 = vand.u32 %v1900, 4294901760
          %1902 = vmatmul.f32.gmra.mxu0 %v1901
          %v1903 = vpop.f32.mrf.mxu0
          %v1904 = vadd.f32 %v1776, %v1903
          %v1905 = vand.u32 %v1294, 4294901760
          %v1906 = vsub.f32 %v1294, %v1905
          %v1907 = vand.u32 %v1906, 4294901760
          %1908 = vmatmul.f32.gmra.mxu0 %v1907
          %v1909 = vpop.f32.mrf.mxu0
          %v1910 = vadd.f32 %v1781, %v1909
          %1911 = vdwg.mxu0
          %v1912 = vand.u32 %v1311, 4294901760
          %v1913 = vsub.f32 %v1311, %v1912
          %v1914 = vand.u32 %v1913, 4294901760
          %1915 = vmatpush.msra.mxu0 %v1914
          %v1916 = vand.u32 %v1310, 4294901760
          %v1917 = vsub.f32 %v1310, %v1916
          %v1918 = vand.u32 %v1917, 4294901760
          %1919 = vmatpush.msra.mxu0 %v1918
          %v1920 = vand.u32 %v1309, 4294901760
          %v1921 = vsub.f32 %v1309, %v1920
          %v1922 = vand.u32 %v1921, 4294901760
          %1923 = vmatpush.msra.mxu0 %v1922
          %v1924 = vand.u32 %v1308, 4294901760
          %v1925 = vsub.f32 %v1308, %v1924
          %v1926 = vand.u32 %v1925, 4294901760
          %1927 = vmatpush.msra.mxu0 %v1926
          %v1928 = vand.u32 %v1307, 4294901760
          %v1929 = vsub.f32 %v1307, %v1928
          %v1930 = vand.u32 %v1929, 4294901760
          %1931 = vmatpush.msra.mxu0 %v1930
          %v1932 = vand.u32 %v1306, 4294901760
          %v1933 = vsub.f32 %v1306, %v1932
          %v1934 = vand.u32 %v1933, 4294901760
          %1935 = vmatpush.msra.mxu0 %v1934
          %v1936 = vand.u32 %v1305, 4294901760
          %v1937 = vsub.f32 %v1305, %v1936
          %v1938 = vand.u32 %v1937, 4294901760
          %1939 = vmatpush.msra.mxu0 %v1938
          %v1940 = vand.u32 %v1304, 4294901760
          %v1941 = vsub.f32 %v1304, %v1940
          %v1942 = vand.u32 %v1941, 4294901760
          %1943 = vmatpush.msra.mxu0 %v1942
          %v1944 = vand.u32 %v1303, 4294901760
          %v1945 = vsub.f32 %v1303, %v1944
          %v1946 = vand.u32 %v1945, 4294901760
          %1947 = vmatpush.msra.mxu0 %v1946
          %v1948 = vand.u32 %v1302, 4294901760
          %v1949 = vsub.f32 %v1302, %v1948
          %v1950 = vand.u32 %v1949, 4294901760
          %1951 = vmatpush.msra.mxu0 %v1950
          %v1952 = vand.u32 %v1301, 4294901760
          %v1953 = vsub.f32 %v1301, %v1952
          %v1954 = vand.u32 %v1953, 4294901760
          %1955 = vmatpush.msra.mxu0 %v1954
          %v1956 = vand.u32 %v1300, 4294901760
          %v1957 = vsub.f32 %v1300, %v1956
          %v1958 = vand.u32 %v1957, 4294901760
          %1959 = vmatpush.msra.mxu0 %v1958
          %v1960 = vand.u32 %v1299, 4294901760
          %v1961 = vsub.f32 %v1299, %v1960
          %v1962 = vand.u32 %v1961, 4294901760
          %1963 = vmatpush.msra.mxu0 %v1962
          %v1964 = vand.u32 %v1298, 4294901760
          %v1965 = vsub.f32 %v1298, %v1964
          %v1966 = vand.u32 %v1965, 4294901760
          %1967 = vmatpush.msra.mxu0 %v1966
          %v1968 = vand.u32 %v1297, 4294901760
          %v1969 = vsub.f32 %v1297, %v1968
          %v1970 = vand.u32 %v1969, 4294901760
          %1971 = vmatpush.msra.mxu0 %v1970
          %v1972 = vand.u32 %v1296, 4294901760
          %v1973 = vsub.f32 %v1296, %v1972
          %v1974 = vand.u32 %v1973, 4294901760
          %1975 = vmatpush.msra.mxu0 %v1974
          %v1976 = vand.u32 %v1264, 4294901760
          %1977 = vmatmul.f32.gmra.mxu0 %v1976
          %v1978 = vpop.f32.mrf.mxu0
          %v1979 = vadd.f32 %v1820, %v1978
          %v1980 = vand.u32 %v1266, 4294901760
          %1981 = vmatmul.f32.gmra.mxu0 %v1980
          %v1982 = vpop.f32.mrf.mxu0
          %v1983 = vadd.f32 %v1826, %v1982
          %v1984 = vand.u32 %v1268, 4294901760
          %1985 = vmatmul.f32.gmra.mxu0 %v1984
          %v1986 = vpop.f32.mrf.mxu0
          %v1987 = vadd.f32 %v1832, %v1986
          %v1988 = vand.u32 %v1270, 4294901760
          %1989 = vmatmul.f32.gmra.mxu0 %v1988
          %v1990 = vpop.f32.mrf.mxu0
          %v1991 = vadd.f32 %v1838, %v1990
          %v1992 = vand.u32 %v1272, 4294901760
          %1993 = vmatmul.f32.gmra.mxu0 %v1992
          %v1994 = vpop.f32.mrf.mxu0
          %v1995 = vadd.f32 %v1844, %v1994
          %v1996 = vand.u32 %v1274, 4294901760
          %1997 = vmatmul.f32.gmra.mxu0 %v1996
          %v1998 = vpop.f32.mrf.mxu0
          %v1999 = vadd.f32 %v1850, %v1998
          %v2000 = vand.u32 %v1276, 4294901760
          %2001 = vmatmul.f32.gmra.mxu0 %v2000
          %v2002 = vpop.f32.mrf.mxu0
          %v2003 = vadd.f32 %v1856, %v2002
          %v2004 = vand.u32 %v1278, 4294901760
          %2005 = vmatmul.f32.gmra.mxu0 %v2004
          %v2006 = vpop.f32.mrf.mxu0
          %v2007 = vadd.f32 %v1862, %v2006
          %v2008 = vand.u32 %v1280, 4294901760
          %2009 = vmatmul.f32.gmra.mxu0 %v2008
          %v2010 = vpop.f32.mrf.mxu0
          %v2011 = vadd.f32 %v1868, %v2010
          %v2012 = vand.u32 %v1282, 4294901760
          %2013 = vmatmul.f32.gmra.mxu0 %v2012
          %v2014 = vpop.f32.mrf.mxu0
          %v2015 = vadd.f32 %v1874, %v2014
          %v2016 = vand.u32 %v1284, 4294901760
          %2017 = vmatmul.f32.gmra.mxu0 %v2016
          %v2018 = vpop.f32.mrf.mxu0
          %v2019 = vadd.f32 %v1880, %v2018
          %v2020 = vand.u32 %v1286, 4294901760
          %2021 = vmatmul.f32.gmra.mxu0 %v2020
          %v2022 = vpop.f32.mrf.mxu0
          %v2023 = vadd.f32 %v1886, %v2022
          %v2024 = vand.u32 %v1288, 4294901760
          %2025 = vmatmul.f32.gmra.mxu0 %v2024
          %v2026 = vpop.f32.mrf.mxu0
          %v2027 = vadd.f32 %v1892, %v2026
          %v2028 = vand.u32 %v1290, 4294901760
          %2029 = vmatmul.f32.gmra.mxu0 %v2028
          %v2030 = vpop.f32.mrf.mxu0
          %v2031 = vadd.f32 %v1898, %v2030
          %v2032 = vand.u32 %v1292, 4294901760
          %2033 = vmatmul.f32.gmra.mxu0 %v2032
          %v2034 = vpop.f32.mrf.mxu0
          %v2035 = vadd.f32 %v1904, %v2034
          %v2036 = vand.u32 %v1294, 4294901760
          %2037 = vmatmul.f32.gmra.mxu0 %v2036
          %v2038 = vpop.f32.mrf.mxu0
          %v2039 = vadd.f32 %v1910, %v2038
          %2040 = vdwg.mxu0
          %v2041 = vand.u32 %v1311, 4294901760
          %2042 = vmatpush.msra.mxu0 %v2041
          %v2043 = vand.u32 %v1310, 4294901760
          %2044 = vmatpush.msra.mxu0 %v2043
          %v2045 = vand.u32 %v1309, 4294901760
          %2046 = vmatpush.msra.mxu0 %v2045
          %v2047 = vand.u32 %v1308, 4294901760
          %2048 = vmatpush.msra.mxu0 %v2047
          %v2049 = vand.u32 %v1307, 4294901760
          %2050 = vmatpush.msra.mxu0 %v2049
          %v2051 = vand.u32 %v1306, 4294901760
          %2052 = vmatpush.msra.mxu0 %v2051
          %v2053 = vand.u32 %v1305, 4294901760
          %2054 = vmatpush.msra.mxu0 %v2053
          %v2055 = vand.u32 %v1304, 4294901760
          %2056 = vmatpush.msra.mxu0 %v2055
          %v2057 = vand.u32 %v1303, 4294901760
          %2058 = vmatpush.msra.mxu0 %v2057
          %v2059 = vand.u32 %v1302, 4294901760
          %2060 = vmatpush.msra.mxu0 %v2059
          %v2061 = vand.u32 %v1301, 4294901760
          %2062 = vmatpush.msra.mxu0 %v2061
          %v2063 = vand.u32 %v1300, 4294901760
          %2064 = vmatpush.msra.mxu0 %v2063
          %v2065 = vand.u32 %v1299, 4294901760
          %2066 = vmatpush.msra.mxu0 %v2065
          %v2067 = vand.u32 %v1298, 4294901760
          %2068 = vmatpush.msra.mxu0 %v2067
          %v2069 = vand.u32 %v1297, 4294901760
          %2070 = vmatpush.msra.mxu0 %v2069
          %v2071 = vand.u32 %v1296, 4294901760
          %2072 = vmatpush.msra.mxu0 %v2071
          %v2073 = vand.u32 %v1264, 4294901760
          %2074 = vmatmul.f32.gmra.mxu0 %v2073
          %v2075 = vpop.f32.mrf.mxu0
          %v2076 = vadd.f32 %v1979, %v2075
          %v2077 = vand.u32 %v1266, 4294901760
          %2078 = vmatmul.f32.gmra.mxu0 %v2077
          %v2079 = vpop.f32.mrf.mxu0
          %v2080 = vadd.f32 %v1983, %v2079
          %v2081 = vand.u32 %v1268, 4294901760
          %2082 = vmatmul.f32.gmra.mxu0 %v2081
          %v2083 = vpop.f32.mrf.mxu0
          %v2084 = vadd.f32 %v1987, %v2083
          %v2085 = vand.u32 %v1270, 4294901760
          %2086 = vmatmul.f32.gmra.mxu0 %v2085
          %v2087 = vpop.f32.mrf.mxu0
          %v2088 = vadd.f32 %v1991, %v2087
          %v2089 = vand.u32 %v1272, 4294901760
          %2090 = vmatmul.f32.gmra.mxu0 %v2089
          %v2091 = vpop.f32.mrf.mxu0
          %v2092 = vadd.f32 %v1995, %v2091
          %v2093 = vand.u32 %v1274, 4294901760
          %2094 = vmatmul.f32.gmra.mxu0 %v2093
          %v2095 = vpop.f32.mrf.mxu0
          %v2096 = vadd.f32 %v1999, %v2095
          %v2097 = vand.u32 %v1276, 4294901760
          %2098 = vmatmul.f32.gmra.mxu0 %v2097
          %v2099 = vpop.f32.mrf.mxu0
          %v2100 = vadd.f32 %v2003, %v2099
          %v2101 = vand.u32 %v1278, 4294901760
          %2102 = vmatmul.f32.gmra.mxu0 %v2101
          %v2103 = vpop.f32.mrf.mxu0
          %v2104 = vadd.f32 %v2007, %v2103
          %v2105 = vand.u32 %v1280, 4294901760
          %2106 = vmatmul.f32.gmra.mxu0 %v2105
          %v2107 = vpop.f32.mrf.mxu0
          %v2108 = vadd.f32 %v2011, %v2107
          %v2109 = vand.u32 %v1282, 4294901760
          %2110 = vmatmul.f32.gmra.mxu0 %v2109
          %v2111 = vpop.f32.mrf.mxu0
          %v2112 = vadd.f32 %v2015, %v2111
          %v2113 = vand.u32 %v1284, 4294901760
          %2114 = vmatmul.f32.gmra.mxu0 %v2113
          %v2115 = vpop.f32.mrf.mxu0
          %v2116 = vadd.f32 %v2019, %v2115
          %v2117 = vand.u32 %v1286, 4294901760
          %2118 = vmatmul.f32.gmra.mxu0 %v2117
          %v2119 = vpop.f32.mrf.mxu0
          %v2120 = vadd.f32 %v2023, %v2119
          %v2121 = vand.u32 %v1288, 4294901760
          %2122 = vmatmul.f32.gmra.mxu0 %v2121
          %v2123 = vpop.f32.mrf.mxu0
          %v2124 = vadd.f32 %v2027, %v2123
          %v2125 = vand.u32 %v1290, 4294901760
          %2126 = vmatmul.f32.gmra.mxu0 %v2125
          %v2127 = vpop.f32.mrf.mxu0
          %v2128 = vadd.f32 %v2031, %v2127
          %v2129 = vand.u32 %v1292, 4294901760
          %2130 = vmatmul.f32.gmra.mxu0 %v2129
          %v2131 = vpop.f32.mrf.mxu0
          %v2132 = vadd.f32 %v2035, %v2131
          %v2133 = vand.u32 %v1294, 4294901760
          %2134 = vmatmul.f32.gmra.mxu0 %v2133
          %v2135 = vpop.f32.mrf.mxu0
          %v2136 = vadd.f32 %v2039, %v2135
          %2137 = vdwg.mxu0
          %v2138 = vand.u32 %v1327, 4294901760
          %2139 = vmatpush.msra.mxu0 %v2138
          %v2140 = vand.u32 %v1326, 4294901760
          %2141 = vmatpush.msra.mxu0 %v2140
          %v2142 = vand.u32 %v1325, 4294901760
          %2143 = vmatpush.msra.mxu0 %v2142
          %v2144 = vand.u32 %v1324, 4294901760
          %2145 = vmatpush.msra.mxu0 %v2144
          %v2146 = vand.u32 %v1323, 4294901760
          %2147 = vmatpush.msra.mxu0 %v2146
          %v2148 = vand.u32 %v1322, 4294901760
          %2149 = vmatpush.msra.mxu0 %v2148
          %v2150 = vand.u32 %v1321, 4294901760
          %2151 = vmatpush.msra.mxu0 %v2150
          %v2152 = vand.u32 %v1320, 4294901760
          %2153 = vmatpush.msra.mxu0 %v2152
          %v2154 = vand.u32 %v1319, 4294901760
          %2155 = vmatpush.msra.mxu0 %v2154
          %v2156 = vand.u32 %v1318, 4294901760
          %2157 = vmatpush.msra.mxu0 %v2156
          %v2158 = vand.u32 %v1317, 4294901760
          %2159 = vmatpush.msra.mxu0 %v2158
          %v2160 = vand.u32 %v1316, 4294901760
          %2161 = vmatpush.msra.mxu0 %v2160
          %v2162 = vand.u32 %v1315, 4294901760
          %2163 = vmatpush.msra.mxu0 %v2162
          %v2164 = vand.u32 %v1314, 4294901760
          %2165 = vmatpush.msra.mxu0 %v2164
          %v2166 = vand.u32 %v1313, 4294901760
          %2167 = vmatpush.msra.mxu0 %v2166
          %v2168 = vand.u32 %v1312, 4294901760
          %2169 = vmatpush.msra.mxu0 %v2168
          %v2170 = vand.u32 %v1265, 4294901760
          %v2171 = vsub.f32 %v1265, %v2170
          %v2172 = vand.u32 %v2171, 4294901760
          %v2173 = vsub.f32 %v2171, %v2172
          %v2174 = vand.u32 %v2173, 4294901760
          %2175 = vmatmul.f32.gmra.mxu0 %v2174
          %v2176 = vpop.f32.mrf.mxu0
          %v2177 = vadd.f32 %v2076, %v2176
          %v2178 = vand.u32 %v1267, 4294901760
          %v2179 = vsub.f32 %v1267, %v2178
          %v2180 = vand.u32 %v2179, 4294901760
          %v2181 = vsub.f32 %v2179, %v2180
          %v2182 = vand.u32 %v2181, 4294901760
          %2183 = vmatmul.f32.gmra.mxu0 %v2182
          %v2184 = vpop.f32.mrf.mxu0
          %v2185 = vadd.f32 %v2080, %v2184
          %v2186 = vand.u32 %v1269, 4294901760
          %v2187 = vsub.f32 %v1269, %v2186
          %v2188 = vand.u32 %v2187, 4294901760
          %v2189 = vsub.f32 %v2187, %v2188
          %v2190 = vand.u32 %v2189, 4294901760
          %2191 = vmatmul.f32.gmra.mxu0 %v2190
          %v2192 = vpop.f32.mrf.mxu0
          %v2193 = vadd.f32 %v2084, %v2192
          %v2194 = vand.u32 %v1271, 4294901760
          %v2195 = vsub.f32 %v1271, %v2194
          %v2196 = vand.u32 %v2195, 4294901760
          %v2197 = vsub.f32 %v2195, %v2196
          %v2198 = vand.u32 %v2197, 4294901760
          %2199 = vmatmul.f32.gmra.mxu0 %v2198
          %v2200 = vpop.f32.mrf.mxu0
          %v2201 = vadd.f32 %v2088, %v2200
          %v2202 = vand.u32 %v1273, 4294901760
          %v2203 = vsub.f32 %v1273, %v2202
          %v2204 = vand.u32 %v2203, 4294901760
          %v2205 = vsub.f32 %v2203, %v2204
          %v2206 = vand.u32 %v2205, 4294901760
          %2207 = vmatmul.f32.gmra.mxu0 %v2206
          %v2208 = vpop.f32.mrf.mxu0
          %v2209 = vadd.f32 %v2092, %v2208
          %v2210 = vand.u32 %v1275, 4294901760
          %v2211 = vsub.f32 %v1275, %v2210
          %v2212 = vand.u32 %v2211, 4294901760
          %v2213 = vsub.f32 %v2211, %v2212
          %v2214 = vand.u32 %v2213, 4294901760
          %2215 = vmatmul.f32.gmra.mxu0 %v2214
          %v2216 = vpop.f32.mrf.mxu0
          %v2217 = vadd.f32 %v2096, %v2216
          %v2218 = vand.u32 %v1277, 4294901760
          %v2219 = vsub.f32 %v1277, %v2218
          %v2220 = vand.u32 %v2219, 4294901760
          %v2221 = vsub.f32 %v2219, %v2220
          %v2222 = vand.u32 %v2221, 4294901760
          %2223 = vmatmul.f32.gmra.mxu0 %v2222
          %v2224 = vpop.f32.mrf.mxu0
          %v2225 = vadd.f32 %v2100, %v2224
          %v2226 = vand.u32 %v1279, 4294901760
          %v2227 = vsub.f32 %v1279, %v2226
          %v2228 = vand.u32 %v2227, 4294901760
          %v2229 = vsub.f32 %v2227, %v2228
          %v2230 = vand.u32 %v2229, 4294901760
          %2231 = vmatmul.f32.gmra.mxu0 %v2230
          %v2232 = vpop.f32.mrf.mxu0
          %v2233 = vadd.f32 %v2104, %v2232
          %v2234 = vand.u32 %v1281, 4294901760
          %v2235 = vsub.f32 %v1281, %v2234
          %v2236 = vand.u32 %v2235, 4294901760
          %v2237 = vsub.f32 %v2235, %v2236
          %v2238 = vand.u32 %v2237, 4294901760
          %2239 = vmatmul.f32.gmra.mxu0 %v2238
          %v2240 = vpop.f32.mrf.mxu0
          %v2241 = vadd.f32 %v2108, %v2240
          %v2242 = vand.u32 %v1283, 4294901760
          %v2243 = vsub.f32 %v1283, %v2242
          %v2244 = vand.u32 %v2243, 4294901760
          %v2245 = vsub.f32 %v2243, %v2244
          %v2246 = vand.u32 %v2245, 4294901760
          %2247 = vmatmul.f32.gmra.mxu0 %v2246
          %v2248 = vpop.f32.mrf.mxu0
          %v2249 = vadd.f32 %v2112, %v2248
          %v2250 = vand.u32 %v1285, 4294901760
          %v2251 = vsub.f32 %v1285, %v2250
          %v2252 = vand.u32 %v2251, 4294901760
          %v2253 = vsub.f32 %v2251, %v2252
          %v2254 = vand.u32 %v2253, 4294901760
          %2255 = vmatmul.f32.gmra.mxu0 %v2254
          %v2256 = vpop.f32.mrf.mxu0
          %v2257 = vadd.f32 %v2116, %v2256
          %v2258 = vand.u32 %v1287, 4294901760
          %v2259 = vsub.f32 %v1287, %v2258
          %v2260 = vand.u32 %v2259, 4294901760
          %v2261 = vsub.f32 %v2259, %v2260
          %v2262 = vand.u32 %v2261, 4294901760
          %2263 = vmatmul.f32.gmra.mxu0 %v2262
          %v2264 = vpop.f32.mrf.mxu0
          %v2265 = vadd.f32 %v2120, %v2264
          %v2266 = vand.u32 %v1289, 4294901760
          %v2267 = vsub.f32 %v1289, %v2266
          %v2268 = vand.u32 %v2267, 4294901760
          %v2269 = vsub.f32 %v2267, %v2268
          %v2270 = vand.u32 %v2269, 4294901760
          %2271 = vmatmul.f32.gmra.mxu0 %v2270
          %v2272 = vpop.f32.mrf.mxu0
          %v2273 = vadd.f32 %v2124, %v2272
          %v2274 = vand.u32 %v1291, 4294901760
          %v2275 = vsub.f32 %v1291, %v2274
          %v2276 = vand.u32 %v2275, 4294901760
          %v2277 = vsub.f32 %v2275, %v2276
          %v2278 = vand.u32 %v2277, 4294901760
          %2279 = vmatmul.f32.gmra.mxu0 %v2278
          %v2280 = vpop.f32.mrf.mxu0
          %v2281 = vadd.f32 %v2128, %v2280
          %v2282 = vand.u32 %v1293, 4294901760
          %v2283 = vsub.f32 %v1293, %v2282
          %v2284 = vand.u32 %v2283, 4294901760
          %v2285 = vsub.f32 %v2283, %v2284
          %v2286 = vand.u32 %v2285, 4294901760
          %2287 = vmatmul.f32.gmra.mxu0 %v2286
          %v2288 = vpop.f32.mrf.mxu0
          %v2289 = vadd.f32 %v2132, %v2288
          %v2290 = vand.u32 %v1295, 4294901760
          %v2291 = vsub.f32 %v1295, %v2290
          %v2292 = vand.u32 %v2291, 4294901760
          %v2293 = vsub.f32 %v2291, %v2292
          %v2294 = vand.u32 %v2293, 4294901760
          %2295 = vmatmul.f32.gmra.mxu0 %v2294
          %v2296 = vpop.f32.mrf.mxu0
          %v2297 = vadd.f32 %v2136, %v2296
          %2298 = vdwg.mxu0
          %v2299 = vand.u32 %v1327, 4294901760
          %v2300 = vsub.f32 %v1327, %v2299
          %v2301 = vand.u32 %v2300, 4294901760
          %v2302 = vsub.f32 %v2300, %v2301
          %v2303 = vand.u32 %v2302, 4294901760
          %2304 = vmatpush.msra.mxu0 %v2303
          %v2305 = vand.u32 %v1326, 4294901760
          %v2306 = vsub.f32 %v1326, %v2305
          %v2307 = vand.u32 %v2306, 4294901760
          %v2308 = vsub.f32 %v2306, %v2307
          %v2309 = vand.u32 %v2308, 4294901760
          %2310 = vmatpush.msra.mxu0 %v2309
          %v2311 = vand.u32 %v1325, 4294901760
          %v2312 = vsub.f32 %v1325, %v2311
          %v2313 = vand.u32 %v2312, 4294901760
          %v2314 = vsub.f32 %v2312, %v2313
          %v2315 = vand.u32 %v2314, 4294901760
          %2316 = vmatpush.msra.mxu0 %v2315
          %v2317 = vand.u32 %v1324, 4294901760
          %v2318 = vsub.f32 %v1324, %v2317
          %v2319 = vand.u32 %v2318, 4294901760
          %v2320 = vsub.f32 %v2318, %v2319
          %v2321 = vand.u32 %v2320, 4294901760
          %2322 = vmatpush.msra.mxu0 %v2321
          %v2323 = vand.u32 %v1323, 4294901760
          %v2324 = vsub.f32 %v1323, %v2323
          %v2325 = vand.u32 %v2324, 4294901760
          %v2326 = vsub.f32 %v2324, %v2325
          %v2327 = vand.u32 %v2326, 4294901760
          %2328 = vmatpush.msra.mxu0 %v2327
          %v2329 = vand.u32 %v1322, 4294901760
          %v2330 = vsub.f32 %v1322, %v2329
          %v2331 = vand.u32 %v2330, 4294901760
          %v2332 = vsub.f32 %v2330, %v2331
          %v2333 = vand.u32 %v2332, 4294901760
          %2334 = vmatpush.msra.mxu0 %v2333
          %v2335 = vand.u32 %v1321, 4294901760
          %v2336 = vsub.f32 %v1321, %v2335
          %v2337 = vand.u32 %v2336, 4294901760
          %v2338 = vsub.f32 %v2336, %v2337
          %v2339 = vand.u32 %v2338, 4294901760
          %2340 = vmatpush.msra.mxu0 %v2339
          %v2341 = vand.u32 %v1320, 4294901760
          %v2342 = vsub.f32 %v1320, %v2341
          %v2343 = vand.u32 %v2342, 4294901760
          %v2344 = vsub.f32 %v2342, %v2343
          %v2345 = vand.u32 %v2344, 4294901760
          %2346 = vmatpush.msra.mxu0 %v2345
          %v2347 = vand.u32 %v1319, 4294901760
          %v2348 = vsub.f32 %v1319, %v2347
          %v2349 = vand.u32 %v2348, 4294901760
          %v2350 = vsub.f32 %v2348, %v2349
          %v2351 = vand.u32 %v2350, 4294901760
          %2352 = vmatpush.msra.mxu0 %v2351
          %v2353 = vand.u32 %v1318, 4294901760
          %v2354 = vsub.f32 %v1318, %v2353
          %v2355 = vand.u32 %v2354, 4294901760
          %v2356 = vsub.f32 %v2354, %v2355
          %v2357 = vand.u32 %v2356, 4294901760
          %2358 = vmatpush.msra.mxu0 %v2357
          %v2359 = vand.u32 %v1317, 4294901760
          %v2360 = vsub.f32 %v1317, %v2359
          %v2361 = vand.u32 %v2360, 4294901760
          %v2362 = vsub.f32 %v2360, %v2361
          %v2363 = vand.u32 %v2362, 4294901760
          %2364 = vmatpush.msra.mxu0 %v2363
          %v2365 = vand.u32 %v1316, 4294901760
          %v2366 = vsub.f32 %v1316, %v2365
          %v2367 = vand.u32 %v2366, 4294901760
          %v2368 = vsub.f32 %v2366, %v2367
          %v2369 = vand.u32 %v2368, 4294901760
          %2370 = vmatpush.msra.mxu0 %v2369
          %v2371 = vand.u32 %v1315, 4294901760
          %v2372 = vsub.f32 %v1315, %v2371
          %v2373 = vand.u32 %v2372, 4294901760
          %v2374 = vsub.f32 %v2372, %v2373
          %v2375 = vand.u32 %v2374, 4294901760
          %2376 = vmatpush.msra.mxu0 %v2375
          %v2377 = vand.u32 %v1314, 4294901760
          %v2378 = vsub.f32 %v1314, %v2377
          %v2379 = vand.u32 %v2378, 4294901760
          %v2380 = vsub.f32 %v2378, %v2379
          %v2381 = vand.u32 %v2380, 4294901760
          %2382 = vmatpush.msra.mxu0 %v2381
          %v2383 = vand.u32 %v1313, 4294901760
          %v2384 = vsub.f32 %v1313, %v2383
          %v2385 = vand.u32 %v2384, 4294901760
          %v2386 = vsub.f32 %v2384, %v2385
          %v2387 = vand.u32 %v2386, 4294901760
          %2388 = vmatpush.msra.mxu0 %v2387
          %v2389 = vand.u32 %v1312, 4294901760
          %v2390 = vsub.f32 %v1312, %v2389
          %v2391 = vand.u32 %v2390, 4294901760
          %v2392 = vsub.f32 %v2390, %v2391
          %v2393 = vand.u32 %v2392, 4294901760
          %2394 = vmatpush.msra.mxu0 %v2393
          %v2395 = vand.u32 %v1265, 4294901760
          %2396 = vmatmul.f32.gmra.mxu0 %v2395
          %v2397 = vpop.f32.mrf.mxu0
          %v2398 = vadd.f32 %v2177, %v2397
          %v2399 = vand.u32 %v1267, 4294901760
          %2400 = vmatmul.f32.gmra.mxu0 %v2399
          %v2401 = vpop.f32.mrf.mxu0
          %v2402 = vadd.f32 %v2185, %v2401
          %v2403 = vand.u32 %v1269, 4294901760
          %2404 = vmatmul.f32.gmra.mxu0 %v2403
          %v2405 = vpop.f32.mrf.mxu0
          %v2406 = vadd.f32 %v2193, %v2405
          %v2407 = vand.u32 %v1271, 4294901760
          %2408 = vmatmul.f32.gmra.mxu0 %v2407
          %v2409 = vpop.f32.mrf.mxu0
          %v2410 = vadd.f32 %v2201, %v2409
          %v2411 = vand.u32 %v1273, 4294901760
          %2412 = vmatmul.f32.gmra.mxu0 %v2411
          %v2413 = vpop.f32.mrf.mxu0
          %v2414 = vadd.f32 %v2209, %v2413
          %v2415 = vand.u32 %v1275, 4294901760
          %2416 = vmatmul.f32.gmra.mxu0 %v2415
          %v2417 = vpop.f32.mrf.mxu0
          %v2418 = vadd.f32 %v2217, %v2417
          %v2419 = vand.u32 %v1277, 4294901760
          %2420 = vmatmul.f32.gmra.mxu0 %v2419
          %v2421 = vpop.f32.mrf.mxu0
          %v2422 = vadd.f32 %v2225, %v2421
          %v2423 = vand.u32 %v1279, 4294901760
          %2424 = vmatmul.f32.gmra.mxu0 %v2423
          %v2425 = vpop.f32.mrf.mxu0
          %v2426 = vadd.f32 %v2233, %v2425
          %v2427 = vand.u32 %v1281, 4294901760
          %2428 = vmatmul.f32.gmra.mxu0 %v2427
          %v2429 = vpop.f32.mrf.mxu0
          %v2430 = vadd.f32 %v2241, %v2429
          %v2431 = vand.u32 %v1283, 4294901760
          %2432 = vmatmul.f32.gmra.mxu0 %v2431
          %v2433 = vpop.f32.mrf.mxu0
          %v2434 = vadd.f32 %v2249, %v2433
          %v2435 = vand.u32 %v1285, 4294901760
          %2436 = vmatmul.f32.gmra.mxu0 %v2435
          %v2437 = vpop.f32.mrf.mxu0
          %v2438 = vadd.f32 %v2257, %v2437
          %v2439 = vand.u32 %v1287, 4294901760
          %2440 = vmatmul.f32.gmra.mxu0 %v2439
          %v2441 = vpop.f32.mrf.mxu0
          %v2442 = vadd.f32 %v2265, %v2441
          %v2443 = vand.u32 %v1289, 4294901760
          %2444 = vmatmul.f32.gmra.mxu0 %v2443
          %v2445 = vpop.f32.mrf.mxu0
          %v2446 = vadd.f32 %v2273, %v2445
          %v2447 = vand.u32 %v1291, 4294901760
          %2448 = vmatmul.f32.gmra.mxu0 %v2447
          %v2449 = vpop.f32.mrf.mxu0
          %v2450 = vadd.f32 %v2281, %v2449
          %v2451 = vand.u32 %v1293, 4294901760
          %2452 = vmatmul.f32.gmra.mxu0 %v2451
          %v2453 = vpop.f32.mrf.mxu0
          %v2454 = vadd.f32 %v2289, %v2453
          %v2455 = vand.u32 %v1295, 4294901760
          %2456 = vmatmul.f32.gmra.mxu0 %v2455
          %v2457 = vpop.f32.mrf.mxu0
          %v2458 = vadd.f32 %v2297, %v2457
          %2459 = vdwg.mxu0
          %v2460 = vand.u32 %v1327, 4294901760
          %v2461 = vsub.f32 %v1327, %v2460
          %2462 = vmatpush.msra.mxu0 %v2461
          %v2463 = vand.u32 %v1326, 4294901760
          %v2464 = vsub.f32 %v1326, %v2463
          %2465 = vmatpush.msra.mxu0 %v2464
          %v2466 = vand.u32 %v1325, 4294901760
          %v2467 = vsub.f32 %v1325, %v2466
          %2468 = vmatpush.msra.mxu0 %v2467
          %v2469 = vand.u32 %v1324, 4294901760
          %v2470 = vsub.f32 %v1324, %v2469
          %2471 = vmatpush.msra.mxu0 %v2470
          %v2472 = vand.u32 %v1323, 4294901760
          %v2473 = vsub.f32 %v1323, %v2472
          %2474 = vmatpush.msra.mxu0 %v2473
          %v2475 = vand.u32 %v1322, 4294901760
          %v2476 = vsub.f32 %v1322, %v2475
          %2477 = vmatpush.msra.mxu0 %v2476
          %v2478 = vand.u32 %v1321, 4294901760
          %v2479 = vsub.f32 %v1321, %v2478
          %2480 = vmatpush.msra.mxu0 %v2479
          %v2481 = vand.u32 %v1320, 4294901760
          %v2482 = vsub.f32 %v1320, %v2481
          %2483 = vmatpush.msra.mxu0 %v2482
          %v2484 = vand.u32 %v1319, 4294901760
          %v2485 = vsub.f32 %v1319, %v2484
          %2486 = vmatpush.msra.mxu0 %v2485
          %v2487 = vand.u32 %v1318, 4294901760
          %v2488 = vsub.f32 %v1318, %v2487
          %2489 = vmatpush.msra.mxu0 %v2488
          %v2490 = vand.u32 %v1317, 4294901760
          %v2491 = vsub.f32 %v1317, %v2490
          %2492 = vmatpush.msra.mxu0 %v2491
          %v2493 = vand.u32 %v1316, 4294901760
          %v2494 = vsub.f32 %v1316, %v2493
          %2495 = vmatpush.msra.mxu0 %v2494
          %v2496 = vand.u32 %v1315, 4294901760
          %v2497 = vsub.f32 %v1315, %v2496
          %2498 = vmatpush.msra.mxu0 %v2497
          %v2499 = vand.u32 %v1314, 4294901760
          %v2500 = vsub.f32 %v1314, %v2499
          %2501 = vmatpush.msra.mxu0 %v2500
          %v2502 = vand.u32 %v1313, 4294901760
          %v2503 = vsub.f32 %v1313, %v2502
          %2504 = vmatpush.msra.mxu0 %v2503
          %v2505 = vand.u32 %v1312, 4294901760
          %v2506 = vsub.f32 %v1312, %v2505
          %2507 = vmatpush.msra.mxu0 %v2506
          %v2508 = vand.u32 %v1265, 4294901760
          %v2509 = vsub.f32 %v1265, %v2508
          %2510 = vmatmul.f32.gmra.mxu0 %v2509
          %v2511 = vpop.f32.mrf.mxu0
          %v2512 = vadd.f32 %v2398, %v2511
          %v2513 = vand.u32 %v1267, 4294901760
          %v2514 = vsub.f32 %v1267, %v2513
          %2515 = vmatmul.f32.gmra.mxu0 %v2514
          %v2516 = vpop.f32.mrf.mxu0
          %v2517 = vadd.f32 %v2402, %v2516
          %v2518 = vand.u32 %v1269, 4294901760
          %v2519 = vsub.f32 %v1269, %v2518
          %2520 = vmatmul.f32.gmra.mxu0 %v2519
          %v2521 = vpop.f32.mrf.mxu0
          %v2522 = vadd.f32 %v2406, %v2521
          %v2523 = vand.u32 %v1271, 4294901760
          %v2524 = vsub.f32 %v1271, %v2523
          %2525 = vmatmul.f32.gmra.mxu0 %v2524
          %v2526 = vpop.f32.mrf.mxu0
          %v2527 = vadd.f32 %v2410, %v2526
          %v2528 = vand.u32 %v1273, 4294901760
          %v2529 = vsub.f32 %v1273, %v2528
          %2530 = vmatmul.f32.gmra.mxu0 %v2529
          %v2531 = vpop.f32.mrf.mxu0
          %v2532 = vadd.f32 %v2414, %v2531
          %v2533 = vand.u32 %v1275, 4294901760
          %v2534 = vsub.f32 %v1275, %v2533
          %2535 = vmatmul.f32.gmra.mxu0 %v2534
          %v2536 = vpop.f32.mrf.mxu0
          %v2537 = vadd.f32 %v2418, %v2536
          %v2538 = vand.u32 %v1277, 4294901760
          %v2539 = vsub.f32 %v1277, %v2538
          %2540 = vmatmul.f32.gmra.mxu0 %v2539
          %v2541 = vpop.f32.mrf.mxu0
          %v2542 = vadd.f32 %v2422, %v2541
          %v2543 = vand.u32 %v1279, 4294901760
          %v2544 = vsub.f32 %v1279, %v2543
          %2545 = vmatmul.f32.gmra.mxu0 %v2544
          %v2546 = vpop.f32.mrf.mxu0
          %v2547 = vadd.f32 %v2426, %v2546
          %v2548 = vand.u32 %v1281, 4294901760
          %v2549 = vsub.f32 %v1281, %v2548
          %2550 = vmatmul.f32.gmra.mxu0 %v2549
          %v2551 = vpop.f32.mrf.mxu0
          %v2552 = vadd.f32 %v2430, %v2551
          %v2553 = vand.u32 %v1283, 4294901760
          %v2554 = vsub.f32 %v1283, %v2553
          %2555 = vmatmul.f32.gmra.mxu0 %v2554
          %v2556 = vpop.f32.mrf.mxu0
          %v2557 = vadd.f32 %v2434, %v2556
          %v2558 = vand.u32 %v1285, 4294901760
          %v2559 = vsub.f32 %v1285, %v2558
          %2560 = vmatmul.f32.gmra.mxu0 %v2559
          %v2561 = vpop.f32.mrf.mxu0
          %v2562 = vadd.f32 %v2438, %v2561
          %v2563 = vand.u32 %v1287, 4294901760
          %v2564 = vsub.f32 %v1287, %v2563
          %2565 = vmatmul.f32.gmra.mxu0 %v2564
          %v2566 = vpop.f32.mrf.mxu0
          %v2567 = vadd.f32 %v2442, %v2566
          %v2568 = vand.u32 %v1289, 4294901760
          %v2569 = vsub.f32 %v1289, %v2568
          %2570 = vmatmul.f32.gmra.mxu0 %v2569
          %v2571 = vpop.f32.mrf.mxu0
          %v2572 = vadd.f32 %v2446, %v2571
          %v2573 = vand.u32 %v1291, 4294901760
          %v2574 = vsub.f32 %v1291, %v2573
          %2575 = vmatmul.f32.gmra.mxu0 %v2574
          %v2576 = vpop.f32.mrf.mxu0
          %v2577 = vadd.f32 %v2450, %v2576
          %v2578 = vand.u32 %v1293, 4294901760
          %v2579 = vsub.f32 %v1293, %v2578
          %2580 = vmatmul.f32.gmra.mxu0 %v2579
          %v2581 = vpop.f32.mrf.mxu0
          %v2582 = vadd.f32 %v2454, %v2581
          %v2583 = vand.u32 %v1295, 4294901760
          %v2584 = vsub.f32 %v1295, %v2583
          %2585 = vmatmul.f32.gmra.mxu0 %v2584
          %v2586 = vpop.f32.mrf.mxu0
          %v2587 = vadd.f32 %v2458, %v2586
          %2588 = vdwg.mxu0
          %v2589 = vand.u32 %v1327, 4294901760
          %2590 = vmatpush.msra.mxu0 %v2589
          %v2591 = vand.u32 %v1326, 4294901760
          %2592 = vmatpush.msra.mxu0 %v2591
          %v2593 = vand.u32 %v1325, 4294901760
          %2594 = vmatpush.msra.mxu0 %v2593
          %v2595 = vand.u32 %v1324, 4294901760
          %2596 = vmatpush.msra.mxu0 %v2595
          %v2597 = vand.u32 %v1323, 4294901760
          %2598 = vmatpush.msra.mxu0 %v2597
          %v2599 = vand.u32 %v1322, 4294901760
          %2600 = vmatpush.msra.mxu0 %v2599
          %v2601 = vand.u32 %v1321, 4294901760
          %2602 = vmatpush.msra.mxu0 %v2601
          %v2603 = vand.u32 %v1320, 4294901760
          %2604 = vmatpush.msra.mxu0 %v2603
          %v2605 = vand.u32 %v1319, 4294901760
          %2606 = vmatpush.msra.mxu0 %v2605
          %v2607 = vand.u32 %v1318, 4294901760
          %2608 = vmatpush.msra.mxu0 %v2607
          %v2609 = vand.u32 %v1317, 4294901760
          %2610 = vmatpush.msra.mxu0 %v2609
          %v2611 = vand.u32 %v1316, 4294901760
          %2612 = vmatpush.msra.mxu0 %v2611
          %v2613 = vand.u32 %v1315, 4294901760
          %2614 = vmatpush.msra.mxu0 %v2613
          %v2615 = vand.u32 %v1314, 4294901760
          %2616 = vmatpush.msra.mxu0 %v2615
          %v2617 = vand.u32 %v1313, 4294901760
          %2618 = vmatpush.msra.mxu0 %v2617
          %v2619 = vand.u32 %v1312, 4294901760
          %2620 = vmatpush.msra.mxu0 %v2619
          %v2621 = vand.u32 %v1265, 4294901760
          %v2622 = vsub.f32 %v1265, %v2621
          %v2623 = vand.u32 %v2622, 4294901760
          %2624 = vmatmul.f32.gmra.mxu0 %v2623
          %v2625 = vpop.f32.mrf.mxu0
          %v2626 = vadd.f32 %v2512, %v2625
          %v2627 = vand.u32 %v1267, 4294901760
          %v2628 = vsub.f32 %v1267, %v2627
          %v2629 = vand.u32 %v2628, 4294901760
          %2630 = vmatmul.f32.gmra.mxu0 %v2629
          %v2631 = vpop.f32.mrf.mxu0
          %v2632 = vadd.f32 %v2517, %v2631
          %v2633 = vand.u32 %v1269, 4294901760
          %v2634 = vsub.f32 %v1269, %v2633
          %v2635 = vand.u32 %v2634, 4294901760
          %2636 = vmatmul.f32.gmra.mxu0 %v2635
          %v2637 = vpop.f32.mrf.mxu0
          %v2638 = vadd.f32 %v2522, %v2637
          %v2639 = vand.u32 %v1271, 4294901760
          %v2640 = vsub.f32 %v1271, %v2639
          %v2641 = vand.u32 %v2640, 4294901760
          %2642 = vmatmul.f32.gmra.mxu0 %v2641
          %v2643 = vpop.f32.mrf.mxu0
          %v2644 = vadd.f32 %v2527, %v2643
          %v2645 = vand.u32 %v1273, 4294901760
          %v2646 = vsub.f32 %v1273, %v2645
          %v2647 = vand.u32 %v2646, 4294901760
          %2648 = vmatmul.f32.gmra.mxu0 %v2647
          %v2649 = vpop.f32.mrf.mxu0
          %v2650 = vadd.f32 %v2532, %v2649
          %v2651 = vand.u32 %v1275, 4294901760
          %v2652 = vsub.f32 %v1275, %v2651
          %v2653 = vand.u32 %v2652, 4294901760
          %2654 = vmatmul.f32.gmra.mxu0 %v2653
          %v2655 = vpop.f32.mrf.mxu0
          %v2656 = vadd.f32 %v2537, %v2655
          %v2657 = vand.u32 %v1277, 4294901760
          %v2658 = vsub.f32 %v1277, %v2657
          %v2659 = vand.u32 %v2658, 4294901760
          %2660 = vmatmul.f32.gmra.mxu0 %v2659
          %v2661 = vpop.f32.mrf.mxu0
          %v2662 = vadd.f32 %v2542, %v2661
          %v2663 = vand.u32 %v1279, 4294901760
          %v2664 = vsub.f32 %v1279, %v2663
          %v2665 = vand.u32 %v2664, 4294901760
          %2666 = vmatmul.f32.gmra.mxu0 %v2665
          %v2667 = vpop.f32.mrf.mxu0
          %v2668 = vadd.f32 %v2547, %v2667
          %v2669 = vand.u32 %v1281, 4294901760
          %v2670 = vsub.f32 %v1281, %v2669
          %v2671 = vand.u32 %v2670, 4294901760
          %2672 = vmatmul.f32.gmra.mxu0 %v2671
          %v2673 = vpop.f32.mrf.mxu0
          %v2674 = vadd.f32 %v2552, %v2673
          %v2675 = vand.u32 %v1283, 4294901760
          %v2676 = vsub.f32 %v1283, %v2675
          %v2677 = vand.u32 %v2676, 4294901760
          %2678 = vmatmul.f32.gmra.mxu0 %v2677
          %v2679 = vpop.f32.mrf.mxu0
          %v2680 = vadd.f32 %v2557, %v2679
          %v2681 = vand.u32 %v1285, 4294901760
          %v2682 = vsub.f32 %v1285, %v2681
          %v2683 = vand.u32 %v2682, 4294901760
          %2684 = vmatmul.f32.gmra.mxu0 %v2683
          %v2685 = vpop.f32.mrf.mxu0
          %v2686 = vadd.f32 %v2562, %v2685
          %v2687 = vand.u32 %v1287, 4294901760
          %v2688 = vsub.f32 %v1287, %v2687
          %v2689 = vand.u32 %v2688, 4294901760
          %2690 = vmatmul.f32.gmra.mxu0 %v2689
          %v2691 = vpop.f32.mrf.mxu0
          %v2692 = vadd.f32 %v2567, %v2691
          %v2693 = vand.u32 %v1289, 4294901760
          %v2694 = vsub.f32 %v1289, %v2693
          %v2695 = vand.u32 %v2694, 4294901760
          %2696 = vmatmul.f32.gmra.mxu0 %v2695
          %v2697 = vpop.f32.mrf.mxu0
          %v2698 = vadd.f32 %v2572, %v2697
          %v2699 = vand.u32 %v1291, 4294901760
          %v2700 = vsub.f32 %v1291, %v2699
          %v2701 = vand.u32 %v2700, 4294901760
          %2702 = vmatmul.f32.gmra.mxu0 %v2701
          %v2703 = vpop.f32.mrf.mxu0
          %v2704 = vadd.f32 %v2577, %v2703
          %v2705 = vand.u32 %v1293, 4294901760
          %v2706 = vsub.f32 %v1293, %v2705
          %v2707 = vand.u32 %v2706, 4294901760
          %2708 = vmatmul.f32.gmra.mxu0 %v2707
          %v2709 = vpop.f32.mrf.mxu0
          %v2710 = vadd.f32 %v2582, %v2709
          %v2711 = vand.u32 %v1295, 4294901760
          %v2712 = vsub.f32 %v1295, %v2711
          %v2713 = vand.u32 %v2712, 4294901760
          %2714 = vmatmul.f32.gmra.mxu0 %v2713
          %v2715 = vpop.f32.mrf.mxu0
          %v2716 = vadd.f32 %v2587, %v2715
          %2717 = vdwg.mxu0
          %v2718 = vand.u32 %v1327, 4294901760
          %v2719 = vsub.f32 %v1327, %v2718
          %v2720 = vand.u32 %v2719, 4294901760
          %2721 = vmatpush.msra.mxu0 %v2720
          %v2722 = vand.u32 %v1326, 4294901760
          %v2723 = vsub.f32 %v1326, %v2722
          %v2724 = vand.u32 %v2723, 4294901760
          %2725 = vmatpush.msra.mxu0 %v2724
          %v2726 = vand.u32 %v1325, 4294901760
          %v2727 = vsub.f32 %v1325, %v2726
          %v2728 = vand.u32 %v2727, 4294901760
          %2729 = vmatpush.msra.mxu0 %v2728
          %v2730 = vand.u32 %v1324, 4294901760
          %v2731 = vsub.f32 %v1324, %v2730
          %v2732 = vand.u32 %v2731, 4294901760
          %2733 = vmatpush.msra.mxu0 %v2732
          %v2734 = vand.u32 %v1323, 4294901760
          %v2735 = vsub.f32 %v1323, %v2734
          %v2736 = vand.u32 %v2735, 4294901760
          %2737 = vmatpush.msra.mxu0 %v2736
          %v2738 = vand.u32 %v1322, 4294901760
          %v2739 = vsub.f32 %v1322, %v2738
          %v2740 = vand.u32 %v2739, 4294901760
          %2741 = vmatpush.msra.mxu0 %v2740
          %v2742 = vand.u32 %v1321, 4294901760
          %v2743 = vsub.f32 %v1321, %v2742
          %v2744 = vand.u32 %v2743, 4294901760
          %2745 = vmatpush.msra.mxu0 %v2744
          %v2746 = vand.u32 %v1320, 4294901760
          %v2747 = vsub.f32 %v1320, %v2746
          %v2748 = vand.u32 %v2747, 4294901760
          %2749 = vmatpush.msra.mxu0 %v2748
          %v2750 = vand.u32 %v1319, 4294901760
          %v2751 = vsub.f32 %v1319, %v2750
          %v2752 = vand.u32 %v2751, 4294901760
          %2753 = vmatpush.msra.mxu0 %v2752
          %v2754 = vand.u32 %v1318, 4294901760
          %v2755 = vsub.f32 %v1318, %v2754
          %v2756 = vand.u32 %v2755, 4294901760
          %2757 = vmatpush.msra.mxu0 %v2756
          %v2758 = vand.u32 %v1317, 4294901760
          %v2759 = vsub.f32 %v1317, %v2758
          %v2760 = vand.u32 %v2759, 4294901760
          %2761 = vmatpush.msra.mxu0 %v2760
          %v2762 = vand.u32 %v1316, 4294901760
          %v2763 = vsub.f32 %v1316, %v2762
          %v2764 = vand.u32 %v2763, 4294901760
          %2765 = vmatpush.msra.mxu0 %v2764
          %v2766 = vand.u32 %v1315, 4294901760
          %v2767 = vsub.f32 %v1315, %v2766
          %v2768 = vand.u32 %v2767, 4294901760
          %2769 = vmatpush.msra.mxu0 %v2768
          %v2770 = vand.u32 %v1314, 4294901760
          %v2771 = vsub.f32 %v1314, %v2770
          %v2772 = vand.u32 %v2771, 4294901760
          %2773 = vmatpush.msra.mxu0 %v2772
          %v2774 = vand.u32 %v1313, 4294901760
          %v2775 = vsub.f32 %v1313, %v2774
          %v2776 = vand.u32 %v2775, 4294901760
          %2777 = vmatpush.msra.mxu0 %v2776
          %v2778 = vand.u32 %v1312, 4294901760
          %v2779 = vsub.f32 %v1312, %v2778
          %v2780 = vand.u32 %v2779, 4294901760
          %2781 = vmatpush.msra.mxu0 %v2780
          %v2782 = vand.u32 %v1265, 4294901760
          %2783 = vmatmul.f32.gmra.mxu0 %v2782
          %v2784 = vpop.f32.mrf.mxu0
          %v2785 = vadd.f32 %v2626, %v2784
          %v2786 = vand.u32 %v1267, 4294901760
          %2787 = vmatmul.f32.gmra.mxu0 %v2786
          %v2788 = vpop.f32.mrf.mxu0
          %v2789 = vadd.f32 %v2632, %v2788
          %v2790 = vand.u32 %v1269, 4294901760
          %2791 = vmatmul.f32.gmra.mxu0 %v2790
          %v2792 = vpop.f32.mrf.mxu0
          %v2793 = vadd.f32 %v2638, %v2792
          %v2794 = vand.u32 %v1271, 4294901760
          %2795 = vmatmul.f32.gmra.mxu0 %v2794
          %v2796 = vpop.f32.mrf.mxu0
          %v2797 = vadd.f32 %v2644, %v2796
          %v2798 = vand.u32 %v1273, 4294901760
          %2799 = vmatmul.f32.gmra.mxu0 %v2798
          %v2800 = vpop.f32.mrf.mxu0
          %v2801 = vadd.f32 %v2650, %v2800
          %v2802 = vand.u32 %v1275, 4294901760
          %2803 = vmatmul.f32.gmra.mxu0 %v2802
          %v2804 = vpop.f32.mrf.mxu0
          %v2805 = vadd.f32 %v2656, %v2804
          %v2806 = vand.u32 %v1277, 4294901760
          %2807 = vmatmul.f32.gmra.mxu0 %v2806
          %v2808 = vpop.f32.mrf.mxu0
          %v2809 = vadd.f32 %v2662, %v2808
          %v2810 = vand.u32 %v1279, 4294901760
          %2811 = vmatmul.f32.gmra.mxu0 %v2810
          %v2812 = vpop.f32.mrf.mxu0
          %v2813 = vadd.f32 %v2668, %v2812
          %v2814 = vand.u32 %v1281, 4294901760
          %2815 = vmatmul.f32.gmra.mxu0 %v2814
          %v2816 = vpop.f32.mrf.mxu0
          %v2817 = vadd.f32 %v2674, %v2816
          %v2818 = vand.u32 %v1283, 4294901760
          %2819 = vmatmul.f32.gmra.mxu0 %v2818
          %v2820 = vpop.f32.mrf.mxu0
          %v2821 = vadd.f32 %v2680, %v2820
          %v2822 = vand.u32 %v1285, 4294901760
          %2823 = vmatmul.f32.gmra.mxu0 %v2822
          %v2824 = vpop.f32.mrf.mxu0
          %v2825 = vadd.f32 %v2686, %v2824
          %v2826 = vand.u32 %v1287, 4294901760
          %2827 = vmatmul.f32.gmra.mxu0 %v2826
          %v2828 = vpop.f32.mrf.mxu0
          %v2829 = vadd.f32 %v2692, %v2828
          %v2830 = vand.u32 %v1289, 4294901760
          %2831 = vmatmul.f32.gmra.mxu0 %v2830
          %v2832 = vpop.f32.mrf.mxu0
          %v2833 = vadd.f32 %v2698, %v2832
          %v2834 = vand.u32 %v1291, 4294901760
          %2835 = vmatmul.f32.gmra.mxu0 %v2834
          %v2836 = vpop.f32.mrf.mxu0
          %v2837 = vadd.f32 %v2704, %v2836
          %v2838 = vand.u32 %v1293, 4294901760
          %2839 = vmatmul.f32.gmra.mxu0 %v2838
          %v2840 = vpop.f32.mrf.mxu0
          %v2841 = vadd.f32 %v2710, %v2840
          %v2842 = vand.u32 %v1295, 4294901760
          %2843 = vmatmul.f32.gmra.mxu0 %v2842
          %v2844 = vpop.f32.mrf.mxu0
          %v2845 = vadd.f32 %v2716, %v2844
          %2846 = vdwg.mxu0
          %v2847 = vand.u32 %v1327, 4294901760
          %2848 = vmatpush.msra.mxu0 %v2847
          %v2849 = vand.u32 %v1326, 4294901760
          %2850 = vmatpush.msra.mxu0 %v2849
          %v2851 = vand.u32 %v1325, 4294901760
          %2852 = vmatpush.msra.mxu0 %v2851
          %v2853 = vand.u32 %v1324, 4294901760
          %2854 = vmatpush.msra.mxu0 %v2853
          %v2855 = vand.u32 %v1323, 4294901760
          %2856 = vmatpush.msra.mxu0 %v2855
          %v2857 = vand.u32 %v1322, 4294901760
          %2858 = vmatpush.msra.mxu0 %v2857
          %v2859 = vand.u32 %v1321, 4294901760
          %2860 = vmatpush.msra.mxu0 %v2859
          %v2861 = vand.u32 %v1320, 4294901760
          %2862 = vmatpush.msra.mxu0 %v2861
          %v2863 = vand.u32 %v1319, 4294901760
          %2864 = vmatpush.msra.mxu0 %v2863
          %v2865 = vand.u32 %v1318, 4294901760
          %2866 = vmatpush.msra.mxu0 %v2865
          %v2867 = vand.u32 %v1317, 4294901760
          %2868 = vmatpush.msra.mxu0 %v2867
          %v2869 = vand.u32 %v1316, 4294901760
          %2870 = vmatpush.msra.mxu0 %v2869
          %v2871 = vand.u32 %v1315, 4294901760
          %2872 = vmatpush.msra.mxu0 %v2871
          %v2873 = vand.u32 %v1314, 4294901760
          %2874 = vmatpush.msra.mxu0 %v2873
          %v2875 = vand.u32 %v1313, 4294901760
          %2876 = vmatpush.msra.mxu0 %v2875
          %v2877 = vand.u32 %v1312, 4294901760
          %2878 = vmatpush.msra.mxu0 %v2877
          %v2879 = vand.u32 %v1265, 4294901760
          %2880 = vmatmul.f32.gmra.mxu0 %v2879
          %v2881 = vpop.f32.mrf.mxu0
          %v2882 = vadd.f32 %v2785, %v2881
          %v2883 = vand.u32 %v1267, 4294901760
          %2884 = vmatmul.f32.gmra.mxu0 %v2883
          %v2885 = vpop.f32.mrf.mxu0
          %v2886 = vadd.f32 %v2789, %v2885
          %v2887 = vand.u32 %v1269, 4294901760
          %2888 = vmatmul.f32.gmra.mxu0 %v2887
          %v2889 = vpop.f32.mrf.mxu0
          %v2890 = vadd.f32 %v2793, %v2889
          %v2891 = vand.u32 %v1271, 4294901760
          %2892 = vmatmul.f32.gmra.mxu0 %v2891
          %v2893 = vpop.f32.mrf.mxu0
          %v2894 = vadd.f32 %v2797, %v2893
          %v2895 = vand.u32 %v1273, 4294901760
          %2896 = vmatmul.f32.gmra.mxu0 %v2895
          %v2897 = vpop.f32.mrf.mxu0
          %v2898 = vadd.f32 %v2801, %v2897
          %v2899 = vand.u32 %v1275, 4294901760
          %2900 = vmatmul.f32.gmra.mxu0 %v2899
          %v2901 = vpop.f32.mrf.mxu0
          %v2902 = vadd.f32 %v2805, %v2901
          %v2903 = vand.u32 %v1277, 4294901760
          %2904 = vmatmul.f32.gmra.mxu0 %v2903
          %v2905 = vpop.f32.mrf.mxu0
          %v2906 = vadd.f32 %v2809, %v2905
          %v2907 = vand.u32 %v1279, 4294901760
          %2908 = vmatmul.f32.gmra.mxu0 %v2907
          %v2909 = vpop.f32.mrf.mxu0
          %v2910 = vadd.f32 %v2813, %v2909
          %v2911 = vand.u32 %v1281, 4294901760
          %2912 = vmatmul.f32.gmra.mxu0 %v2911
          %v2913 = vpop.f32.mrf.mxu0
          %v2914 = vadd.f32 %v2817, %v2913
          %v2915 = vand.u32 %v1283, 4294901760
          %2916 = vmatmul.f32.gmra.mxu0 %v2915
          %v2917 = vpop.f32.mrf.mxu0
          %v2918 = vadd.f32 %v2821, %v2917
          %v2919 = vand.u32 %v1285, 4294901760
          %2920 = vmatmul.f32.gmra.mxu0 %v2919
          %v2921 = vpop.f32.mrf.mxu0
          %v2922 = vadd.f32 %v2825, %v2921
          %v2923 = vand.u32 %v1287, 4294901760
          %2924 = vmatmul.f32.gmra.mxu0 %v2923
          %v2925 = vpop.f32.mrf.mxu0
          %v2926 = vadd.f32 %v2829, %v2925
          %v2927 = vand.u32 %v1289, 4294901760
          %2928 = vmatmul.f32.gmra.mxu0 %v2927
          %v2929 = vpop.f32.mrf.mxu0
          %v2930 = vadd.f32 %v2833, %v2929
          %v2931 = vand.u32 %v1291, 4294901760
          %2932 = vmatmul.f32.gmra.mxu0 %v2931
          %v2933 = vpop.f32.mrf.mxu0
          %v2934 = vadd.f32 %v2837, %v2933
          %v2935 = vand.u32 %v1293, 4294901760
          %2936 = vmatmul.f32.gmra.mxu0 %v2935
          %v2937 = vpop.f32.mrf.mxu0
          %v2938 = vadd.f32 %v2841, %v2937
          %v2939 = vand.u32 %v1295, 4294901760
          %2940 = vmatmul.f32.gmra.mxu0 %v2939
          %v2941 = vpop.f32.mrf.mxu0
          %v2942 = vadd.f32 %v2845, %v2941
          %2943 = vdwg.mxu0
          %p2944 = scmp.lt.s32.totalorder %s25, 2
          // Predicated region
          $region61: #{tpu_custom_call.1} parent=59 // pred_check
            %p2945 = pneg %p2944
          $region62: #{tpu_custom_call.1} parent=59 // pred_check_branch
            %2947 = sbr.rel (%p2945) target = $region64
          $region63: #{tpu_custom_call.1} parent=59 // pred_region
            %v2948 = vmax.f32 %v2882, 0.0
            %v2949 = vmax.f32 %v2886, 0.0
            %v2950 = vmax.f32 %v2890, 0.0
            %v2951 = vmax.f32 %v2894, 0.0
            %v2952 = vmax.f32 %v2898, 0.0
            %v2953 = vmax.f32 %v2902, 0.0
            %v2954 = vmax.f32 %v2906, 0.0
            %v2955 = vmax.f32 %v2910, 0.0
            %v2956 = vmax.f32 %v2914, 0.0
            %v2957 = vmax.f32 %v2918, 0.0
            %v2958 = vmax.f32 %v2922, 0.0
            %v2959 = vmax.f32 %v2926, 0.0
            %v2960 = vmax.f32 %v2930, 0.0
            %v2961 = vmax.f32 %v2934, 0.0
            %v2962 = vmax.f32 %v2938, 0.0
            %v2963 = vmax.f32 %v2942, 0.0
            %v2964 = vmul.f32 %v2948, %v2948
            %v2965 = vmul.f32 %v2949, %v2949
            %v2966 = vmul.f32 %v2950, %v2950
            %v2967 = vmul.f32 %v2951, %v2951
            %v2968 = vmul.f32 %v2952, %v2952
            %v2969 = vmul.f32 %v2953, %v2953
            %v2970 = vmul.f32 %v2954, %v2954
            %v2971 = vmul.f32 %v2955, %v2955
            %v2972 = vmul.f32 %v2956, %v2956
            %v2973 = vmul.f32 %v2957, %v2957
            %v2974 = vmul.f32 %v2958, %v2958
            %v2975 = vmul.f32 %v2959, %v2959
            %v2976 = vmul.f32 %v2960, %v2960
            %v2977 = vmul.f32 %v2961, %v2961
            %v2978 = vmul.f32 %v2962, %v2962
            %v2979 = vmul.f32 %v2963, %v2963
            %2980 = vadd.xlane.f32.xlu0 %v2964
            %v2981 = vpop.xlane.xlu0 %2980
            %2982 = vadd.xlane.f32.xlu0 %v2965
            %v2983 = vpop.xlane.xlu0 %2982
            %2984 = vadd.xlane.f32.xlu0 %v2966
            %v2985 = vpop.xlane.xlu0 %2984
            %2986 = vadd.xlane.f32.xlu0 %v2967
            %v2987 = vpop.xlane.xlu0 %2986
            %2988 = vadd.xlane.f32.xlu0 %v2968
            %v2989 = vpop.xlane.xlu0 %2988
            %2990 = vadd.xlane.f32.xlu0 %v2969
            %v2991 = vpop.xlane.xlu0 %2990
            %2992 = vadd.xlane.f32.xlu0 %v2970
            %v2993 = vpop.xlane.xlu0 %2992
            %2994 = vadd.xlane.f32.xlu0 %v2971
            %v2995 = vpop.xlane.xlu0 %2994
            %2996 = vadd.xlane.f32.xlu0 %v2972
            %v2997 = vpop.xlane.xlu0 %2996
            %2998 = vadd.xlane.f32.xlu0 %v2973
            %v2999 = vpop.xlane.xlu0 %2998
            %3000 = vadd.xlane.f32.xlu0 %v2974
            %v3001 = vpop.xlane.xlu0 %3000
            %3002 = vadd.xlane.f32.xlu0 %v2975
            %v3003 = vpop.xlane.xlu0 %3002
            %3004 = vadd.xlane.f32.xlu0 %v2976
            %v3005 = vpop.xlane.xlu0 %3004
            %3006 = vadd.xlane.f32.xlu0 %v2977
            %v3007 = vpop.xlane.xlu0 %3006
            %3008 = vadd.xlane.f32.xlu0 %v2978
            %v3009 = vpop.xlane.xlu0 %3008
            %3010 = vadd.xlane.f32.xlu0 %v2979
            %v3011 = vpop.xlane.xlu0 %3010
            %v3012 = vrsqrt.pop %v2981
            %v3013 = vmul.f32 %v3012, %v2981
            %v3014 = vmul.f32 %v3013, %v3012
            %v3015 = vmul.f32 0.5, %v3014
            %v3016 = vsub.f32 1.5, %v3015
            %v3017 = vmul.f32 %v3012, %v3016
            %v3018 = vmul.f32 %v2981, %v3017
            %vm3019 = vcmp.eq.f32.partialorder %v2981, inf
            %v3020 = vsel %vm3019, %v2981, %v3018
            %vm3021 = vcmp.eq.f32.partialorder %v2981, 0.0
            %v3022 = vand.u32 %v2981, 2147483648
            %v3023 = vsel %vm3021, %v3022, %v3020
            %v3024 = vrsqrt.pop %v2983
            %v3025 = vmul.f32 %v3024, %v2983
            %v3026 = vmul.f32 %v3025, %v3024
            %v3027 = vmul.f32 0.5, %v3026
            %v3028 = vsub.f32 1.5, %v3027
            %v3029 = vmul.f32 %v3024, %v3028
            %v3030 = vmul.f32 %v2983, %v3029
            %vm3031 = vcmp.eq.f32.partialorder %v2983, inf
            %v3032 = vsel %vm3031, %v2983, %v3030
            %vm3033 = vcmp.eq.f32.partialorder %v2983, 0.0
            %v3034 = vand.u32 %v2983, 2147483648
            %v3035 = vsel %vm3033, %v3034, %v3032
            %v3036 = vrsqrt.pop %v2985
            %v3037 = vmul.f32 %v3036, %v2985
            %v3038 = vmul.f32 %v3037, %v3036
            %v3039 = vmul.f32 0.5, %v3038
            %v3040 = vsub.f32 1.5, %v3039
            %v3041 = vmul.f32 %v3036, %v3040
            %v3042 = vmul.f32 %v2985, %v3041
            %vm3043 = vcmp.eq.f32.partialorder %v2985, inf
            %v3044 = vsel %vm3043, %v2985, %v3042
            %vm3045 = vcmp.eq.f32.partialorder %v2985, 0.0
            %v3046 = vand.u32 %v2985, 2147483648
            %v3047 = vsel %vm3045, %v3046, %v3044
            %v3048 = vrsqrt.pop %v2987
            %v3049 = vmul.f32 %v3048, %v2987
            %v3050 = vmul.f32 %v3049, %v3048
            %v3051 = vmul.f32 0.5, %v3050
            %v3052 = vsub.f32 1.5, %v3051
            %v3053 = vmul.f32 %v3048, %v3052
            %v3054 = vmul.f32 %v2987, %v3053
            %vm3055 = vcmp.eq.f32.partialorder %v2987, inf
            %v3056 = vsel %vm3055, %v2987, %v3054
            %vm3057 = vcmp.eq.f32.partialorder %v2987, 0.0
            %v3058 = vand.u32 %v2987, 2147483648
            %v3059 = vsel %vm3057, %v3058, %v3056
            %v3060 = vrsqrt.pop %v2989
            %v3061 = vmul.f32 %v3060, %v2989
            %v3062 = vmul.f32 %v3061, %v3060
            %v3063 = vmul.f32 0.5, %v3062
            %v3064 = vsub.f32 1.5, %v3063
            %v3065 = vmul.f32 %v3060, %v3064
            %v3066 = vmul.f32 %v2989, %v3065
            %vm3067 = vcmp.eq.f32.partialorder %v2989, inf
            %v3068 = vsel %vm3067, %v2989, %v3066
            %vm3069 = vcmp.eq.f32.partialorder %v2989, 0.0
            %v3070 = vand.u32 %v2989, 2147483648
            %v3071 = vsel %vm3069, %v3070, %v3068
            %v3072 = vrsqrt.pop %v2991
            %v3073 = vmul.f32 %v3072, %v2991
            %v3074 = vmul.f32 %v3073, %v3072
            %v3075 = vmul.f32 0.5, %v3074
            %v3076 = vsub.f32 1.5, %v3075
            %v3077 = vmul.f32 %v3072, %v3076
            %v3078 = vmul.f32 %v2991, %v3077
            %vm3079 = vcmp.eq.f32.partialorder %v2991, inf
            %v3080 = vsel %vm3079, %v2991, %v3078
            %vm3081 = vcmp.eq.f32.partialorder %v2991, 0.0
            %v3082 = vand.u32 %v2991, 2147483648
            %v3083 = vsel %vm3081, %v3082, %v3080
            %v3084 = vrsqrt.pop %v2993
            %v3085 = vmul.f32 %v3084, %v2993
            %v3086 = vmul.f32 %v3085, %v3084
            %v3087 = vmul.f32 0.5, %v3086
            %v3088 = vsub.f32 1.5, %v3087
            %v3089 = vmul.f32 %v3084, %v3088
            %v3090 = vmul.f32 %v2993, %v3089
            %vm3091 = vcmp.eq.f32.partialorder %v2993, inf
            %v3092 = vsel %vm3091, %v2993, %v3090
            %vm3093 = vcmp.eq.f32.partialorder %v2993, 0.0
            %v3094 = vand.u32 %v2993, 2147483648
            %v3095 = vsel %vm3093, %v3094, %v3092
            %v3096 = vrsqrt.pop %v2995
            %v3097 = vmul.f32 %v3096, %v2995
            %v3098 = vmul.f32 %v3097, %v3096
            %v3099 = vmul.f32 0.5, %v3098
            %v3100 = vsub.f32 1.5, %v3099
            %v3101 = vmul.f32 %v3096, %v3100
            %v3102 = vmul.f32 %v2995, %v3101
            %vm3103 = vcmp.eq.f32.partialorder %v2995, inf
            %v3104 = vsel %vm3103, %v2995, %v3102
            %vm3105 = vcmp.eq.f32.partialorder %v2995, 0.0
            %v3106 = vand.u32 %v2995, 2147483648
            %v3107 = vsel %vm3105, %v3106, %v3104
            %v3108 = vrsqrt.pop %v2997
            %v3109 = vmul.f32 %v3108, %v2997
            %v3110 = vmul.f32 %v3109, %v3108
            %v3111 = vmul.f32 0.5, %v3110
            %v3112 = vsub.f32 1.5, %v3111
            %v3113 = vmul.f32 %v3108, %v3112
            %v3114 = vmul.f32 %v2997, %v3113
            %vm3115 = vcmp.eq.f32.partialorder %v2997, inf
            %v3116 = vsel %vm3115, %v2997, %v3114
            %vm3117 = vcmp.eq.f32.partialorder %v2997, 0.0
            %v3118 = vand.u32 %v2997, 2147483648
            %v3119 = vsel %vm3117, %v3118, %v3116
            %v3120 = vrsqrt.pop %v2999
            %v3121 = vmul.f32 %v3120, %v2999
            %v3122 = vmul.f32 %v3121, %v3120
            %v3123 = vmul.f32 0.5, %v3122
            %v3124 = vsub.f32 1.5, %v3123
            %v3125 = vmul.f32 %v3120, %v3124
            %v3126 = vmul.f32 %v2999, %v3125
            %vm3127 = vcmp.eq.f32.partialorder %v2999, inf
            %v3128 = vsel %vm3127, %v2999, %v3126
            %vm3129 = vcmp.eq.f32.partialorder %v2999, 0.0
            %v3130 = vand.u32 %v2999, 2147483648
            %v3131 = vsel %vm3129, %v3130, %v3128
            %v3132 = vrsqrt.pop %v3001
            %v3133 = vmul.f32 %v3132, %v3001
            %v3134 = vmul.f32 %v3133, %v3132
            %v3135 = vmul.f32 0.5, %v3134
            %v3136 = vsub.f32 1.5, %v3135
            %v3137 = vmul.f32 %v3132, %v3136
            %v3138 = vmul.f32 %v3001, %v3137
            %vm3139 = vcmp.eq.f32.partialorder %v3001, inf
            %v3140 = vsel %vm3139, %v3001, %v3138
            %vm3141 = vcmp.eq.f32.partialorder %v3001, 0.0
            %v3142 = vand.u32 %v3001, 2147483648
            %v3143 = vsel %vm3141, %v3142, %v3140
            %v3144 = vrsqrt.pop %v3003
            %v3145 = vmul.f32 %v3144, %v3003
            %v3146 = vmul.f32 %v3145, %v3144
            %v3147 = vmul.f32 0.5, %v3146
            %v3148 = vsub.f32 1.5, %v3147
            %v3149 = vmul.f32 %v3144, %v3148
            %v3150 = vmul.f32 %v3003, %v3149
            %vm3151 = vcmp.eq.f32.partialorder %v3003, inf
            %v3152 = vsel %vm3151, %v3003, %v3150
            %vm3153 = vcmp.eq.f32.partialorder %v3003, 0.0
            %v3154 = vand.u32 %v3003, 2147483648
            %v3155 = vsel %vm3153, %v3154, %v3152
            %v3156 = vrsqrt.pop %v3005
            %v3157 = vmul.f32 %v3156, %v3005
            %v3158 = vmul.f32 %v3157, %v3156
            %v3159 = vmul.f32 0.5, %v3158
            %v3160 = vsub.f32 1.5, %v3159
            %v3161 = vmul.f32 %v3156, %v3160
            %v3162 = vmul.f32 %v3005, %v3161
            %vm3163 = vcmp.eq.f32.partialorder %v3005, inf
            %v3164 = vsel %vm3163, %v3005, %v3162
            %vm3165 = vcmp.eq.f32.partialorder %v3005, 0.0
            %v3166 = vand.u32 %v3005, 2147483648
            %v3167 = vsel %vm3165, %v3166, %v3164
            %v3168 = vrsqrt.pop %v3007
            %v3169 = vmul.f32 %v3168, %v3007
            %v3170 = vmul.f32 %v3169, %v3168
            %v3171 = vmul.f32 0.5, %v3170
            %v3172 = vsub.f32 1.5, %v3171
            %v3173 = vmul.f32 %v3168, %v3172
            %v3174 = vmul.f32 %v3007, %v3173
            %vm3175 = vcmp.eq.f32.partialorder %v3007, inf
            %v3176 = vsel %vm3175, %v3007, %v3174
            %vm3177 = vcmp.eq.f32.partialorder %v3007, 0.0
            %v3178 = vand.u32 %v3007, 2147483648
            %v3179 = vsel %vm3177, %v3178, %v3176
            %v3180 = vrsqrt.pop %v3009
            %v3181 = vmul.f32 %v3180, %v3009
            %v3182 = vmul.f32 %v3181, %v3180
            %v3183 = vmul.f32 0.5, %v3182
            %v3184 = vsub.f32 1.5, %v3183
            %v3185 = vmul.f32 %v3180, %v3184
            %v3186 = vmul.f32 %v3009, %v3185
            %vm3187 = vcmp.eq.f32.partialorder %v3009, inf
            %v3188 = vsel %vm3187, %v3009, %v3186
            %vm3189 = vcmp.eq.f32.partialorder %v3009, 0.0
            %v3190 = vand.u32 %v3009, 2147483648
            %v3191 = vsel %vm3189, %v3190, %v3188
            %v3192 = vrsqrt.pop %v3011
            %v3193 = vmul.f32 %v3192, %v3011
            %v3194 = vmul.f32 %v3193, %v3192
            %v3195 = vmul.f32 0.5, %v3194
            %v3196 = vsub.f32 1.5, %v3195
            %v3197 = vmul.f32 %v3192, %v3196
            %v3198 = vmul.f32 %v3011, %v3197
            %vm3199 = vcmp.eq.f32.partialorder %v3011, inf
            %v3200 = vsel %vm3199, %v3011, %v3198
            %vm3201 = vcmp.eq.f32.partialorder %v3011, 0.0
            %v3202 = vand.u32 %v3011, 2147483648
            %v3203 = vsel %vm3201, %v3202, %v3200
            %v3204 = vadd.f32 %v3023, 1e-08
            %v3205 = vadd.f32 %v3035, 1e-08
            %v3206 = vadd.f32 %v3047, 1e-08
            %v3207 = vadd.f32 %v3059, 1e-08
            %v3208 = vadd.f32 %v3071, 1e-08
            %v3209 = vadd.f32 %v3083, 1e-08
            %v3210 = vadd.f32 %v3095, 1e-08
            %v3211 = vadd.f32 %v3107, 1e-08
            %v3212 = vadd.f32 %v3119, 1e-08
            %v3213 = vadd.f32 %v3131, 1e-08
            %v3214 = vadd.f32 %v3143, 1e-08
            %v3215 = vadd.f32 %v3155, 1e-08
            %v3216 = vadd.f32 %v3167, 1e-08
            %v3217 = vadd.f32 %v3179, 1e-08
            %v3218 = vadd.f32 %v3191, 1e-08
            %v3219 = vadd.f32 %v3203, 1e-08
            %s3220 = sadd.s32 %s292, %s1229
            %v3221 = vrcp.pop %v3204
            %v3222 = vmul.f32 %v3204, %v3221
            %v3223 = vsub.f32 1.0, %v3222
            %v3224 = vmul.f32 %v3221, %v3223
            %v3225 = vadd.f32 %v3221, %v3224
            %vm3226 = vweird.f32 %v3204
            %vm3227 = vweird.f32 %v3221
            %vm3228 = vmor %vm3226, %vm3227
            %v3229 = vsel %vm3228, %v3221, %v3225
            %v3230 = vand.u32 2147483647, %v3204
            %vm3231 = vcmp.eq.f32.partialorder %v3230, 8.507059e+37
            %v3232 = vand.u32 %v3204, 2147483648
            %v3233 = vor.u32 1.1754944e-38, %v3232
            %v3234 = vsel %vm3231, %v3233, %v3229
            %v3235 = vmul.f32 %v2948, %v3234
            %v3236 = vrcp.pop %v3205
            %v3237 = vmul.f32 %v3205, %v3236
            %v3238 = vsub.f32 1.0, %v3237
            %v3239 = vmul.f32 %v3236, %v3238
            %v3240 = vadd.f32 %v3236, %v3239
            %vm3241 = vweird.f32 %v3205
            %vm3242 = vweird.f32 %v3236
            %vm3243 = vmor %vm3241, %vm3242
            %v3244 = vsel %vm3243, %v3236, %v3240
            %v3245 = vand.u32 2147483647, %v3205
            %vm3246 = vcmp.eq.f32.partialorder %v3245, 8.507059e+37
            %v3247 = vand.u32 %v3205, 2147483648
            %v3248 = vor.u32 1.1754944e-38, %v3247
            %v3249 = vsel %vm3246, %v3248, %v3244
            %v3250 = vmul.f32 %v2949, %v3249
            %v3251 = vrcp.pop %v3206
            %v3252 = vmul.f32 %v3206, %v3251
            %v3253 = vsub.f32 1.0, %v3252
            %v3254 = vmul.f32 %v3251, %v3253
            %v3255 = vadd.f32 %v3251, %v3254
            %vm3256 = vweird.f32 %v3206
            %vm3257 = vweird.f32 %v3251
            %vm3258 = vmor %vm3256, %vm3257
            %v3259 = vsel %vm3258, %v3251, %v3255
            %v3260 = vand.u32 2147483647, %v3206
            %vm3261 = vcmp.eq.f32.partialorder %v3260, 8.507059e+37
            %v3262 = vand.u32 %v3206, 2147483648
            %v3263 = vor.u32 1.1754944e-38, %v3262
            %v3264 = vsel %vm3261, %v3263, %v3259
            %v3265 = vmul.f32 %v2950, %v3264
            %v3266 = vrcp.pop %v3207
            %v3267 = vmul.f32 %v3207, %v3266
            %v3268 = vsub.f32 1.0, %v3267
            %v3269 = vmul.f32 %v3266, %v3268
            %v3270 = vadd.f32 %v3266, %v3269
            %vm3271 = vweird.f32 %v3207
            %vm3272 = vweird.f32 %v3266
            %vm3273 = vmor %vm3271, %vm3272
            %v3274 = vsel %vm3273, %v3266, %v3270
            %v3275 = vand.u32 2147483647, %v3207
            %vm3276 = vcmp.eq.f32.partialorder %v3275, 8.507059e+37
            %v3277 = vand.u32 %v3207, 2147483648
            %v3278 = vor.u32 1.1754944e-38, %v3277
            %v3279 = vsel %vm3276, %v3278, %v3274
            %v3280 = vmul.f32 %v2951, %v3279
            %v3281 = vrcp.pop %v3208
            %v3282 = vmul.f32 %v3208, %v3281
            %v3283 = vsub.f32 1.0, %v3282
            %v3284 = vmul.f32 %v3281, %v3283
            %v3285 = vadd.f32 %v3281, %v3284
            %vm3286 = vweird.f32 %v3208
            %vm3287 = vweird.f32 %v3281
            %vm3288 = vmor %vm3286, %vm3287
            %v3289 = vsel %vm3288, %v3281, %v3285
            %v3290 = vand.u32 2147483647, %v3208
            %vm3291 = vcmp.eq.f32.partialorder %v3290, 8.507059e+37
            %v3292 = vand.u32 %v3208, 2147483648
            %v3293 = vor.u32 1.1754944e-38, %v3292
            %v3294 = vsel %vm3291, %v3293, %v3289
            %v3295 = vmul.f32 %v2952, %v3294
            %v3296 = vrcp.pop %v3209
            %v3297 = vmul.f32 %v3209, %v3296
            %v3298 = vsub.f32 1.0, %v3297
            %v3299 = vmul.f32 %v3296, %v3298
            %v3300 = vadd.f32 %v3296, %v3299
            %vm3301 = vweird.f32 %v3209
            %vm3302 = vweird.f32 %v3296
            %vm3303 = vmor %vm3301, %vm3302
            %v3304 = vsel %vm3303, %v3296, %v3300
            %v3305 = vand.u32 2147483647, %v3209
            %vm3306 = vcmp.eq.f32.partialorder %v3305, 8.507059e+37
            %v3307 = vand.u32 %v3209, 2147483648
            %v3308 = vor.u32 1.1754944e-38, %v3307
            %v3309 = vsel %vm3306, %v3308, %v3304
            %v3310 = vmul.f32 %v2953, %v3309
            %v3311 = vrcp.pop %v3210
            %v3312 = vmul.f32 %v3210, %v3311
            %v3313 = vsub.f32 1.0, %v3312
            %v3314 = vmul.f32 %v3311, %v3313
            %v3315 = vadd.f32 %v3311, %v3314
            %vm3316 = vweird.f32 %v3210
            %vm3317 = vweird.f32 %v3311
            %vm3318 = vmor %vm3316, %vm3317
            %v3319 = vsel %vm3318, %v3311, %v3315
            %v3320 = vand.u32 2147483647, %v3210
            %vm3321 = vcmp.eq.f32.partialorder %v3320, 8.507059e+37
            %v3322 = vand.u32 %v3210, 2147483648
            %v3323 = vor.u32 1.1754944e-38, %v3322
            %v3324 = vsel %vm3321, %v3323, %v3319
            %v3325 = vmul.f32 %v2954, %v3324
            %v3326 = vrcp.pop %v3211
            %v3327 = vmul.f32 %v3211, %v3326
            %v3328 = vsub.f32 1.0, %v3327
            %v3329 = vmul.f32 %v3326, %v3328
            %v3330 = vadd.f32 %v3326, %v3329
            %vm3331 = vweird.f32 %v3211
            %vm3332 = vweird.f32 %v3326
            %vm3333 = vmor %vm3331, %vm3332
            %v3334 = vsel %vm3333, %v3326, %v3330
            %v3335 = vand.u32 2147483647, %v3211
            %vm3336 = vcmp.eq.f32.partialorder %v3335, 8.507059e+37
            %v3337 = vand.u32 %v3211, 2147483648
            %v3338 = vor.u32 1.1754944e-38, %v3337
            %v3339 = vsel %vm3336, %v3338, %v3334
            %v3340 = vmul.f32 %v2955, %v3339
            %v3341 = vrcp.pop %v3212
            %v3342 = vmul.f32 %v3212, %v3341
            %v3343 = vsub.f32 1.0, %v3342
            %v3344 = vmul.f32 %v3341, %v3343
            %v3345 = vadd.f32 %v3341, %v3344
            %vm3346 = vweird.f32 %v3212
            %vm3347 = vweird.f32 %v3341
            %vm3348 = vmor %vm3346, %vm3347
            %v3349 = vsel %vm3348, %v3341, %v3345
            %v3350 = vand.u32 2147483647, %v3212
            %vm3351 = vcmp.eq.f32.partialorder %v3350, 8.507059e+37
            %v3352 = vand.u32 %v3212, 2147483648
            %v3353 = vor.u32 1.1754944e-38, %v3352
            %v3354 = vsel %vm3351, %v3353, %v3349
            %v3355 = vmul.f32 %v2956, %v3354
            %v3356 = vrcp.pop %v3213
            %v3357 = vmul.f32 %v3213, %v3356
            %v3358 = vsub.f32 1.0, %v3357
            %v3359 = vmul.f32 %v3356, %v3358
            %v3360 = vadd.f32 %v3356, %v3359
            %vm3361 = vweird.f32 %v3213
            %vm3362 = vweird.f32 %v3356
            %vm3363 = vmor %vm3361, %vm3362
            %v3364 = vsel %vm3363, %v3356, %v3360
            %v3365 = vand.u32 2147483647, %v3213
            %vm3366 = vcmp.eq.f32.partialorder %v3365, 8.507059e+37
            %v3367 = vand.u32 %v3213, 2147483648
            %v3368 = vor.u32 1.1754944e-38, %v3367
            %v3369 = vsel %vm3366, %v3368, %v3364
            %v3370 = vmul.f32 %v2957, %v3369
            %v3371 = vrcp.pop %v3214
            %v3372 = vmul.f32 %v3214, %v3371
            %v3373 = vsub.f32 1.0, %v3372
            %v3374 = vmul.f32 %v3371, %v3373
            %v3375 = vadd.f32 %v3371, %v3374
            %vm3376 = vweird.f32 %v3214
            %vm3377 = vweird.f32 %v3371
            %vm3378 = vmor %vm3376, %vm3377
            %v3379 = vsel %vm3378, %v3371, %v3375
            %v3380 = vand.u32 2147483647, %v3214
            %vm3381 = vcmp.eq.f32.partialorder %v3380, 8.507059e+37
            %v3382 = vand.u32 %v3214, 2147483648
            %v3383 = vor.u32 1.1754944e-38, %v3382
            %v3384 = vsel %vm3381, %v3383, %v3379
            %v3385 = vmul.f32 %v2958, %v3384
            %v3386 = vrcp.pop %v3215
            %v3387 = vmul.f32 %v3215, %v3386
            %v3388 = vsub.f32 1.0, %v3387
            %v3389 = vmul.f32 %v3386, %v3388
            %v3390 = vadd.f32 %v3386, %v3389
            %vm3391 = vweird.f32 %v3215
            %vm3392 = vweird.f32 %v3386
            %vm3393 = vmor %vm3391, %vm3392
            %v3394 = vsel %vm3393, %v3386, %v3390
            %v3395 = vand.u32 2147483647, %v3215
            %vm3396 = vcmp.eq.f32.partialorder %v3395, 8.507059e+37
            %v3397 = vand.u32 %v3215, 2147483648
            %v3398 = vor.u32 1.1754944e-38, %v3397
            %v3399 = vsel %vm3396, %v3398, %v3394
            %v3400 = vmul.f32 %v2959, %v3399
            %v3401 = vrcp.pop %v3216
            %v3402 = vmul.f32 %v3216, %v3401
            %v3403 = vsub.f32 1.0, %v3402
            %v3404 = vmul.f32 %v3401, %v3403
            %v3405 = vadd.f32 %v3401, %v3404
            %vm3406 = vweird.f32 %v3216
            %vm3407 = vweird.f32 %v3401
            %vm3408 = vmor %vm3406, %vm3407
            %v3409 = vsel %vm3408, %v3401, %v3405
            %v3410 = vand.u32 2147483647, %v3216
            %vm3411 = vcmp.eq.f32.partialorder %v3410, 8.507059e+37
            %v3412 = vand.u32 %v3216, 2147483648
            %v3413 = vor.u32 1.1754944e-38, %v3412
            %v3414 = vsel %vm3411, %v3413, %v3409
            %v3415 = vmul.f32 %v2960, %v3414
            %v3416 = vrcp.pop %v3217
            %v3417 = vmul.f32 %v3217, %v3416
            %v3418 = vsub.f32 1.0, %v3417
            %v3419 = vmul.f32 %v3416, %v3418
            %v3420 = vadd.f32 %v3416, %v3419
            %vm3421 = vweird.f32 %v3217
            %vm3422 = vweird.f32 %v3416
            %vm3423 = vmor %vm3421, %vm3422
            %v3424 = vsel %vm3423, %v3416, %v3420
            %v3425 = vand.u32 2147483647, %v3217
            %vm3426 = vcmp.eq.f32.partialorder %v3425, 8.507059e+37
            %v3427 = vand.u32 %v3217, 2147483648
            %v3428 = vor.u32 1.1754944e-38, %v3427
            %v3429 = vsel %vm3426, %v3428, %v3424
            %v3430 = vmul.f32 %v2961, %v3429
            %v3431 = vrcp.pop %v3218
            %v3432 = vmul.f32 %v3218, %v3431
            %v3433 = vsub.f32 1.0, %v3432
            %v3434 = vmul.f32 %v3431, %v3433
            %v3435 = vadd.f32 %v3431, %v3434
            %vm3436 = vweird.f32 %v3218
            %vm3437 = vweird.f32 %v3431
            %vm3438 = vmor %vm3436, %vm3437
            %v3439 = vsel %vm3438, %v3431, %v3435
            %v3440 = vand.u32 2147483647, %v3218
            %vm3441 = vcmp.eq.f32.partialorder %v3440, 8.507059e+37
            %v3442 = vand.u32 %v3218, 2147483648
            %v3443 = vor.u32 1.1754944e-38, %v3442
            %v3444 = vsel %vm3441, %v3443, %v3439
            %v3445 = vmul.f32 %v2962, %v3444
            %v3446 = vrcp.pop %v3219
            %v3447 = vmul.f32 %v3219, %v3446
            %v3448 = vsub.f32 1.0, %v3447
            %v3449 = vmul.f32 %v3446, %v3448
            %v3450 = vadd.f32 %v3446, %v3449
            %vm3451 = vweird.f32 %v3219
            %vm3452 = vweird.f32 %v3446
            %vm3453 = vmor %vm3451, %vm3452
            %v3454 = vsel %vm3453, %v3446, %v3450
            %v3455 = vand.u32 2147483647, %v3219
            %vm3456 = vcmp.eq.f32.partialorder %v3455, 8.507059e+37
            %v3457 = vand.u32 %v3219, 2147483648
            %v3458 = vor.u32 1.1754944e-38, %v3457
            %v3459 = vsel %vm3456, %v3458, %v3454
            %v3460 = vmul.f32 %v2963, %v3459
            %s3461 = scalar_lea.vmem [#allocation2], %s3220
            %3462 = vst [vmem:[%s3461] sm:$0xff] %v3235
            %3463 = vst [vmem:[%s3461 + $0x8] sm:$0xff] %v3250
            %3464 = vst [vmem:[%s3461 + $0x10] sm:$0xff] %v3265
            %3465 = vst [vmem:[%s3461 + $0x18] sm:$0xff] %v3280
            %3466 = vst [vmem:[%s3461 + $0x20] sm:$0xff] %v3295
            %3467 = vst [vmem:[%s3461 + $0x28] sm:$0xff] %v3310
            %3468 = vst [vmem:[%s3461 + $0x30] sm:$0xff] %v3325
            %3469 = vst [vmem:[%s3461 + $0x38] sm:$0xff] %v3340
            %3470 = vst [vmem:[%s3461 + $0x40] sm:$0xff] %v3355
            %3471 = vst [vmem:[%s3461 + $0x48] sm:$0xff] %v3370
            %3472 = vst [vmem:[%s3461 + $0x50] sm:$0xff] %v3385
            %3473 = vst [vmem:[%s3461 + $0x58] sm:$0xff] %v3400
            %3474 = vst [vmem:[%s3461 + $0x60] sm:$0xff] %v3415
            %3475 = vst [vmem:[%s3461 + $0x68] sm:$0xff] %v3430
            %3476 = vst [vmem:[%s3461 + $0x70] sm:$0xff] %v3445
            %3477 = vst [vmem:[%s3461 + $0x78] sm:$0xff] %v3460
          $region64: #{tpu_custom_call.1} parent=59 // pred_fallthru
            _
          %p3478 = scmp.eq.s32.totalorder %s25, 2
          // Predicated region
          $region65: #{tpu_custom_call.1} parent=59 // pred_check
            %p3479 = pneg %p3478
          $region66: #{tpu_custom_call.1} parent=59 // pred_check_branch
            %3481 = sbr.rel (%p3479) target = $region68
          $region67: #{tpu_custom_call.1} parent=59 // pred_region
            %v3482 = vmul.f32 %v2882, %v2882
            %v3483 = vmul.f32 %v2886, %v2886
            %v3484 = vmul.f32 %v2890, %v2890
            %v3485 = vmul.f32 %v2894, %v2894
            %v3486 = vmul.f32 %v2898, %v2898
            %v3487 = vmul.f32 %v2902, %v2902
            %v3488 = vmul.f32 %v2906, %v2906
            %v3489 = vmul.f32 %v2910, %v2910
            %v3490 = vmul.f32 %v2914, %v2914
            %v3491 = vmul.f32 %v2918, %v2918
            %v3492 = vmul.f32 %v2922, %v2922
            %v3493 = vmul.f32 %v2926, %v2926
            %v3494 = vmul.f32 %v2930, %v2930
            %v3495 = vmul.f32 %v2934, %v2934
            %v3496 = vmul.f32 %v2938, %v2938
            %v3497 = vmul.f32 %v2942, %v2942
            %3498 = vadd.xlane.f32.xlu0 %v3482
            %v3499 = vpop.xlane.xlu0 %3498
            %3500 = vadd.xlane.f32.xlu0 %v3483
            %v3501 = vpop.xlane.xlu0 %3500
            %3502 = vadd.xlane.f32.xlu0 %v3484
            %v3503 = vpop.xlane.xlu0 %3502
            %3504 = vadd.xlane.f32.xlu0 %v3485
            %v3505 = vpop.xlane.xlu0 %3504
            %3506 = vadd.xlane.f32.xlu0 %v3486
            %v3507 = vpop.xlane.xlu0 %3506
            %3508 = vadd.xlane.f32.xlu0 %v3487
            %v3509 = vpop.xlane.xlu0 %3508
            %3510 = vadd.xlane.f32.xlu0 %v3488
            %v3511 = vpop.xlane.xlu0 %3510
            %3512 = vadd.xlane.f32.xlu0 %v3489
            %v3513 = vpop.xlane.xlu0 %3512
            %3514 = vadd.xlane.f32.xlu0 %v3490
            %v3515 = vpop.xlane.xlu0 %3514
            %3516 = vadd.xlane.f32.xlu0 %v3491
            %v3517 = vpop.xlane.xlu0 %3516
            %3518 = vadd.xlane.f32.xlu0 %v3492
            %v3519 = vpop.xlane.xlu0 %3518
            %3520 = vadd.xlane.f32.xlu0 %v3493
            %v3521 = vpop.xlane.xlu0 %3520
            %3522 = vadd.xlane.f32.xlu0 %v3494
            %v3523 = vpop.xlane.xlu0 %3522
            %3524 = vadd.xlane.f32.xlu0 %v3495
            %v3525 = vpop.xlane.xlu0 %3524
            %3526 = vadd.xlane.f32.xlu0 %v3496
            %v3527 = vpop.xlane.xlu0 %3526
            %3528 = vadd.xlane.f32.xlu0 %v3497
            %v3529 = vpop.xlane.xlu0 %3528
            %v3530 = vrsqrt.pop %v3499
            %v3531 = vmul.f32 %v3530, %v3499
            %v3532 = vmul.f32 %v3531, %v3530
            %v3533 = vmul.f32 0.5, %v3532
            %v3534 = vsub.f32 1.5, %v3533
            %v3535 = vmul.f32 %v3530, %v3534
            %v3536 = vmul.f32 %v3499, %v3535
            %vm3537 = vcmp.eq.f32.partialorder %v3499, inf
            %v3538 = vsel %vm3537, %v3499, %v3536
            %vm3539 = vcmp.eq.f32.partialorder %v3499, 0.0
            %v3540 = vand.u32 %v3499, 2147483648
            %v3541 = vsel %vm3539, %v3540, %v3538
            %v3542 = vrsqrt.pop %v3501
            %v3543 = vmul.f32 %v3542, %v3501
            %v3544 = vmul.f32 %v3543, %v3542
            %v3545 = vmul.f32 0.5, %v3544
            %v3546 = vsub.f32 1.5, %v3545
            %v3547 = vmul.f32 %v3542, %v3546
            %v3548 = vmul.f32 %v3501, %v3547
            %vm3549 = vcmp.eq.f32.partialorder %v3501, inf
            %v3550 = vsel %vm3549, %v3501, %v3548
            %vm3551 = vcmp.eq.f32.partialorder %v3501, 0.0
            %v3552 = vand.u32 %v3501, 2147483648
            %v3553 = vsel %vm3551, %v3552, %v3550
            %v3554 = vrsqrt.pop %v3503
            %v3555 = vmul.f32 %v3554, %v3503
            %v3556 = vmul.f32 %v3555, %v3554
            %v3557 = vmul.f32 0.5, %v3556
            %v3558 = vsub.f32 1.5, %v3557
            %v3559 = vmul.f32 %v3554, %v3558
            %v3560 = vmul.f32 %v3503, %v3559
            %vm3561 = vcmp.eq.f32.partialorder %v3503, inf
            %v3562 = vsel %vm3561, %v3503, %v3560
            %vm3563 = vcmp.eq.f32.partialorder %v3503, 0.0
            %v3564 = vand.u32 %v3503, 2147483648
            %v3565 = vsel %vm3563, %v3564, %v3562
            %v3566 = vrsqrt.pop %v3505
            %v3567 = vmul.f32 %v3566, %v3505
            %v3568 = vmul.f32 %v3567, %v3566
            %v3569 = vmul.f32 0.5, %v3568
            %v3570 = vsub.f32 1.5, %v3569
            %v3571 = vmul.f32 %v3566, %v3570
            %v3572 = vmul.f32 %v3505, %v3571
            %vm3573 = vcmp.eq.f32.partialorder %v3505, inf
            %v3574 = vsel %vm3573, %v3505, %v3572
            %vm3575 = vcmp.eq.f32.partialorder %v3505, 0.0
            %v3576 = vand.u32 %v3505, 2147483648
            %v3577 = vsel %vm3575, %v3576, %v3574
            %v3578 = vrsqrt.pop %v3507
            %v3579 = vmul.f32 %v3578, %v3507
            %v3580 = vmul.f32 %v3579, %v3578
            %v3581 = vmul.f32 0.5, %v3580
            %v3582 = vsub.f32 1.5, %v3581
            %v3583 = vmul.f32 %v3578, %v3582
            %v3584 = vmul.f32 %v3507, %v3583
            %vm3585 = vcmp.eq.f32.partialorder %v3507, inf
            %v3586 = vsel %vm3585, %v3507, %v3584
            %vm3587 = vcmp.eq.f32.partialorder %v3507, 0.0
            %v3588 = vand.u32 %v3507, 2147483648
            %v3589 = vsel %vm3587, %v3588, %v3586
            %v3590 = vrsqrt.pop %v3509
            %v3591 = vmul.f32 %v3590, %v3509
            %v3592 = vmul.f32 %v3591, %v3590
            %v3593 = vmul.f32 0.5, %v3592
            %v3594 = vsub.f32 1.5, %v3593
            %v3595 = vmul.f32 %v3590, %v3594
            %v3596 = vmul.f32 %v3509, %v3595
            %vm3597 = vcmp.eq.f32.partialorder %v3509, inf
            %v3598 = vsel %vm3597, %v3509, %v3596
            %vm3599 = vcmp.eq.f32.partialorder %v3509, 0.0
            %v3600 = vand.u32 %v3509, 2147483648
            %v3601 = vsel %vm3599, %v3600, %v3598
            %v3602 = vrsqrt.pop %v3511
            %v3603 = vmul.f32 %v3602, %v3511
            %v3604 = vmul.f32 %v3603, %v3602
            %v3605 = vmul.f32 0.5, %v3604
            %v3606 = vsub.f32 1.5, %v3605
            %v3607 = vmul.f32 %v3602, %v3606
            %v3608 = vmul.f32 %v3511, %v3607
            %vm3609 = vcmp.eq.f32.partialorder %v3511, inf
            %v3610 = vsel %vm3609, %v3511, %v3608
            %vm3611 = vcmp.eq.f32.partialorder %v3511, 0.0
            %v3612 = vand.u32 %v3511, 2147483648
            %v3613 = vsel %vm3611, %v3612, %v3610
            %v3614 = vrsqrt.pop %v3513
            %v3615 = vmul.f32 %v3614, %v3513
            %v3616 = vmul.f32 %v3615, %v3614
            %v3617 = vmul.f32 0.5, %v3616
            %v3618 = vsub.f32 1.5, %v3617
            %v3619 = vmul.f32 %v3614, %v3618
            %v3620 = vmul.f32 %v3513, %v3619
            %vm3621 = vcmp.eq.f32.partialorder %v3513, inf
            %v3622 = vsel %vm3621, %v3513, %v3620
            %vm3623 = vcmp.eq.f32.partialorder %v3513, 0.0
            %v3624 = vand.u32 %v3513, 2147483648
            %v3625 = vsel %vm3623, %v3624, %v3622
            %v3626 = vrsqrt.pop %v3515
            %v3627 = vmul.f32 %v3626, %v3515
            %v3628 = vmul.f32 %v3627, %v3626
            %v3629 = vmul.f32 0.5, %v3628
            %v3630 = vsub.f32 1.5, %v3629
            %v3631 = vmul.f32 %v3626, %v3630
            %v3632 = vmul.f32 %v3515, %v3631
            %vm3633 = vcmp.eq.f32.partialorder %v3515, inf
            %v3634 = vsel %vm3633, %v3515, %v3632
            %vm3635 = vcmp.eq.f32.partialorder %v3515, 0.0
            %v3636 = vand.u32 %v3515, 2147483648
            %v3637 = vsel %vm3635, %v3636, %v3634
            %v3638 = vrsqrt.pop %v3517
            %v3639 = vmul.f32 %v3638, %v3517
            %v3640 = vmul.f32 %v3639, %v3638
            %v3641 = vmul.f32 0.5, %v3640
            %v3642 = vsub.f32 1.5, %v3641
            %v3643 = vmul.f32 %v3638, %v3642
            %v3644 = vmul.f32 %v3517, %v3643
            %vm3645 = vcmp.eq.f32.partialorder %v3517, inf
            %v3646 = vsel %vm3645, %v3517, %v3644
            %vm3647 = vcmp.eq.f32.partialorder %v3517, 0.0
            %v3648 = vand.u32 %v3517, 2147483648
            %v3649 = vsel %vm3647, %v3648, %v3646
            %v3650 = vrsqrt.pop %v3519
            %v3651 = vmul.f32 %v3650, %v3519
            %v3652 = vmul.f32 %v3651, %v3650
            %v3653 = vmul.f32 0.5, %v3652
            %v3654 = vsub.f32 1.5, %v3653
            %v3655 = vmul.f32 %v3650, %v3654
            %v3656 = vmul.f32 %v3519, %v3655
            %vm3657 = vcmp.eq.f32.partialorder %v3519, inf
            %v3658 = vsel %vm3657, %v3519, %v3656
            %vm3659 = vcmp.eq.f32.partialorder %v3519, 0.0
            %v3660 = vand.u32 %v3519, 2147483648
            %v3661 = vsel %vm3659, %v3660, %v3658
            %v3662 = vrsqrt.pop %v3521
            %v3663 = vmul.f32 %v3662, %v3521
            %v3664 = vmul.f32 %v3663, %v3662
            %v3665 = vmul.f32 0.5, %v3664
            %v3666 = vsub.f32 1.5, %v3665
            %v3667 = vmul.f32 %v3662, %v3666
            %v3668 = vmul.f32 %v3521, %v3667
            %vm3669 = vcmp.eq.f32.partialorder %v3521, inf
            %v3670 = vsel %vm3669, %v3521, %v3668
            %vm3671 = vcmp.eq.f32.partialorder %v3521, 0.0
            %v3672 = vand.u32 %v3521, 2147483648
            %v3673 = vsel %vm3671, %v3672, %v3670
            %v3674 = vrsqrt.pop %v3523
            %v3675 = vmul.f32 %v3674, %v3523
            %v3676 = vmul.f32 %v3675, %v3674
            %v3677 = vmul.f32 0.5, %v3676
            %v3678 = vsub.f32 1.5, %v3677
            %v3679 = vmul.f32 %v3674, %v3678
            %v3680 = vmul.f32 %v3523, %v3679
            %vm3681 = vcmp.eq.f32.partialorder %v3523, inf
            %v3682 = vsel %vm3681, %v3523, %v3680
            %vm3683 = vcmp.eq.f32.partialorder %v3523, 0.0
            %v3684 = vand.u32 %v3523, 2147483648
            %v3685 = vsel %vm3683, %v3684, %v3682
            %v3686 = vrsqrt.pop %v3525
            %v3687 = vmul.f32 %v3686, %v3525
            %v3688 = vmul.f32 %v3687, %v3686
            %v3689 = vmul.f32 0.5, %v3688
            %v3690 = vsub.f32 1.5, %v3689
            %v3691 = vmul.f32 %v3686, %v3690
            %v3692 = vmul.f32 %v3525, %v3691
            %vm3693 = vcmp.eq.f32.partialorder %v3525, inf
            %v3694 = vsel %vm3693, %v3525, %v3692
            %vm3695 = vcmp.eq.f32.partialorder %v3525, 0.0
            %v3696 = vand.u32 %v3525, 2147483648
            %v3697 = vsel %vm3695, %v3696, %v3694
            %v3698 = vrsqrt.pop %v3527
            %v3699 = vmul.f32 %v3698, %v3527
            %v3700 = vmul.f32 %v3699, %v3698
            %v3701 = vmul.f32 0.5, %v3700
            %v3702 = vsub.f32 1.5, %v3701
            %v3703 = vmul.f32 %v3698, %v3702
            %v3704 = vmul.f32 %v3527, %v3703
            %vm3705 = vcmp.eq.f32.partialorder %v3527, inf
            %v3706 = vsel %vm3705, %v3527, %v3704
            %vm3707 = vcmp.eq.f32.partialorder %v3527, 0.0
            %v3708 = vand.u32 %v3527, 2147483648
            %v3709 = vsel %vm3707, %v3708, %v3706
            %v3710 = vrsqrt.pop %v3529
            %v3711 = vmul.f32 %v3710, %v3529
            %v3712 = vmul.f32 %v3711, %v3710
            %v3713 = vmul.f32 0.5, %v3712
            %v3714 = vsub.f32 1.5, %v3713
            %v3715 = vmul.f32 %v3710, %v3714
            %v3716 = vmul.f32 %v3529, %v3715
            %vm3717 = vcmp.eq.f32.partialorder %v3529, inf
            %v3718 = vsel %vm3717, %v3529, %v3716
            %vm3719 = vcmp.eq.f32.partialorder %v3529, 0.0
            %v3720 = vand.u32 %v3529, 2147483648
            %v3721 = vsel %vm3719, %v3720, %v3718
            %v3722 = vadd.f32 %v3541, 1e-08
            %v3723 = vadd.f32 %v3553, 1e-08
            %v3724 = vadd.f32 %v3565, 1e-08
            %v3725 = vadd.f32 %v3577, 1e-08
            %v3726 = vadd.f32 %v3589, 1e-08
            %v3727 = vadd.f32 %v3601, 1e-08
            %v3728 = vadd.f32 %v3613, 1e-08
            %v3729 = vadd.f32 %v3625, 1e-08
            %v3730 = vadd.f32 %v3637, 1e-08
            %v3731 = vadd.f32 %v3649, 1e-08
            %v3732 = vadd.f32 %v3661, 1e-08
            %v3733 = vadd.f32 %v3673, 1e-08
            %v3734 = vadd.f32 %v3685, 1e-08
            %v3735 = vadd.f32 %v3697, 1e-08
            %v3736 = vadd.f32 %v3709, 1e-08
            %v3737 = vadd.f32 %v3721, 1e-08
            %v3738 = vrcp.pop %v3722
            %v3739 = vmul.f32 %v3722, %v3738
            %v3740 = vsub.f32 1.0, %v3739
            %v3741 = vmul.f32 %v3738, %v3740
            %v3742 = vadd.f32 %v3738, %v3741
            %vm3743 = vweird.f32 %v3722
            %vm3744 = vweird.f32 %v3738
            %vm3745 = vmor %vm3743, %vm3744
            %v3746 = vsel %vm3745, %v3738, %v3742
            %v3747 = vand.u32 2147483647, %v3722
            %vm3748 = vcmp.eq.f32.partialorder %v3747, 8.507059e+37
            %v3749 = vand.u32 %v3722, 2147483648
            %v3750 = vor.u32 1.1754944e-38, %v3749
            %v3751 = vsel %vm3748, %v3750, %v3746
            %v3752 = vmul.f32 %v2882, %v3751
            %v3753 = vrcp.pop %v3723
            %v3754 = vmul.f32 %v3723, %v3753
            %v3755 = vsub.f32 1.0, %v3754
            %v3756 = vmul.f32 %v3753, %v3755
            %v3757 = vadd.f32 %v3753, %v3756
            %vm3758 = vweird.f32 %v3723
            %vm3759 = vweird.f32 %v3753
            %vm3760 = vmor %vm3758, %vm3759
            %v3761 = vsel %vm3760, %v3753, %v3757
            %v3762 = vand.u32 2147483647, %v3723
            %vm3763 = vcmp.eq.f32.partialorder %v3762, 8.507059e+37
            %v3764 = vand.u32 %v3723, 2147483648
            %v3765 = vor.u32 1.1754944e-38, %v3764
            %v3766 = vsel %vm3763, %v3765, %v3761
            %v3767 = vmul.f32 %v2886, %v3766
            %v3768 = vrcp.pop %v3724
            %v3769 = vmul.f32 %v3724, %v3768
            %v3770 = vsub.f32 1.0, %v3769
            %v3771 = vmul.f32 %v3768, %v3770
            %v3772 = vadd.f32 %v3768, %v3771
            %vm3773 = vweird.f32 %v3724
            %vm3774 = vweird.f32 %v3768
            %vm3775 = vmor %vm3773, %vm3774
            %v3776 = vsel %vm3775, %v3768, %v3772
            %v3777 = vand.u32 2147483647, %v3724
            %vm3778 = vcmp.eq.f32.partialorder %v3777, 8.507059e+37
            %v3779 = vand.u32 %v3724, 2147483648
            %v3780 = vor.u32 1.1754944e-38, %v3779
            %v3781 = vsel %vm3778, %v3780, %v3776
            %v3782 = vmul.f32 %v2890, %v3781
            %v3783 = vrcp.pop %v3725
            %v3784 = vmul.f32 %v3725, %v3783
            %v3785 = vsub.f32 1.0, %v3784
            %v3786 = vmul.f32 %v3783, %v3785
            %v3787 = vadd.f32 %v3783, %v3786
            %vm3788 = vweird.f32 %v3725
            %vm3789 = vweird.f32 %v3783
            %vm3790 = vmor %vm3788, %vm3789
            %v3791 = vsel %vm3790, %v3783, %v3787
            %v3792 = vand.u32 2147483647, %v3725
            %vm3793 = vcmp.eq.f32.partialorder %v3792, 8.507059e+37
            %v3794 = vand.u32 %v3725, 2147483648
            %v3795 = vor.u32 1.1754944e-38, %v3794
            %v3796 = vsel %vm3793, %v3795, %v3791
            %v3797 = vmul.f32 %v2894, %v3796
            %v3798 = vrcp.pop %v3726
            %v3799 = vmul.f32 %v3726, %v3798
            %v3800 = vsub.f32 1.0, %v3799
            %v3801 = vmul.f32 %v3798, %v3800
            %v3802 = vadd.f32 %v3798, %v3801
            %vm3803 = vweird.f32 %v3726
            %vm3804 = vweird.f32 %v3798
            %vm3805 = vmor %vm3803, %vm3804
            %v3806 = vsel %vm3805, %v3798, %v3802
            %v3807 = vand.u32 2147483647, %v3726
            %vm3808 = vcmp.eq.f32.partialorder %v3807, 8.507059e+37
            %v3809 = vand.u32 %v3726, 2147483648
            %v3810 = vor.u32 1.1754944e-38, %v3809
            %v3811 = vsel %vm3808, %v3810, %v3806
            %v3812 = vmul.f32 %v2898, %v3811
            %v3813 = vrcp.pop %v3727
            %v3814 = vmul.f32 %v3727, %v3813
            %v3815 = vsub.f32 1.0, %v3814
            %v3816 = vmul.f32 %v3813, %v3815
            %v3817 = vadd.f32 %v3813, %v3816
            %vm3818 = vweird.f32 %v3727
            %vm3819 = vweird.f32 %v3813
            %vm3820 = vmor %vm3818, %vm3819
            %v3821 = vsel %vm3820, %v3813, %v3817
            %v3822 = vand.u32 2147483647, %v3727
            %vm3823 = vcmp.eq.f32.partialorder %v3822, 8.507059e+37
            %v3824 = vand.u32 %v3727, 2147483648
            %v3825 = vor.u32 1.1754944e-38, %v3824
            %v3826 = vsel %vm3823, %v3825, %v3821
            %v3827 = vmul.f32 %v2902, %v3826
            %v3828 = vrcp.pop %v3728
            %v3829 = vmul.f32 %v3728, %v3828
            %v3830 = vsub.f32 1.0, %v3829
            %v3831 = vmul.f32 %v3828, %v3830
            %v3832 = vadd.f32 %v3828, %v3831
            %vm3833 = vweird.f32 %v3728
            %vm3834 = vweird.f32 %v3828
            %vm3835 = vmor %vm3833, %vm3834
            %v3836 = vsel %vm3835, %v3828, %v3832
            %v3837 = vand.u32 2147483647, %v3728
            %vm3838 = vcmp.eq.f32.partialorder %v3837, 8.507059e+37
            %v3839 = vand.u32 %v3728, 2147483648
            %v3840 = vor.u32 1.1754944e-38, %v3839
            %v3841 = vsel %vm3838, %v3840, %v3836
            %v3842 = vmul.f32 %v2906, %v3841
            %v3843 = vrcp.pop %v3729
            %v3844 = vmul.f32 %v3729, %v3843
            %v3845 = vsub.f32 1.0, %v3844
            %v3846 = vmul.f32 %v3843, %v3845
            %v3847 = vadd.f32 %v3843, %v3846
            %vm3848 = vweird.f32 %v3729
            %vm3849 = vweird.f32 %v3843
            %vm3850 = vmor %vm3848, %vm3849
            %v3851 = vsel %vm3850, %v3843, %v3847
            %v3852 = vand.u32 2147483647, %v3729
            %vm3853 = vcmp.eq.f32.partialorder %v3852, 8.507059e+37
            %v3854 = vand.u32 %v3729, 2147483648
            %v3855 = vor.u32 1.1754944e-38, %v3854
            %v3856 = vsel %vm3853, %v3855, %v3851
            %v3857 = vmul.f32 %v2910, %v3856
            %v3858 = vrcp.pop %v3730
            %v3859 = vmul.f32 %v3730, %v3858
            %v3860 = vsub.f32 1.0, %v3859
            %v3861 = vmul.f32 %v3858, %v3860
            %v3862 = vadd.f32 %v3858, %v3861
            %vm3863 = vweird.f32 %v3730
            %vm3864 = vweird.f32 %v3858
            %vm3865 = vmor %vm3863, %vm3864
            %v3866 = vsel %vm3865, %v3858, %v3862
            %v3867 = vand.u32 2147483647, %v3730
            %vm3868 = vcmp.eq.f32.partialorder %v3867, 8.507059e+37
            %v3869 = vand.u32 %v3730, 2147483648
            %v3870 = vor.u32 1.1754944e-38, %v3869
            %v3871 = vsel %vm3868, %v3870, %v3866
            %v3872 = vmul.f32 %v2914, %v3871
            %v3873 = vrcp.pop %v3731
            %v3874 = vmul.f32 %v3731, %v3873
            %v3875 = vsub.f32 1.0, %v3874
            %v3876 = vmul.f32 %v3873, %v3875
            %v3877 = vadd.f32 %v3873, %v3876
            %vm3878 = vweird.f32 %v3731
            %vm3879 = vweird.f32 %v3873
            %vm3880 = vmor %vm3878, %vm3879
            %v3881 = vsel %vm3880, %v3873, %v3877
            %v3882 = vand.u32 2147483647, %v3731
            %vm3883 = vcmp.eq.f32.partialorder %v3882, 8.507059e+37
            %v3884 = vand.u32 %v3731, 2147483648
            %v3885 = vor.u32 1.1754944e-38, %v3884
            %v3886 = vsel %vm3883, %v3885, %v3881
            %v3887 = vmul.f32 %v2918, %v3886
            %v3888 = vrcp.pop %v3732
            %v3889 = vmul.f32 %v3732, %v3888
            %v3890 = vsub.f32 1.0, %v3889
            %v3891 = vmul.f32 %v3888, %v3890
            %v3892 = vadd.f32 %v3888, %v3891
            %vm3893 = vweird.f32 %v3732
            %vm3894 = vweird.f32 %v3888
            %vm3895 = vmor %vm3893, %vm3894
            %v3896 = vsel %vm3895, %v3888, %v3892
            %v3897 = vand.u32 2147483647, %v3732
            %vm3898 = vcmp.eq.f32.partialorder %v3897, 8.507059e+37
            %v3899 = vand.u32 %v3732, 2147483648
            %v3900 = vor.u32 1.1754944e-38, %v3899
            %v3901 = vsel %vm3898, %v3900, %v3896
            %v3902 = vmul.f32 %v2922, %v3901
            %v3903 = vrcp.pop %v3733
            %v3904 = vmul.f32 %v3733, %v3903
            %v3905 = vsub.f32 1.0, %v3904
            %v3906 = vmul.f32 %v3903, %v3905
            %v3907 = vadd.f32 %v3903, %v3906
            %vm3908 = vweird.f32 %v3733
            %vm3909 = vweird.f32 %v3903
            %vm3910 = vmor %vm3908, %vm3909
            %v3911 = vsel %vm3910, %v3903, %v3907
            %v3912 = vand.u32 2147483647, %v3733
            %vm3913 = vcmp.eq.f32.partialorder %v3912, 8.507059e+37
            %v3914 = vand.u32 %v3733, 2147483648
            %v3915 = vor.u32 1.1754944e-38, %v3914
            %v3916 = vsel %vm3913, %v3915, %v3911
            %v3917 = vmul.f32 %v2926, %v3916
            %v3918 = vrcp.pop %v3734
            %v3919 = vmul.f32 %v3734, %v3918
            %v3920 = vsub.f32 1.0, %v3919
            %v3921 = vmul.f32 %v3918, %v3920
            %v3922 = vadd.f32 %v3918, %v3921
            %vm3923 = vweird.f32 %v3734
            %vm3924 = vweird.f32 %v3918
            %vm3925 = vmor %vm3923, %vm3924
            %v3926 = vsel %vm3925, %v3918, %v3922
            %v3927 = vand.u32 2147483647, %v3734
            %vm3928 = vcmp.eq.f32.partialorder %v3927, 8.507059e+37
            %v3929 = vand.u32 %v3734, 2147483648
            %v3930 = vor.u32 1.1754944e-38, %v3929
            %v3931 = vsel %vm3928, %v3930, %v3926
            %v3932 = vmul.f32 %v2930, %v3931
            %v3933 = vrcp.pop %v3735
            %v3934 = vmul.f32 %v3735, %v3933
            %v3935 = vsub.f32 1.0, %v3934
            %v3936 = vmul.f32 %v3933, %v3935
            %v3937 = vadd.f32 %v3933, %v3936
            %vm3938 = vweird.f32 %v3735
            %vm3939 = vweird.f32 %v3933
            %vm3940 = vmor %vm3938, %vm3939
            %v3941 = vsel %vm3940, %v3933, %v3937
            %v3942 = vand.u32 2147483647, %v3735
            %vm3943 = vcmp.eq.f32.partialorder %v3942, 8.507059e+37
            %v3944 = vand.u32 %v3735, 2147483648
            %v3945 = vor.u32 1.1754944e-38, %v3944
            %v3946 = vsel %vm3943, %v3945, %v3941
            %v3947 = vmul.f32 %v2934, %v3946
            %v3948 = vrcp.pop %v3736
            %v3949 = vmul.f32 %v3736, %v3948
            %v3950 = vsub.f32 1.0, %v3949
            %v3951 = vmul.f32 %v3948, %v3950
            %v3952 = vadd.f32 %v3948, %v3951
            %vm3953 = vweird.f32 %v3736
            %vm3954 = vweird.f32 %v3948
            %vm3955 = vmor %vm3953, %vm3954
            %v3956 = vsel %vm3955, %v3948, %v3952
            %v3957 = vand.u32 2147483647, %v3736
            %vm3958 = vcmp.eq.f32.partialorder %v3957, 8.507059e+37
            %v3959 = vand.u32 %v3736, 2147483648
            %v3960 = vor.u32 1.1754944e-38, %v3959
            %v3961 = vsel %vm3958, %v3960, %v3956
            %v3962 = vmul.f32 %v2938, %v3961
            %v3963 = vrcp.pop %v3737
            %v3964 = vmul.f32 %v3737, %v3963
            %v3965 = vsub.f32 1.0, %v3964
            %v3966 = vmul.f32 %v3963, %v3965
            %v3967 = vadd.f32 %v3963, %v3966
            %vm3968 = vweird.f32 %v3737
            %vm3969 = vweird.f32 %v3963
            %vm3970 = vmor %vm3968, %vm3969
            %v3971 = vsel %vm3970, %v3963, %v3967
            %v3972 = vand.u32 2147483647, %v3737
            %vm3973 = vcmp.eq.f32.partialorder %v3972, 8.507059e+37
            %v3974 = vand.u32 %v3737, 2147483648
            %v3975 = vor.u32 1.1754944e-38, %v3974
            %v3976 = vsel %vm3973, %v3975, %v3971
            %v3977 = vmul.f32 %v2942, %v3976
            %3978 = vst [vmem:[#allocation11] sm:$0xff] %v3752
            %3979 = vst [vmem:[#allocation11 + $0x8] sm:$0xff] %v3767
            %3980 = vst [vmem:[#allocation11 + $0x10] sm:$0xff] %v3782
            %3981 = vst [vmem:[#allocation11 + $0x18] sm:$0xff] %v3797
            %3982 = vst [vmem:[#allocation11 + $0x20] sm:$0xff] %v3812
            %3983 = vst [vmem:[#allocation11 + $0x28] sm:$0xff] %v3827
            %3984 = vst [vmem:[#allocation11 + $0x30] sm:$0xff] %v3842
            %3985 = vst [vmem:[#allocation11 + $0x38] sm:$0xff] %v3857
            %3986 = vst [vmem:[#allocation11 + $0x40] sm:$0xff] %v3872
            %3987 = vst [vmem:[#allocation11 + $0x48] sm:$0xff] %v3887
            %3988 = vst [vmem:[#allocation11 + $0x50] sm:$0xff] %v3902
            %3989 = vst [vmem:[#allocation11 + $0x58] sm:$0xff] %v3917
            %3990 = vst [vmem:[#allocation11 + $0x60] sm:$0xff] %v3932
            %3991 = vst [vmem:[#allocation11 + $0x68] sm:$0xff] %v3947
            %3992 = vst [vmem:[#allocation11 + $0x70] sm:$0xff] %v3962
            %3993 = vst [vmem:[#allocation11 + $0x78] sm:$0xff] %v3977
          $region68: #{tpu_custom_call.1} parent=59 // pred_fallthru
            _
        $region60: #{tpu_custom_call.1} parent=31 // pred_fallthru
          _
        // Predicated region
        $region69: #{tpu_custom_call.1} parent=31 // pred_check
          %p3994 = pneg %p137
        $region70: #{tpu_custom_call.1} parent=31 // pred_check_branch
          %3996 = sbr.rel (%p3994) target = $region72
        $region71: #{tpu_custom_call.1} parent=31 // pred_region
          %s3997 = smul.u32 16, %s26
          %3999 = vsyncadd [#allocation7], 0
          %s4000 = smul.addr %s3997, 8
          %s4001 = scalar_lea.hbm %s4, %s4000
          %s4002 = sshll.u32 [#allocation11], 4
          %s4003 = int_to_ptr.vmem [resolvable:$true] %s4002
          %s4004 = sshll.u32 %s4001, 4
          %s4005 = int_to_ptr.hbm [resolvable:$true] %s4004
          %4010 = dma.vmem_to_hbm [thread:$0]  %s4003, 2048, %s4005, [#allocation7], 128, 128, 8
        $region72: #{tpu_custom_call.1} parent=31 // pred_fallthru
          _
        // Predicated region
        $region73: #{tpu_custom_call.1} parent=31 // pred_check
          %p4011 = pneg %p137
        $region74: #{tpu_custom_call.1} parent=31 // pred_check_branch
          %4013 = sbr.rel (%p4011) target = $region76
        $region75: #{tpu_custom_call.1} parent=31 // pred_region
          %4015 = dma.done [#allocation7], 2048
        $region76: #{tpu_custom_call.1} parent=31 // pred_fallthru
          _
      $region32: #{tpu_custom_call.1} parent=5 // pred_fallthru
        _
      %p4016 = scmp.le.s32.totalorder 2, %s15
      // Predicated region
      $region77: #{tpu_custom_call.1} parent=5 // pred_check
        %p4017 = pneg %p4016
      $region78: #{tpu_custom_call.1} parent=5 // pred_check_branch
        %4019 = sbr.rel (%p4017) target = $region80
      $region79: #{tpu_custom_call.1} parent=5 // pred_region
        %s4020 = ssub.s32 %s15, 2
      $region80: #{tpu_custom_call.1} parent=5 // pred_fallthru
        _
    $region6: #{tpu_custom_call.1} parent=1 // loop_footer
      %s19 = sadd.s32 1, %s15
    $region7: #{tpu_custom_call.1} parent=1 // loop_footer_branch
      %14 = sbr.rel target = $region3
    $region8: #{tpu_custom_call.1} parent=1 // loop_exit
      _
    %4021 = vsyncpa [#allocation6], 1
    %s4022 = scalar_lea.sflag [#allocation6], 1
    %4023 = vsyncpa %s4022, 1
    %4024 = vsyncpa [#allocation9], 1
    %s4025 = scalar_lea.sflag [#allocation9], 1
    %4026 = vsyncpa %s4025, 1
    %4027 = vsyncpa [#allocation7], 1
    %s4028 = scalar_lea.sflag [#allocation7], 1
    %4029 = vsyncpa %s4028, 1
  %4030 = vsyncmov [#allocation4]
  %s4031 = vpop.sfrf %4030
  %p4032 = scmp.eq.s32.totalorder %s4031, 0
  %p4033 = pneg %p4032
  %4035 = shalt.err (%p4033)

</llo_original>
